<compile_context>
chip_gen: v6e
topology: v6e:2x2x1
jax: 0.10.0
libtpu: 0.0.40
codegen_flags: <defaults>
</compile_context>

<pallas_src>
import functools

import jax
import jax.numpy as jnp
import numpy as np
from jax.experimental import pallas as pl
from jax.experimental.pallas import tpu as pltpu

K = 7       # Conv1d kernel size
PAD = 3     # Conv1d padding ("same")
BN_EPS = 1e-5


# ----------------------------- kernel helpers -------------------------------
def _conv_relu_bn(h, scr_ref, w_ref, b_ref, scale_ref, shift_ref):
    """One Conv1d(k=7, 'same') + bias + ReLU + folded eval-mode BN.

    h        : (L, Cin) f32 value (current activation for this sample).
    scr_ref  : (L0 + 2*PAD, Cmax) VMEM scratch whose halo rows [0, PAD) and
               [L+PAD, L+2*PAD) are already zero for the current L.
    w_ref    : (K*Cin, Cout) im2col-flattened weights (tap-major, chan-minor).
    Returns (L, Cout) f32 value.
    """
    l, cin = h.shape
    # Stage the activation in the zero-halo scratch (single VMEM store).
    scr_ref[PAD:PAD + l, 0:cin] = h
    # im2col: the 7 tap windows are unmasked shifted slices of the scratch;
    # concatenated along lanes they form the (L, K*Cin) matmul operand.
    cols = jnp.concatenate([scr_ref[t:t + l, 0:cin] for t in range(K)], axis=-1)
    acc = jnp.dot(cols, w_ref[...], preferred_element_type=jnp.float32)
    y = jnp.maximum(acc + b_ref[...], 0.0)            # bias + ReLU
    return y * scale_ref[...] + shift_ref[...]        # folded eval-mode BN


def _fused_kernel(*refs, n_blocks, pools):
    # refs = [x] + 8*n_blocks params + [out, scratch]
    x_ref = refs[0]
    param_refs = refs[1:1 + 8 * n_blocks]
    o_ref = refs[1 + 8 * n_blocks]
    scr = refs[2 + 8 * n_blocks]
    c_scr = scr.shape[1]

    h = x_ref[...].astype(jnp.float32)                 # (L, 1) for this sample
    for blk in range(n_blocks):
        w1, b1, s1, t1, w2, b2, s2, t2 = param_refs[8 * blk:8 * blk + 8]
        l = h.shape[0]
        # Re-zero the PAD-row halos for the current sequence length (the pool
        # write below / the previous, longer activation leave stale data).
        scr[0:PAD, :] = jnp.zeros((PAD, c_scr), jnp.float32)
        scr[l + PAD:l + 2 * PAD, :] = jnp.zeros((PAD, c_scr), jnp.float32)

        h = _conv_relu_bn(h, scr, w1, b1, s1, t1)
        h = _conv_relu_bn(h, scr, w2, b2, s2, t2)

        if pools[blk]:
            # MaxPool(2,2): write the BN output straight into the shared
            # scratch and read even/odd rows back with stride-2 slices.
            l, c = h.shape
            half = l // 2
            scr[0:l, 0:c] = h
            even = scr[pl.ds(0, half, stride=2), 0:c]
            odd = scr[pl.ds(1, half, stride=2), 0:c]
            h = jnp.maximum(even, odd)

    o_ref[...] = h.astype(o_ref.dtype)


# ------------------------------- wrapper ------------------------------------
def conv_layer_forward(x_ncl, params):
    """Full ConvLayer forward. x_ncl: PyTorch layout (N, 1, L) -> (N, 32, L//8)."""
    n, cin0, l0 = x_ncl.shape
    assert cin0 == 1, "ConvLayer input has a single channel"
    # 3 maxpools + 8-row output blocks per sample => L must be a multiple of 64.
    assert l0 % 64 == 0, "L must be a multiple of 64"

    x2d = x_ncl.reshape(n * l0, 1)                     # pure reshape, no transpose

    flat_args = []
    in_specs = [pl.BlockSpec((l0, 1), lambda i: (i, 0))]   # one sample per step
    pools = []
    l_cur = l0
    c_out = 1
    c_max = 1
    for block_params, pool in params:
        w1, b1, s1, t1, w2, b2, s2, t2 = block_params
        k1, ci1, co1 = w1.shape
        k2, ci2, co2 = w2.shape
        c_max = max(c_max, co1, co2)
        c_out = co2
        # Host-side im2col weight flattening: (K, Cin, Cout) -> (K*Cin, Cout),
        # tap-major / channel-minor to match the in-kernel lane concatenation.
        for arr in (w1.reshape(k1 * ci1, co1), b1, s1, t1,
                    w2.reshape(k2 * ci2, co2), b2, s2, t2):
            flat_args.append(arr)
            in_specs.append(pl.BlockSpec(arr.shape, lambda i: (0, 0)))
        pools.append(bool(pool))
        if pool:
            assert l_cur % 2 == 0
            l_cur //= 2
    l_out = l_cur

    kernel = functools.partial(_fused_kernel, n_blocks=len(params),
                               pools=tuple(pools))
    out2d = pl.pallas_call(
        kernel,
        out_shape=jax.ShapeDtypeStruct((n * l_out, c_out), jnp.float32),
        grid_spec=pltpu.PrefetchScalarGridSpec(
            num_scalar_prefetch=0,
            grid=(n,),                                  # one sample per grid step
            in_specs=in_specs,
            out_specs=pl.BlockSpec((l_out, c_out), lambda i: (i, 0)),
            # Single shared scratch, reused by all conv stagings and maxpools.
            scratch_shapes=[pltpu.VMEM((l0 + 2 * PAD, c_max), jnp.float32)],
        ),
        compiler_params=pltpu.CompilerParams(
            dimension_semantics=("parallel",)),         # v7x: 2 TCs split batch
    )(x2d, *flat_args)

    # Final tiny layout fix back to the PyTorch NCL convention.
    return jnp.transpose(out2d.reshape(n, l_out, c_out), (0, 2, 1))


# ------------------------- deterministic parameters ---------------------------
def _init_conv_bn(key, cin, cout):
    kw, kb, kg, kbt, km, kv = jax.random.split(key, 6)
    fan = cin * K
    w = jax.random.normal(kw, (K, cin, cout), jnp.float32) / np.sqrt(fan)
    b = 0.1 * jax.random.normal(kb, (1, cout), jnp.float32)
    gamma = 1.0 + 0.1 * jax.random.normal(kg, (1, cout), jnp.float32)
    beta = 0.1 * jax.random.normal(kbt, (1, cout), jnp.float32)
    rmean = 0.1 * jax.random.normal(km, (1, cout), jnp.float32)
    rvar = 1.0 + 0.1 * jax.random.uniform(kv, (1, cout), jnp.float32)
    scale = gamma / jnp.sqrt(rvar + BN_EPS)   # fold eval-mode BN -> affine
    shift = beta - rmean * scale
    return w, b, scale, shift


def init_params(key):
    # (Cin, Cmid=int(Cin*mul), Cout, pool) for the 4 blocks of ConvLayer
    specs = [(1, 1, 8, False), (8, 8, 16, True), (16, 16, 24, True), (24, 24, 32, True)]
    params = []
    for cin, cmid, cout, pool in specs:
        k1, k2, key = jax.random.split(key, 3)
        p1 = _init_conv_bn(k1, cin, cmid)
        p2 = _init_conv_bn(k2, cmid, cout)
        params.append((p1 + p2, pool))
    return params


# ------------------------------ pure-JAX reference ----------------------------
def _ref_conv_relu_bn(x, w, b, scale, shift):
    y = jax.lax.conv_general_dilated(
        x, w, window_strides=(1,), padding=((PAD, PAD),),
        dimension_numbers=("NHC", "HIO", "NHC"),
        precision=jax.lax.Precision.HIGHEST)
    y = jnp.maximum(y + b, 0.0)
    return y * scale + shift


def ref_forward(x_ncl, params):
    x = jnp.transpose(x_ncl, (0, 2, 1))
    for (w1, b1, s1, t1, w2, b2, s2, t2), pool in params:
        x = _ref_conv_relu_bn(x, w1, b1, s1, t1)
        x = _ref_conv_relu_bn(x, w2, b2, s2, t2)
        if pool:
            N, L, C = x.shape
            x = x.reshape(N, L // 2, 2, C).max(axis=2)
    return jnp.transpose(x, (0, 2, 1))


# ----------------------------------- main -------------------------------------
if __name__ == "__main__":
    key = jax.random.PRNGKey(0)
    kx, kp = jax.random.split(key)

    N, L = 2, 64
    x = jax.random.normal(kx, (N, 1, L), jnp.float32)   # PyTorch NCL input
    params = init_params(kp)

    out = jax.block_until_ready(conv_layer_forward(x, params))

    ref = ref_forward(x, params)
    np.testing.assert_allclose(np.asarray(out), np.asarray(ref), rtol=5e-3, atol=5e-3)
    assert out.shape == (N, 32, L // 8)

    print("KERNEL_OK")
</pallas_src>

<mosaic_0001>
module attributes {stable_mosaic.version = 11 : i64} {
  func.func @_fused_kernel(%arg0: i32, %arg1: memref<64x1xf32, #tpu.memory_space<vmem>>, %arg2: memref<7x1xf32, #tpu.memory_space<vmem>>, %arg3: memref<1x1xf32, #tpu.memory_space<vmem>>, %arg4: memref<1x1xf32, #tpu.memory_space<vmem>>, %arg5: memref<1x1xf32, #tpu.memory_space<vmem>>, %arg6: memref<7x8xf32, #tpu.memory_space<vmem>>, %arg7: memref<1x8xf32, #tpu.memory_space<vmem>>, %arg8: memref<1x8xf32, #tpu.memory_space<vmem>>, %arg9: memref<1x8xf32, #tpu.memory_space<vmem>>, %arg10: memref<56x8xf32, #tpu.memory_space<vmem>>, %arg11: memref<1x8xf32, #tpu.memory_space<vmem>>, %arg12: memref<1x8xf32, #tpu.memory_space<vmem>>, %arg13: memref<1x8xf32, #tpu.memory_space<vmem>>, %arg14: memref<56x16xf32, #tpu.memory_space<vmem>>, %arg15: memref<1x16xf32, #tpu.memory_space<vmem>>, %arg16: memref<1x16xf32, #tpu.memory_space<vmem>>, %arg17: memref<1x16xf32, #tpu.memory_space<vmem>>, %arg18: memref<112x16xf32, #tpu.memory_space<vmem>>, %arg19: memref<1x16xf32, #tpu.memory_space<vmem>>, %arg20: memref<1x16xf32, #tpu.memory_space<vmem>>, %arg21: memref<1x16xf32, #tpu.memory_space<vmem>>, %arg22: memref<112x24xf32, #tpu.memory_space<vmem>>, %arg23: memref<1x24xf32, #tpu.memory_space<vmem>>, %arg24: memref<1x24xf32, #tpu.memory_space<vmem>>, %arg25: memref<1x24xf32, #tpu.memory_space<vmem>>, %arg26: memref<168x24xf32, #tpu.memory_space<vmem>>, %arg27: memref<1x24xf32, #tpu.memory_space<vmem>>, %arg28: memref<1x24xf32, #tpu.memory_space<vmem>>, %arg29: memref<1x24xf32, #tpu.memory_space<vmem>>, %arg30: memref<168x32xf32, #tpu.memory_space<vmem>>, %arg31: memref<1x32xf32, #tpu.memory_space<vmem>>, %arg32: memref<1x32xf32, #tpu.memory_space<vmem>>, %arg33: memref<1x32xf32, #tpu.memory_space<vmem>>, %arg34: memref<8x32xf32, #tpu.memory_space<vmem>>, %arg35: memref<70x32xf32, #tpu.memory_space<vmem>>) attributes {dimension_semantics = [#tpu.dimension_semantics<parallel>], iteration_bounds = array<i64: 2>, scalar_prefetch = 0 : i64, scratch_operands = 1 : i64, tpu.core_type = #tpu.core_type<tc>, window_params = [{transform_indices = @transform_0, window_bounds = array<i64: 64, 1>}, {pipeline_mode = #tpu.pipeline_mode<synchronous>, transform_indices = @transform_1, window_bounds = array<i64: 7, 1>}, {pipeline_mode = #tpu.pipeline_mode<synchronous>, transform_indices = @transform_2, window_bounds = array<i64: 1, 1>}, {pipeline_mode = #tpu.pipeline_mode<synchronous>, transform_indices = @transform_3, window_bounds = array<i64: 1, 1>}, {pipeline_mode = #tpu.pipeline_mode<synchronous>, transform_indices = @transform_4, window_bounds = array<i64: 1, 1>}, {pipeline_mode = #tpu.pipeline_mode<synchronous>, transform_indices = @transform_5, window_bounds = array<i64: 7, 8>}, {pipeline_mode = #tpu.pipeline_mode<synchronous>, transform_indices = @transform_6, window_bounds = array<i64: 1, 8>}, {pipeline_mode = #tpu.pipeline_mode<synchronous>, transform_indices = @transform_7, window_bounds = array<i64: 1, 8>}, {pipeline_mode = #tpu.pipeline_mode<synchronous>, transform_indices = @transform_8, window_bounds = array<i64: 1, 8>}, {pipeline_mode = #tpu.pipeline_mode<synchronous>, transform_indices = @transform_9, window_bounds = array<i64: 56, 8>}, {pipeline_mode = #tpu.pipeline_mode<synchronous>, transform_indices = @transform_10, window_bounds = array<i64: 1, 8>}, {pipeline_mode = #tpu.pipeline_mode<synchronous>, transform_indices = @transform_11, window_bounds = array<i64: 1, 8>}, {pipeline_mode = #tpu.pipeline_mode<synchronous>, transform_indices = @transform_12, window_bounds = array<i64: 1, 8>}, {pipeline_mode = #tpu.pipeline_mode<synchronous>, transform_indices = @transform_13, window_bounds = array<i64: 56, 16>}, {pipeline_mode = #tpu.pipeline_mode<synchronous>, transform_indices = @transform_14, window_bounds = array<i64: 1, 16>}, {pipeline_mode = #tpu.pipeline_mode<synchronous>, transform_indices = @transform_15, window_bounds = array<i64: 1, 16>}, {pipeline_mode = #tpu.pipeline_mode<synchronous>, transform_indices = @transform_16, window_bounds = array<i64: 1, 16>}, {pipeline_mode = #tpu.pipeline_mode<synchronous>, transform_indices = @transform_17, window_bounds = array<i64: 112, 16>}, {pipeline_mode = #tpu.pipeline_mode<synchronous>, transform_indices = @transform_18, window_bounds = array<i64: 1, 16>}, {pipeline_mode = #tpu.pipeline_mode<synchronous>, transform_indices = @transform_19, window_bounds = array<i64: 1, 16>}, {pipeline_mode = #tpu.pipeline_mode<synchronous>, transform_indices = @transform_20, window_bounds = array<i64: 1, 16>}, {pipeline_mode = #tpu.pipeline_mode<synchronous>, transform_indices = @transform_21, window_bounds = array<i64: 112, 24>}, {pipeline_mode = #tpu.pipeline_mode<synchronous>, transform_indices = @transform_22, window_bounds = array<i64: 1, 24>}, {pipeline_mode = #tpu.pipeline_mode<synchronous>, transform_indices = @transform_23, window_bounds = array<i64: 1, 24>}, {pipeline_mode = #tpu.pipeline_mode<synchronous>, transform_indices = @transform_24, window_bounds = array<i64: 1, 24>}, {pipeline_mode = #tpu.pipeline_mode<synchronous>, transform_indices = @transform_25, window_bounds = array<i64: 168, 24>}, {pipeline_mode = #tpu.pipeline_mode<synchronous>, transform_indices = @transform_26, window_bounds = array<i64: 1, 24>}, {pipeline_mode = #tpu.pipeline_mode<synchronous>, transform_indices = @transform_27, window_bounds = array<i64: 1, 24>}, {pipeline_mode = #tpu.pipeline_mode<synchronous>, transform_indices = @transform_28, window_bounds = array<i64: 1, 24>}, {pipeline_mode = #tpu.pipeline_mode<synchronous>, transform_indices = @transform_29, window_bounds = array<i64: 168, 32>}, {pipeline_mode = #tpu.pipeline_mode<synchronous>, transform_indices = @transform_30, window_bounds = array<i64: 1, 32>}, {pipeline_mode = #tpu.pipeline_mode<synchronous>, transform_indices = @transform_31, window_bounds = array<i64: 1, 32>}, {pipeline_mode = #tpu.pipeline_mode<synchronous>, transform_indices = @transform_32, window_bounds = array<i64: 1, 32>}, {transform_indices = @transform_33, window_bounds = array<i64: 8, 32>}]} {
    %c0 = arith.constant 0 : index
    %c0_0 = arith.constant 0 : index
    %0 = vector.load %arg1[%c0, %c0_0] : memref<64x1xf32, #tpu.memory_space<vmem>>, vector<64x1xf32>
    %cst = arith.constant 0.000000e+00 : f32
    %1 = vector.broadcast %cst : f32 to vector<3x32xf32>
    %c0_1 = arith.constant 0 : index
    %c0_2 = arith.constant 0 : index
    %2 = vector.load %arg35[%c0_1, %c0_2] : memref<70x32xf32, #tpu.memory_space<vmem>>, vector<3x32xf32>
    tpu.vector_store %arg35[%c0_1, %c0_2], %1 {strides = array<i32>} : memref<70x32xf32, #tpu.memory_space<vmem>>, vector<3x32xf32>,
    %cst_3 = arith.constant 0.000000e+00 : f32
    %3 = vector.broadcast %cst_3 : f32 to vector<3x32xf32>
    %c67 = arith.constant 67 : index
    %c0_4 = arith.constant 0 : index
    %4 = vector.load %arg35[%c67, %c0_4] : memref<70x32xf32, #tpu.memory_space<vmem>>, vector<3x32xf32>
    tpu.vector_store %arg35[%c67, %c0_4], %3 {strides = array<i32>} : memref<70x32xf32, #tpu.memory_space<vmem>>, vector<3x32xf32>,
    %c3 = arith.constant 3 : index
    %c0_5 = arith.constant 0 : index
    %5 = vector.load %arg35[%c3, %c0_5] : memref<70x32xf32, #tpu.memory_space<vmem>>, vector<64x1xf32>
    tpu.vector_store %arg35[%c3, %c0_5], %0 {strides = array<i32>} : memref<70x32xf32, #tpu.memory_space<vmem>>, vector<64x1xf32>,
    %c0_6 = arith.constant 0 : index
    %c0_7 = arith.constant 0 : index
    %6 = vector.load %arg35[%c0_6, %c0_7] : memref<70x32xf32, #tpu.memory_space<vmem>>, vector<64x1xf32>
    %c1 = arith.constant 1 : index
    %c0_8 = arith.constant 0 : index
    %7 = vector.load %arg35[%c1, %c0_8] : memref<70x32xf32, #tpu.memory_space<vmem>>, vector<64x1xf32>
    %c2 = arith.constant 2 : index
    %c0_9 = arith.constant 0 : index
    %8 = vector.load %arg35[%c2, %c0_9] : memref<70x32xf32, #tpu.memory_space<vmem>>, vector<64x1xf32>
    %c3_10 = arith.constant 3 : index
    %c0_11 = arith.constant 0 : index
    %9 = vector.load %arg35[%c3_10, %c0_11] : memref<70x32xf32, #tpu.memory_space<vmem>>, vector<64x1xf32>
    %c4 = arith.constant 4 : index
    %c0_12 = arith.constant 0 : index
    %10 = vector.load %arg35[%c4, %c0_12] : memref<70x32xf32, #tpu.memory_space<vmem>>, vector<64x1xf32>
    %c5 = arith.constant 5 : index
    %c0_13 = arith.constant 0 : index
    %11 = vector.load %arg35[%c5, %c0_13] : memref<70x32xf32, #tpu.memory_space<vmem>>, vector<64x1xf32>
    %c6 = arith.constant 6 : index
    %c0_14 = arith.constant 0 : index
    %12 = vector.load %arg35[%c6, %c0_14] : memref<70x32xf32, #tpu.memory_space<vmem>>, vector<64x1xf32>
    %13 = tpu.concatenate %6, %7, %8, %9, %10, %11, %12 in 1 : vector<64x1xf32>, vector<64x1xf32>, vector<64x1xf32>, vector<64x1xf32>, vector<64x1xf32>, vector<64x1xf32>, vector<64x1xf32> -> vector<64x7xf32>
    %c0_15 = arith.constant 0 : index
    %c0_16 = arith.constant 0 : index
    %14 = vector.load %arg2[%c0_15, %c0_16] : memref<7x1xf32, #tpu.memory_space<vmem>>, vector<7x1xf32>
    %cst_17 = arith.constant dense<0.000000e+00> : vector<64x1xf32>
    %15 = tpu.matmul %13, %14, %cst_17 {dimension_numbers = #tpu.dot_dimension_numbers<[1], [0], [0], [1], [0, 0, 1, 1], [], []>} : vector<64x7xf32>, vector<7x1xf32>, vector<64x1xf32> -> vector<64x1xf32>
    %c0_18 = arith.constant 0 : index
    %c0_19 = arith.constant 0 : index
    %16 = vector.load %arg3[%c0_18, %c0_19] : memref<1x1xf32, #tpu.memory_space<vmem>>, vector<1x1xf32>
    %17 = vector.broadcast %16 : vector<1x1xf32> to vector<64x1xf32>
    %18 = arith.addf %15, %17 : vector<64x1xf32>
    %cst_20 = arith.constant 0.000000e+00 : f32
    %19 = vector.broadcast %cst_20 : f32 to vector<64x1xf32>
    %20 = arith.maximumf %18, %19 : vector<64x1xf32>
    %c0_21 = arith.constant 0 : index
    %c0_22 = arith.constant 0 : index
    %21 = vector.load %arg4[%c0_21, %c0_22] : memref<1x1xf32, #tpu.memory_space<vmem>>, vector<1x1xf32>
    %22 = vector.broadcast %21 : vector<1x1xf32> to vector<64x1xf32>
    %23 = arith.mulf %20, %22 : vector<64x1xf32>
    %c0_23 = arith.constant 0 : index
    %c0_24 = arith.constant 0 : index
    %24 = vector.load %arg5[%c0_23, %c0_24] : memref<1x1xf32, #tpu.memory_space<vmem>>, vector<1x1xf32>
    %25 = vector.broadcast %24 : vector<1x1xf32> to vector<64x1xf32>
    %26 = arith.addf %23, %25 : vector<64x1xf32>
    %c3_25 = arith.constant 3 : index
    %c0_26 = arith.constant 0 : index
    %27 = vector.load %arg35[%c3_25, %c0_26] : memref<70x32xf32, #tpu.memory_space<vmem>>, vector<64x1xf32>
    tpu.vector_store %arg35[%c3_25, %c0_26], %26 {strides = array<i32>} : memref<70x32xf32, #tpu.memory_space<vmem>>, vector<64x1xf32>,
    %c0_27 = arith.constant 0 : index
    %c0_28 = arith.constant 0 : index
    %28 = vector.load %arg35[%c0_27, %c0_28] : memref<70x32xf32, #tpu.memory_space<vmem>>, vector<64x1xf32>
    %c1_29 = arith.constant 1 : index
    %c0_30 = arith.constant 0 : index
    %29 = vector.load %arg35[%c1_29, %c0_30] : memref<70x32xf32, #tpu.memory_space<vmem>>, vector<64x1xf32>
    %c2_31 = arith.constant 2 : index
    %c0_32 = arith.constant 0 : index
    %30 = vector.load %arg35[%c2_31, %c0_32] : memref<70x32xf32, #tpu.memory_space<vmem>>, vector<64x1xf32>
    %c3_33 = arith.constant 3 : index
    %c0_34 = arith.constant 0 : index
    %31 = vector.load %arg35[%c3_33, %c0_34] : memref<70x32xf32, #tpu.memory_space<vmem>>, vector<64x1xf32>
    %c4_35 = arith.constant 4 : index
    %c0_36 = arith.constant 0 : index
    %32 = vector.load %arg35[%c4_35, %c0_36] : memref<70x32xf32, #tpu.memory_space<vmem>>, vector<64x1xf32>
    %c5_37 = arith.constant 5 : index
    %c0_38 = arith.constant 0 : index
    %33 = vector.load %arg35[%c5_37, %c0_38] : memref<70x32xf32, #tpu.memory_space<vmem>>, vector<64x1xf32>
    %c6_39 = arith.constant 6 : index
    %c0_40 = arith.constant 0 : index
    %34 = vector.load %arg35[%c6_39, %c0_40] : memref<70x32xf32, #tpu.memory_space<vmem>>, vector<64x1xf32>
    %35 = tpu.concatenate %28, %29, %30, %31, %32, %33, %34 in 1 : vector<64x1xf32>, vector<64x1xf32>, vector<64x1xf32>, vector<64x1xf32>, vector<64x1xf32>, vector<64x1xf32>, vector<64x1xf32> -> vector<64x7xf32>
    %c0_41 = arith.constant 0 : index
    %c0_42 = arith.constant 0 : index
    %36 = vector.load %arg6[%c0_41, %c0_42] : memref<7x8xf32, #tpu.memory_space<vmem>>, vector<7x8xf32>
    %cst_43 = arith.constant dense<0.000000e+00> : vector<64x8xf32>
    %37 = tpu.matmul %35, %36, %cst_43 {dimension_numbers = #tpu.dot_dimension_numbers<[1], [0], [0], [1], [0, 0, 1, 1], [], []>} : vector<64x7xf32>, vector<7x8xf32>, vector<64x8xf32> -> vector<64x8xf32>
    %c0_44 = arith.constant 0 : index
    %c0_45 = arith.constant 0 : index
    %38 = vector.load %arg7[%c0_44, %c0_45] : memref<1x8xf32, #tpu.memory_space<vmem>>, vector<1x8xf32>
    %39 = vector.broadcast %38 : vector<1x8xf32> to vector<64x8xf32>
    %40 = arith.addf %37, %39 : vector<64x8xf32>
    %cst_46 = arith.constant 0.000000e+00 : f32
    %41 = vector.broadcast %cst_46 : f32 to vector<64x8xf32>
    %42 = arith.maximumf %40, %41 : vector<64x8xf32>
    %c0_47 = arith.constant 0 : index
    %c0_48 = arith.constant 0 : index
    %43 = vector.load %arg8[%c0_47, %c0_48] : memref<1x8xf32, #tpu.memory_space<vmem>>, vector<1x8xf32>
    %44 = vector.broadcast %43 : vector<1x8xf32> to vector<64x8xf32>
    %45 = arith.mulf %42, %44 : vector<64x8xf32>
    %c0_49 = arith.constant 0 : index
    %c0_50 = arith.constant 0 : index
    %46 = vector.load %arg9[%c0_49, %c0_50] : memref<1x8xf32, #tpu.memory_space<vmem>>, vector<1x8xf32>
    %47 = vector.broadcast %46 : vector<1x8xf32> to vector<64x8xf32>
    %48 = arith.addf %45, %47 : vector<64x8xf32>
    %cst_51 = arith.constant 0.000000e+00 : f32
    %49 = vector.broadcast %cst_51 : f32 to vector<3x32xf32>
    %c0_52 = arith.constant 0 : index
    %c0_53 = arith.constant 0 : index
    %50 = vector.load %arg35[%c0_52, %c0_53] : memref<70x32xf32, #tpu.memory_space<vmem>>, vector<3x32xf32>
    tpu.vector_store %arg35[%c0_52, %c0_53], %49 {strides = array<i32>} : memref<70x32xf32, #tpu.memory_space<vmem>>, vector<3x32xf32>,
    %cst_54 = arith.constant 0.000000e+00 : f32
    %51 = vector.broadcast %cst_54 : f32 to vector<3x32xf32>
    %c67_55 = arith.constant 67 : index
    %c0_56 = arith.constant 0 : index
    %52 = vector.load %arg35[%c67_55, %c0_56] : memref<70x32xf32, #tpu.memory_space<vmem>>, vector<3x32xf32>
    tpu.vector_store %arg35[%c67_55, %c0_56], %51 {strides = array<i32>} : memref<70x32xf32, #tpu.memory_space<vmem>>, vector<3x32xf32>,
    %c3_57 = arith.constant 3 : index
    %c0_58 = arith.constant 0 : index
    %53 = vector.load %arg35[%c3_57, %c0_58] : memref<70x32xf32, #tpu.memory_space<vmem>>, vector<64x8xf32>
    tpu.vector_store %arg35[%c3_57, %c0_58], %48 {strides = array<i32>} : memref<70x32xf32, #tpu.memory_space<vmem>>, vector<64x8xf32>,
    %c0_59 = arith.constant 0 : index
    %c0_60 = arith.constant 0 : index
    %54 = vector.load %arg35[%c0_59, %c0_60] : memref<70x32xf32, #tpu.memory_space<vmem>>, vector<64x8xf32>
    %c1_61 = arith.constant 1 : index
    %c0_62 = arith.constant 0 : index
    %55 = vector.load %arg35[%c1_61, %c0_62] : memref<70x32xf32, #tpu.memory_space<vmem>>, vector<64x8xf32>
    %c2_63 = arith.constant 2 : index
    %c0_64 = arith.constant 0 : index
    %56 = vector.load %arg35[%c2_63, %c0_64] : memref<70x32xf32, #tpu.memory_space<vmem>>, vector<64x8xf32>
    %c3_65 = arith.constant 3 : index
    %c0_66 = arith.constant 0 : index
    %57 = vector.load %arg35[%c3_65, %c0_66] : memref<70x32xf32, #tpu.memory_space<vmem>>, vector<64x8xf32>
    %c4_67 = arith.constant 4 : index
    %c0_68 = arith.constant 0 : index
    %58 = vector.load %arg35[%c4_67, %c0_68] : memref<70x32xf32, #tpu.memory_space<vmem>>, vector<64x8xf32>
    %c5_69 = arith.constant 5 : index
    %c0_70 = arith.constant 0 : index
    %59 = vector.load %arg35[%c5_69, %c0_70] : memref<70x32xf32, #tpu.memory_space<vmem>>, vector<64x8xf32>
    %c6_71 = arith.constant 6 : index
    %c0_72 = arith.constant 0 : index
    %60 = vector.load %arg35[%c6_71, %c0_72] : memref<70x32xf32, #tpu.memory_space<vmem>>, vector<64x8xf32>
    %61 = tpu.concatenate %54, %55, %56, %57, %58, %59, %60 in 1 : vector<64x8xf32>, vector<64x8xf32>, vector<64x8xf32>, vector<64x8xf32>, vector<64x8xf32>, vector<64x8xf32>, vector<64x8xf32> -> vector<64x56xf32>
    %c0_73 = arith.constant 0 : index
    %c0_74 = arith.constant 0 : index
    %62 = vector.load %arg10[%c0_73, %c0_74] : memref<56x8xf32, #tpu.memory_space<vmem>>, vector<56x8xf32>
    %cst_75 = arith.constant dense<0.000000e+00> : vector<64x8xf32>
    %63 = tpu.matmul %61, %62, %cst_75 {dimension_numbers = #tpu.dot_dimension_numbers<[1], [0], [0], [1], [0, 0, 1, 1], [], []>} : vector<64x56xf32>, vector<56x8xf32>, vector<64x8xf32> -> vector<64x8xf32>
    %c0_76 = arith.constant 0 : index
    %c0_77 = arith.constant 0 : index
    %64 = vector.load %arg11[%c0_76, %c0_77] : memref<1x8xf32, #tpu.memory_space<vmem>>, vector<1x8xf32>
    %65 = vector.broadcast %64 : vector<1x8xf32> to vector<64x8xf32>
    %66 = arith.addf %63, %65 : vector<64x8xf32>
    %cst_78 = arith.constant 0.000000e+00 : f32
    %67 = vector.broadcast %cst_78 : f32 to vector<64x8xf32>
    %68 = arith.maximumf %66, %67 : vector<64x8xf32>
    %c0_79 = arith.constant 0 : index
    %c0_80 = arith.constant 0 : index
    %69 = vector.load %arg12[%c0_79, %c0_80] : memref<1x8xf32, #tpu.memory_space<vmem>>, vector<1x8xf32>
    %70 = vector.broadcast %69 : vector<1x8xf32> to vector<64x8xf32>
    %71 = arith.mulf %68, %70 : vector<64x8xf32>
    %c0_81 = arith.constant 0 : index
    %c0_82 = arith.constant 0 : index
    %72 = vector.load %arg13[%c0_81, %c0_82] : memref<1x8xf32, #tpu.memory_space<vmem>>, vector<1x8xf32>
    %73 = vector.broadcast %72 : vector<1x8xf32> to vector<64x8xf32>
    %74 = arith.addf %71, %73 : vector<64x8xf32>
    %c3_83 = arith.constant 3 : index
    %c0_84 = arith.constant 0 : index
    %75 = vector.load %arg35[%c3_83, %c0_84] : memref<70x32xf32, #tpu.memory_space<vmem>>, vector<64x8xf32>
    tpu.vector_store %arg35[%c3_83, %c0_84], %74 {strides = array<i32>} : memref<70x32xf32, #tpu.memory_space<vmem>>, vector<64x8xf32>,
    %c0_85 = arith.constant 0 : index
    %c0_86 = arith.constant 0 : index
    %76 = vector.load %arg35[%c0_85, %c0_86] : memref<70x32xf32, #tpu.memory_space<vmem>>, vector<64x8xf32>
    %c1_87 = arith.constant 1 : index
    %c0_88 = arith.constant 0 : index
    %77 = vector.load %arg35[%c1_87, %c0_88] : memref<70x32xf32, #tpu.memory_space<vmem>>, vector<64x8xf32>
    %c2_89 = arith.constant 2 : index
    %c0_90 = arith.constant 0 : index
    %78 = vector.load %arg35[%c2_89, %c0_90] : memref<70x32xf32, #tpu.memory_space<vmem>>, vector<64x8xf32>
    %c3_91 = arith.constant 3 : index
    %c0_92 = arith.constant 0 : index
    %79 = vector.load %arg35[%c3_91, %c0_92] : memref<70x32xf32, #tpu.memory_space<vmem>>, vector<64x8xf32>
    %c4_93 = arith.constant 4 : index
    %c0_94 = arith.constant 0 : index
    %80 = vector.load %arg35[%c4_93, %c0_94] : memref<70x32xf32, #tpu.memory_space<vmem>>, vector<64x8xf32>
    %c5_95 = arith.constant 5 : index
    %c0_96 = arith.constant 0 : index
    %81 = vector.load %arg35[%c5_95, %c0_96] : memref<70x32xf32, #tpu.memory_space<vmem>>, vector<64x8xf32>
    %c6_97 = arith.constant 6 : index
    %c0_98 = arith.constant 0 : index
    %82 = vector.load %arg35[%c6_97, %c0_98] : memref<70x32xf32, #tpu.memory_space<vmem>>, vector<64x8xf32>
    %83 = tpu.concatenate %76, %77, %78, %79, %80, %81, %82 in 1 : vector<64x8xf32>, vector<64x8xf32>, vector<64x8xf32>, vector<64x8xf32>, vector<64x8xf32>, vector<64x8xf32>, vector<64x8xf32> -> vector<64x56xf32>
    %c0_99 = arith.constant 0 : index
    %c0_100 = arith.constant 0 : index
    %84 = vector.load %arg14[%c0_99, %c0_100] : memref<56x16xf32, #tpu.memory_space<vmem>>, vector<56x16xf32>
    %cst_101 = arith.constant dense<0.000000e+00> : vector<64x16xf32>
    %85 = tpu.matmul %83, %84, %cst_101 {dimension_numbers = #tpu.dot_dimension_numbers<[1], [0], [0], [1], [0, 0, 1, 1], [], []>} : vector<64x56xf32>, vector<56x16xf32>, vector<64x16xf32> -> vector<64x16xf32>
    %c0_102 = arith.constant 0 : index
    %c0_103 = arith.constant 0 : index
    %86 = vector.load %arg15[%c0_102, %c0_103] : memref<1x16xf32, #tpu.memory_space<vmem>>, vector<1x16xf32>
    %87 = vector.broadcast %86 : vector<1x16xf32> to vector<64x16xf32>
    %88 = arith.addf %85, %87 : vector<64x16xf32>
    %cst_104 = arith.constant 0.000000e+00 : f32
    %89 = vector.broadcast %cst_104 : f32 to vector<64x16xf32>
    %90 = arith.maximumf %88, %89 : vector<64x16xf32>
    %c0_105 = arith.constant 0 : index
    %c0_106 = arith.constant 0 : index
    %91 = vector.load %arg16[%c0_105, %c0_106] : memref<1x16xf32, #tpu.memory_space<vmem>>, vector<1x16xf32>
    %92 = vector.broadcast %91 : vector<1x16xf32> to vector<64x16xf32>
    %93 = arith.mulf %90, %92 : vector<64x16xf32>
    %c0_107 = arith.constant 0 : index
    %c0_108 = arith.constant 0 : index
    %94 = vector.load %arg17[%c0_107, %c0_108] : memref<1x16xf32, #tpu.memory_space<vmem>>, vector<1x16xf32>
    %95 = vector.broadcast %94 : vector<1x16xf32> to vector<64x16xf32>
    %96 = arith.addf %93, %95 : vector<64x16xf32>
    %c0_109 = arith.constant 0 : index
    %c0_110 = arith.constant 0 : index
    %97 = vector.load %arg35[%c0_109, %c0_110] : memref<70x32xf32, #tpu.memory_space<vmem>>, vector<64x16xf32>
    tpu.vector_store %arg35[%c0_109, %c0_110], %96 {strides = array<i32>} : memref<70x32xf32, #tpu.memory_space<vmem>>, vector<64x16xf32>,
    %c0_111 = arith.constant 0 : index
    %c0_112 = arith.constant 0 : index
    %98 = tpu.strided_load %arg35[%c0_111, %c0_112] {strides = array<i32: 2, 1>} : memref<70x32xf32, #tpu.memory_space<vmem>>, vector<32x16xf32>
    %c1_113 = arith.constant 1 : index
    %c0_114 = arith.constant 0 : index
    %99 = tpu.strided_load %arg35[%c1_113, %c0_114] {strides = array<i32: 2, 1>} : memref<70x32xf32, #tpu.memory_space<vmem>>, vector<32x16xf32>
    %100 = arith.maximumf %98, %99 : vector<32x16xf32>
    %cst_115 = arith.constant 0.000000e+00 : f32
    %101 = vector.broadcast %cst_115 : f32 to vector<3x32xf32>
    %c0_116 = arith.constant 0 : index
    %c0_117 = arith.constant 0 : index
    %102 = vector.load %arg35[%c0_116, %c0_117] : memref<70x32xf32, #tpu.memory_space<vmem>>, vector<3x32xf32>
    tpu.vector_store %arg35[%c0_116, %c0_117], %101 {strides = array<i32>} : memref<70x32xf32, #tpu.memory_space<vmem>>, vector<3x32xf32>,
    %cst_118 = arith.constant 0.000000e+00 : f32
    %103 = vector.broadcast %cst_118 : f32 to vector<3x32xf32>
    %c35 = arith.constant 35 : index
    %c0_119 = arith.constant 0 : index
    %104 = vector.load %arg35[%c35, %c0_119] : memref<70x32xf32, #tpu.memory_space<vmem>>, vector<3x32xf32>
    tpu.vector_store %arg35[%c35, %c0_119], %103 {strides = array<i32>} : memref<70x32xf32, #tpu.memory_space<vmem>>, vector<3x32xf32>,
    %c3_120 = arith.constant 3 : index
    %c0_121 = arith.constant 0 : index
    %105 = vector.load %arg35[%c3_120, %c0_121] : memref<70x32xf32, #tpu.memory_space<vmem>>, vector<32x16xf32>
    tpu.vector_store %arg35[%c3_120, %c0_121], %100 {strides = array<i32>} : memref<70x32xf32, #tpu.memory_space<vmem>>, vector<32x16xf32>,
    %c0_122 = arith.constant 0 : index
    %c0_123 = arith.constant 0 : index
    %106 = vector.load %arg35[%c0_122, %c0_123] : memref<70x32xf32, #tpu.memory_space<vmem>>, vector<32x16xf32>
    %c1_124 = arith.constant 1 : index
    %c0_125 = arith.constant 0 : index
    %107 = vector.load %arg35[%c1_124, %c0_125] : memref<70x32xf32, #tpu.memory_space<vmem>>, vector<32x16xf32>
    %c2_126 = arith.constant 2 : index
    %c0_127 = arith.constant 0 : index
    %108 = vector.load %arg35[%c2_126, %c0_127] : memref<70x32xf32, #tpu.memory_space<vmem>>, vector<32x16xf32>
    %c3_128 = arith.constant 3 : index
    %c0_129 = arith.constant 0 : index
    %109 = vector.load %arg35[%c3_128, %c0_129] : memref<70x32xf32, #tpu.memory_space<vmem>>, vector<32x16xf32>
    %c4_130 = arith.constant 4 : index
    %c0_131 = arith.constant 0 : index
    %110 = vector.load %arg35[%c4_130, %c0_131] : memref<70x32xf32, #tpu.memory_space<vmem>>, vector<32x16xf32>
    %c5_132 = arith.constant 5 : index
    %c0_133 = arith.constant 0 : index
    %111 = vector.load %arg35[%c5_132, %c0_133] : memref<70x32xf32, #tpu.memory_space<vmem>>, vector<32x16xf32>
    %c6_134 = arith.constant 6 : index
    %c0_135 = arith.constant 0 : index
    %112 = vector.load %arg35[%c6_134, %c0_135] : memref<70x32xf32, #tpu.memory_space<vmem>>, vector<32x16xf32>
    %113 = tpu.concatenate %106, %107, %108, %109, %110, %111, %112 in 1 : vector<32x16xf32>, vector<32x16xf32>, vector<32x16xf32>, vector<32x16xf32>, vector<32x16xf32>, vector<32x16xf32>, vector<32x16xf32> -> vector<32x112xf32>
    %c0_136 = arith.constant 0 : index
    %c0_137 = arith.constant 0 : index
    %114 = vector.load %arg18[%c0_136, %c0_137] : memref<112x16xf32, #tpu.memory_space<vmem>>, vector<112x16xf32>
    %cst_138 = arith.constant dense<0.000000e+00> : vector<32x16xf32>
    %115 = tpu.matmul %113, %114, %cst_138 {dimension_numbers = #tpu.dot_dimension_numbers<[1], [0], [0], [1], [0, 0, 1, 1], [], []>} : vector<32x112xf32>, vector<112x16xf32>, vector<32x16xf32> -> vector<32x16xf32>
    %c0_139 = arith.constant 0 : index
    %c0_140 = arith.constant 0 : index
    %116 = vector.load %arg19[%c0_139, %c0_140] : memref<1x16xf32, #tpu.memory_space<vmem>>, vector<1x16xf32>
    %117 = vector.broadcast %116 : vector<1x16xf32> to vector<32x16xf32>
    %118 = arith.addf %115, %117 : vector<32x16xf32>
    %cst_141 = arith.constant 0.000000e+00 : f32
    %119 = vector.broadcast %cst_141 : f32 to vector<32x16xf32>
    %120 = arith.maximumf %118, %119 : vector<32x16xf32>
    %c0_142 = arith.constant 0 : index
    %c0_143 = arith.constant 0 : index
    %121 = vector.load %arg20[%c0_142, %c0_143] : memref<1x16xf32, #tpu.memory_space<vmem>>, vector<1x16xf32>
    %122 = vector.broadcast %121 : vector<1x16xf32> to vector<32x16xf32>
    %123 = arith.mulf %120, %122 : vector<32x16xf32>
    %c0_144 = arith.constant 0 : index
    %c0_145 = arith.constant 0 : index
    %124 = vector.load %arg21[%c0_144, %c0_145] : memref<1x16xf32, #tpu.memory_space<vmem>>, vector<1x16xf32>
    %125 = vector.broadcast %124 : vector<1x16xf32> to vector<32x16xf32>
    %126 = arith.addf %123, %125 : vector<32x16xf32>
    %c3_146 = arith.constant 3 : index
    %c0_147 = arith.constant 0 : index
    %127 = vector.load %arg35[%c3_146, %c0_147] : memref<70x32xf32, #tpu.memory_space<vmem>>, vector<32x16xf32>
    tpu.vector_store %arg35[%c3_146, %c0_147], %126 {strides = array<i32>} : memref<70x32xf32, #tpu.memory_space<vmem>>, vector<32x16xf32>,
    %c0_148 = arith.constant 0 : index
    %c0_149 = arith.constant 0 : index
    %128 = vector.load %arg35[%c0_148, %c0_149] : memref<70x32xf32, #tpu.memory_space<vmem>>, vector<32x16xf32>
    %c1_150 = arith.constant 1 : index
    %c0_151 = arith.constant 0 : index
    %129 = vector.load %arg35[%c1_150, %c0_151] : memref<70x32xf32, #tpu.memory_space<vmem>>, vector<32x16xf32>
    %c2_152 = arith.constant 2 : index
    %c0_153 = arith.constant 0 : index
    %130 = vector.load %arg35[%c2_152, %c0_153] : memref<70x32xf32, #tpu.memory_space<vmem>>, vector<32x16xf32>
    %c3_154 = arith.constant 3 : index
    %c0_155 = arith.constant 0 : index
    %131 = vector.load %arg35[%c3_154, %c0_155] : memref<70x32xf32, #tpu.memory_space<vmem>>, vector<32x16xf32>
    %c4_156 = arith.constant 4 : index
    %c0_157 = arith.constant 0 : index
    %132 = vector.load %arg35[%c4_156, %c0_157] : memref<70x32xf32, #tpu.memory_space<vmem>>, vector<32x16xf32>
    %c5_158 = arith.constant 5 : index
    %c0_159 = arith.constant 0 : index
    %133 = vector.load %arg35[%c5_158, %c0_159] : memref<70x32xf32, #tpu.memory_space<vmem>>, vector<32x16xf32>
    %c6_160 = arith.constant 6 : index
    %c0_161 = arith.constant 0 : index
    %134 = vector.load %arg35[%c6_160, %c0_161] : memref<70x32xf32, #tpu.memory_space<vmem>>, vector<32x16xf32>
    %135 = tpu.concatenate %128, %129, %130, %131, %132, %133, %134 in 1 : vector<32x16xf32>, vector<32x16xf32>, vector<32x16xf32>, vector<32x16xf32>, vector<32x16xf32>, vector<32x16xf32>, vector<32x16xf32> -> vector<32x112xf32>
    %c0_162 = arith.constant 0 : index
    %c0_163 = arith.constant 0 : index
    %136 = vector.load %arg22[%c0_162, %c0_163] : memref<112x24xf32, #tpu.memory_space<vmem>>, vector<112x24xf32>
    %cst_164 = arith.constant dense<0.000000e+00> : vector<32x24xf32>
    %137 = tpu.matmul %135, %136, %cst_164 {dimension_numbers = #tpu.dot_dimension_numbers<[1], [0], [0], [1], [0, 0, 1, 1], [], []>} : vector<32x112xf32>, vector<112x24xf32>, vector<32x24xf32> -> vector<32x24xf32>
    %c0_165 = arith.constant 0 : index
    %c0_166 = arith.constant 0 : index
    %138 = vector.load %arg23[%c0_165, %c0_166] : memref<1x24xf32, #tpu.memory_space<vmem>>, vector<1x24xf32>
    %139 = vector.broadcast %138 : vector<1x24xf32> to vector<32x24xf32>
    %140 = arith.addf %137, %139 : vector<32x24xf32>
    %cst_167 = arith.constant 0.000000e+00 : f32
    %141 = vector.broadcast %cst_167 : f32 to vector<32x24xf32>
    %142 = arith.maximumf %140, %141 : vector<32x24xf32>
    %c0_168 = arith.constant 0 : index
    %c0_169 = arith.constant 0 : index
    %143 = vector.load %arg24[%c0_168, %c0_169] : memref<1x24xf32, #tpu.memory_space<vmem>>, vector<1x24xf32>
    %144 = vector.broadcast %143 : vector<1x24xf32> to vector<32x24xf32>
    %145 = arith.mulf %142, %144 : vector<32x24xf32>
    %c0_170 = arith.constant 0 : index
    %c0_171 = arith.constant 0 : index
    %146 = vector.load %arg25[%c0_170, %c0_171] : memref<1x24xf32, #tpu.memory_space<vmem>>, vector<1x24xf32>
    %147 = vector.broadcast %146 : vector<1x24xf32> to vector<32x24xf32>
    %148 = arith.addf %145, %147 : vector<32x24xf32>
    %c0_172 = arith.constant 0 : index
    %c0_173 = arith.constant 0 : index
    %149 = vector.load %arg35[%c0_172, %c0_173] : memref<70x32xf32, #tpu.memory_space<vmem>>, vector<32x24xf32>
    tpu.vector_store %arg35[%c0_172, %c0_173], %148 {strides = array<i32>} : memref<70x32xf32, #tpu.memory_space<vmem>>, vector<32x24xf32>,
    %c0_174 = arith.constant 0 : index
    %c0_175 = arith.constant 0 : index
    %150 = tpu.strided_load %arg35[%c0_174, %c0_175] {strides = array<i32: 2, 1>} : memref<70x32xf32, #tpu.memory_space<vmem>>, vector<16x24xf32>
    %c1_176 = arith.constant 1 : index
    %c0_177 = arith.constant 0 : index
    %151 = tpu.strided_load %arg35[%c1_176, %c0_177] {strides = array<i32: 2, 1>} : memref<70x32xf32, #tpu.memory_space<vmem>>, vector<16x24xf32>
    %152 = arith.maximumf %150, %151 : vector<16x24xf32>
    %cst_178 = arith.constant 0.000000e+00 : f32
    %153 = vector.broadcast %cst_178 : f32 to vector<3x32xf32>
    %c0_179 = arith.constant 0 : index
    %c0_180 = arith.constant 0 : index
    %154 = vector.load %arg35[%c0_179, %c0_180] : memref<70x32xf32, #tpu.memory_space<vmem>>, vector<3x32xf32>
    tpu.vector_store %arg35[%c0_179, %c0_180], %153 {strides = array<i32>} : memref<70x32xf32, #tpu.memory_space<vmem>>, vector<3x32xf32>,
    %cst_181 = arith.constant 0.000000e+00 : f32
    %155 = vector.broadcast %cst_181 : f32 to vector<3x32xf32>
    %c19 = arith.constant 19 : index
    %c0_182 = arith.constant 0 : index
    %156 = vector.load %arg35[%c19, %c0_182] : memref<70x32xf32, #tpu.memory_space<vmem>>, vector<3x32xf32>
    tpu.vector_store %arg35[%c19, %c0_182], %155 {strides = array<i32>} : memref<70x32xf32, #tpu.memory_space<vmem>>, vector<3x32xf32>,
    %c3_183 = arith.constant 3 : index
    %c0_184 = arith.constant 0 : index
    %157 = vector.load %arg35[%c3_183, %c0_184] : memref<70x32xf32, #tpu.memory_space<vmem>>, vector<16x24xf32>
    tpu.vector_store %arg35[%c3_183, %c0_184], %152 {strides = array<i32>} : memref<70x32xf32, #tpu.memory_space<vmem>>, vector<16x24xf32>,
    %c0_185 = arith.constant 0 : index
    %c0_186 = arith.constant 0 : index
    %158 = vector.load %arg35[%c0_185, %c0_186] : memref<70x32xf32, #tpu.memory_space<vmem>>, vector<16x24xf32>
    %c1_187 = arith.constant 1 : index
    %c0_188 = arith.constant 0 : index
    %159 = vector.load %arg35[%c1_187, %c0_188] : memref<70x32xf32, #tpu.memory_space<vmem>>, vector<16x24xf32>
    %c2_189 = arith.constant 2 : index
    %c0_190 = arith.constant 0 : index
    %160 = vector.load %arg35[%c2_189, %c0_190] : memref<70x32xf32, #tpu.memory_space<vmem>>, vector<16x24xf32>
    %c3_191 = arith.constant 3 : index
    %c0_192 = arith.constant 0 : index
    %161 = vector.load %arg35[%c3_191, %c0_192] : memref<70x32xf32, #tpu.memory_space<vmem>>, vector<16x24xf32>
    %c4_193 = arith.constant 4 : index
    %c0_194 = arith.constant 0 : index
    %162 = vector.load %arg35[%c4_193, %c0_194] : memref<70x32xf32, #tpu.memory_space<vmem>>, vector<16x24xf32>
    %c5_195 = arith.constant 5 : index
    %c0_196 = arith.constant 0 : index
    %163 = vector.load %arg35[%c5_195, %c0_196] : memref<70x32xf32, #tpu.memory_space<vmem>>, vector<16x24xf32>
    %c6_197 = arith.constant 6 : index
    %c0_198 = arith.constant 0 : index
    %164 = vector.load %arg35[%c6_197, %c0_198] : memref<70x32xf32, #tpu.memory_space<vmem>>, vector<16x24xf32>
    %165 = tpu.concatenate %158, %159, %160, %161, %162, %163, %164 in 1 : vector<16x24xf32>, vector<16x24xf32>, vector<16x24xf32>, vector<16x24xf32>, vector<16x24xf32>, vector<16x24xf32>, vector<16x24xf32> -> vector<16x168xf32>
    %c0_199 = arith.constant 0 : index
    %c0_200 = arith.constant 0 : index
    %166 = vector.load %arg26[%c0_199, %c0_200] : memref<168x24xf32, #tpu.memory_space<vmem>>, vector<168x24xf32>
    %cst_201 = arith.constant dense<0.000000e+00> : vector<16x24xf32>
    %167 = tpu.matmul %165, %166, %cst_201 {dimension_numbers = #tpu.dot_dimension_numbers<[1], [0], [0], [1], [0, 0, 1, 1], [], []>} : vector<16x168xf32>, vector<168x24xf32>, vector<16x24xf32> -> vector<16x24xf32>
    %c0_202 = arith.constant 0 : index
    %c0_203 = arith.constant 0 : index
    %168 = vector.load %arg27[%c0_202, %c0_203] : memref<1x24xf32, #tpu.memory_space<vmem>>, vector<1x24xf32>
    %169 = vector.broadcast %168 : vector<1x24xf32> to vector<16x24xf32>
    %170 = arith.addf %167, %169 : vector<16x24xf32>
    %cst_204 = arith.constant 0.000000e+00 : f32
    %171 = vector.broadcast %cst_204 : f32 to vector<16x24xf32>
    %172 = arith.maximumf %170, %171 : vector<16x24xf32>
    %c0_205 = arith.constant 0 : index
    %c0_206 = arith.constant 0 : index
    %173 = vector.load %arg28[%c0_205, %c0_206] : memref<1x24xf32, #tpu.memory_space<vmem>>, vector<1x24xf32>
    %174 = vector.broadcast %173 : vector<1x24xf32> to vector<16x24xf32>
    %175 = arith.mulf %172, %174 : vector<16x24xf32>
    %c0_207 = arith.constant 0 : index
    %c0_208 = arith.constant 0 : index
    %176 = vector.load %arg29[%c0_207, %c0_208] : memref<1x24xf32, #tpu.memory_space<vmem>>, vector<1x24xf32>
    %177 = vector.broadcast %176 : vector<1x24xf32> to vector<16x24xf32>
    %178 = arith.addf %175, %177 : vector<16x24xf32>
    %c3_209 = arith.constant 3 : index
    %c0_210 = arith.constant 0 : index
    %179 = vector.load %arg35[%c3_209, %c0_210] : memref<70x32xf32, #tpu.memory_space<vmem>>, vector<16x24xf32>
    tpu.vector_store %arg35[%c3_209, %c0_210], %178 {strides = array<i32>} : memref<70x32xf32, #tpu.memory_space<vmem>>, vector<16x24xf32>,
    %c0_211 = arith.constant 0 : index
    %c0_212 = arith.constant 0 : index
    %180 = vector.load %arg35[%c0_211, %c0_212] : memref<70x32xf32, #tpu.memory_space<vmem>>, vector<16x24xf32>
    %c1_213 = arith.constant 1 : index
    %c0_214 = arith.constant 0 : index
    %181 = vector.load %arg35[%c1_213, %c0_214] : memref<70x32xf32, #tpu.memory_space<vmem>>, vector<16x24xf32>
    %c2_215 = arith.constant 2 : index
    %c0_216 = arith.constant 0 : index
    %182 = vector.load %arg35[%c2_215, %c0_216] : memref<70x32xf32, #tpu.memory_space<vmem>>, vector<16x24xf32>
    %c3_217 = arith.constant 3 : index
    %c0_218 = arith.constant 0 : index
    %183 = vector.load %arg35[%c3_217, %c0_218] : memref<70x32xf32, #tpu.memory_space<vmem>>, vector<16x24xf32>
    %c4_219 = arith.constant 4 : index
    %c0_220 = arith.constant 0 : index
    %184 = vector.load %arg35[%c4_219, %c0_220] : memref<70x32xf32, #tpu.memory_space<vmem>>, vector<16x24xf32>
    %c5_221 = arith.constant 5 : index
    %c0_222 = arith.constant 0 : index
    %185 = vector.load %arg35[%c5_221, %c0_222] : memref<70x32xf32, #tpu.memory_space<vmem>>, vector<16x24xf32>
    %c6_223 = arith.constant 6 : index
    %c0_224 = arith.constant 0 : index
    %186 = vector.load %arg35[%c6_223, %c0_224] : memref<70x32xf32, #tpu.memory_space<vmem>>, vector<16x24xf32>
    %187 = tpu.concatenate %180, %181, %182, %183, %184, %185, %186 in 1 : vector<16x24xf32>, vector<16x24xf32>, vector<16x24xf32>, vector<16x24xf32>, vector<16x24xf32>, vector<16x24xf32>, vector<16x24xf32> -> vector<16x168xf32>
    %c0_225 = arith.constant 0 : index
    %c0_226 = arith.constant 0 : index
    %188 = vector.load %arg30[%c0_225, %c0_226] : memref<168x32xf32, #tpu.memory_space<vmem>>, vector<168x32xf32>
    %cst_227 = arith.constant dense<0.000000e+00> : vector<16x32xf32>
    %189 = tpu.matmul %187, %188, %cst_227 {dimension_numbers = #tpu.dot_dimension_numbers<[1], [0], [0], [1], [0, 0, 1, 1], [], []>} : vector<16x168xf32>, vector<168x32xf32>, vector<16x32xf32> -> vector<16x32xf32>
    %c0_228 = arith.constant 0 : index
    %c0_229 = arith.constant 0 : index
    %190 = vector.load %arg31[%c0_228, %c0_229] : memref<1x32xf32, #tpu.memory_space<vmem>>, vector<1x32xf32>
    %191 = vector.broadcast %190 : vector<1x32xf32> to vector<16x32xf32>
    %192 = arith.addf %189, %191 : vector<16x32xf32>
    %cst_230 = arith.constant 0.000000e+00 : f32
    %193 = vector.broadcast %cst_230 : f32 to vector<16x32xf32>
    %194 = arith.maximumf %192, %193 : vector<16x32xf32>
    %c0_231 = arith.constant 0 : index
    %c0_232 = arith.constant 0 : index
    %195 = vector.load %arg32[%c0_231, %c0_232] : memref<1x32xf32, #tpu.memory_space<vmem>>, vector<1x32xf32>
    %196 = vector.broadcast %195 : vector<1x32xf32> to vector<16x32xf32>
    %197 = arith.mulf %194, %196 : vector<16x32xf32>
    %c0_233 = arith.constant 0 : index
    %c0_234 = arith.constant 0 : index
    %198 = vector.load %arg33[%c0_233, %c0_234] : memref<1x32xf32, #tpu.memory_space<vmem>>, vector<1x32xf32>
    %199 = vector.broadcast %198 : vector<1x32xf32> to vector<16x32xf32>
    %200 = arith.addf %197, %199 : vector<16x32xf32>
    %c0_235 = arith.constant 0 : index
    %c0_236 = arith.constant 0 : index
    %201 = vector.load %arg35[%c0_235, %c0_236] : memref<70x32xf32, #tpu.memory_space<vmem>>, vector<16x32xf32>
    tpu.vector_store %arg35[%c0_235, %c0_236], %200 {strides = array<i32>} : memref<70x32xf32, #tpu.memory_space<vmem>>, vector<16x32xf32>,
    %c0_237 = arith.constant 0 : index
    %c0_238 = arith.constant 0 : index
    %202 = tpu.strided_load %arg35[%c0_237, %c0_238] {strides = array<i32: 2, 1>} : memref<70x32xf32, #tpu.memory_space<vmem>>, vector<8x32xf32>
    %c1_239 = arith.constant 1 : index
    %c0_240 = arith.constant 0 : index
    %203 = tpu.strided_load %arg35[%c1_239, %c0_240] {strides = array<i32: 2, 1>} : memref<70x32xf32, #tpu.memory_space<vmem>>, vector<8x32xf32>
    %204 = arith.maximumf %202, %203 : vector<8x32xf32>
    %c0_241 = arith.constant 0 : index
    %c0_242 = arith.constant 0 : index
    %205 = vector.load %arg34[%c0_241, %c0_242] : memref<8x32xf32, #tpu.memory_space<vmem>>, vector<8x32xf32>
    tpu.vector_store %arg34[%c0_241, %c0_242], %204 {strides = array<i32>} : memref<8x32xf32, #tpu.memory_space<vmem>>, vector<8x32xf32>,
    return
  }
  func.func @transform_0(%arg0: i32) -> (i32, i32) {
    %c0_i32 = arith.constant 0 : i32
    %c0_i32_0 = arith.constant 0 : i32
    return %arg0, %c0_i32 : i32, i32
  }
  func.func @transform_1(%arg0: i32) -> (i32, i32) {
    %c0_i32 = arith.constant 0 : i32
    %c0_i32_0 = arith.constant 0 : i32
    %c0_i32_1 = arith.constant 0 : i32
    return %c0_i32, %c0_i32_0 : i32, i32
  }
  func.func @transform_2(%arg0: i32) -> (i32, i32) {
    %c0_i32 = arith.constant 0 : i32
    %c0_i32_0 = arith.constant 0 : i32
    %c0_i32_1 = arith.constant 0 : i32
    return %c0_i32, %c0_i32_0 : i32, i32
  }
  func.func @transform_3(%arg0: i32) -> (i32, i32) {
    %c0_i32 = arith.constant 0 : i32
    %c0_i32_0 = arith.constant 0 : i32
    %c0_i32_1 = arith.constant 0 : i32
    return %c0_i32, %c0_i32_0 : i32, i32
  }
  func.func @transform_4(%arg0: i32) -> (i32, i32) {
    %c0_i32 = arith.constant 0 : i32
    %c0_i32_0 = arith.constant 0 : i32
    %c0_i32_1 = arith.constant 0 : i32
    return %c0_i32, %c0_i32_0 : i32, i32
  }
  func.func @transform_5(%arg0: i32) -> (i32, i32) {
    %c0_i32 = arith.constant 0 : i32
    %c0_i32_0 = arith.constant 0 : i32
    %c0_i32_1 = arith.constant 0 : i32
    return %c0_i32, %c0_i32_0 : i32, i32
  }
  func.func @transform_6(%arg0: i32) -> (i32, i32) {
    %c0_i32 = arith.constant 0 : i32
    %c0_i32_0 = arith.constant 0 : i32
    %c0_i32_1 = arith.constant 0 : i32
    return %c0_i32, %c0_i32_0 : i32, i32
  }
  func.func @transform_7(%arg0: i32) -> (i32, i32) {
    %c0_i32 = arith.constant 0 : i32
    %c0_i32_0 = arith.constant 0 : i32
    %c0_i32_1 = arith.constant 0 : i32
    return %c0_i32, %c0_i32_0 : i32, i32
  }
  func.func @transform_8(%arg0: i32) -> (i32, i32) {
    %c0_i32 = arith.constant 0 : i32
    %c0_i32_0 = arith.constant 0 : i32
    %c0_i32_1 = arith.constant 0 : i32
    return %c0_i32, %c0_i32_0 : i32, i32
  }
  func.func @transform_9(%arg0: i32) -> (i32, i32) {
    %c0_i32 = arith.constant 0 : i32
    %c0_i32_0 = arith.constant 0 : i32
    %c0_i32_1 = arith.constant 0 : i32
    return %c0_i32, %c0_i32_0 : i32, i32
  }
  func.func @transform_10(%arg0: i32) -> (i32, i32) {
    %c0_i32 = arith.constant 0 : i32
    %c0_i32_0 = arith.constant 0 : i32
    %c0_i32_1 = arith.constant 0 : i32
    return %c0_i32, %c0_i32_0 : i32, i32
  }
  func.func @transform_11(%arg0: i32) -> (i32, i32) {
    %c0_i32 = arith.constant 0 : i32
    %c0_i32_0 = arith.constant 0 : i32
    %c0_i32_1 = arith.constant 0 : i32
    return %c0_i32, %c0_i32_0 : i32, i32
  }
  func.func @transform_12(%arg0: i32) -> (i32, i32) {
    %c0_i32 = arith.constant 0 : i32
    %c0_i32_0 = arith.constant 0 : i32
    %c0_i32_1 = arith.constant 0 : i32
    return %c0_i32, %c0_i32_0 : i32, i32
  }
  func.func @transform_13(%arg0: i32) -> (i32, i32) {
    %c0_i32 = arith.constant 0 : i32
    %c0_i32_0 = arith.constant 0 : i32
    %c0_i32_1 = arith.constant 0 : i32
    return %c0_i32, %c0_i32_0 : i32, i32
  }
  func.func @transform_14(%arg0: i32) -> (i32, i32) {
    %c0_i32 = arith.constant 0 : i32
    %c0_i32_0 = arith.constant 0 : i32
    %c0_i32_1 = arith.constant 0 : i32
    return %c0_i32, %c0_i32_0 : i32, i32
  }
  func.func @transform_15(%arg0: i32) -> (i32, i32) {
    %c0_i32 = arith.constant 0 : i32
    %c0_i32_0 = arith.constant 0 : i32
    %c0_i32_1 = arith.constant 0 : i32
    return %c0_i32, %c0_i32_0 : i32, i32
  }
  func.func @transform_16(%arg0: i32) -> (i32, i32) {
    %c0_i32 = arith.constant 0 : i32
    %c0_i32_0 = arith.constant 0 : i32
    %c0_i32_1 = arith.constant 0 : i32
    return %c0_i32, %c0_i32_0 : i32, i32
  }
  func.func @transform_17(%arg0: i32) -> (i32, i32) {
    %c0_i32 = arith.constant 0 : i32
    %c0_i32_0 = arith.constant 0 : i32
    %c0_i32_1 = arith.constant 0 : i32
    return %c0_i32, %c0_i32_0 : i32, i32
  }
  func.func @transform_18(%arg0: i32) -> (i32, i32) {
    %c0_i32 = arith.constant 0 : i32
    %c0_i32_0 = arith.constant 0 : i32
    %c0_i32_1 = arith.constant 0 : i32
    return %c0_i32, %c0_i32_0 : i32, i32
  }
  func.func @transform_19(%arg0: i32) -> (i32, i32) {
    %c0_i32 = arith.constant 0 : i32
    %c0_i32_0 = arith.constant 0 : i32
    %c0_i32_1 = arith.constant 0 : i32
    return %c0_i32, %c0_i32_0 : i32, i32
  }
  func.func @transform_20(%arg0: i32) -> (i32, i32) {
    %c0_i32 = arith.constant 0 : i32
    %c0_i32_0 = arith.constant 0 : i32
    %c0_i32_1 = arith.constant 0 : i32
    return %c0_i32, %c0_i32_0 : i32, i32
  }
  func.func @transform_21(%arg0: i32) -> (i32, i32) {
    %c0_i32 = arith.constant 0 : i32
    %c0_i32_0 = arith.constant 0 : i32
    %c0_i32_1 = arith.constant 0 : i32
    return %c0_i32, %c0_i32_0 : i32, i32
  }
  func.func @transform_22(%arg0: i32) -> (i32, i32) {
    %c0_i32 = arith.constant 0 : i32
    %c0_i32_0 = arith.constant 0 : i32
    %c0_i32_1 = arith.constant 0 : i32
    return %c0_i32, %c0_i32_0 : i32, i32
  }
  func.func @transform_23(%arg0: i32) -> (i32, i32) {
    %c0_i32 = arith.constant 0 : i32
    %c0_i32_0 = arith.constant 0 : i32
    %c0_i32_1 = arith.constant 0 : i32
    return %c0_i32, %c0_i32_0 : i32, i32
  }
  func.func @transform_24(%arg0: i32) -> (i32, i32) {
    %c0_i32 = arith.constant 0 : i32
    %c0_i32_0 = arith.constant 0 : i32
    %c0_i32_1 = arith.constant 0 : i32
    return %c0_i32, %c0_i32_0 : i32, i32
  }
  func.func @transform_25(%arg0: i32) -> (i32, i32) {
    %c0_i32 = arith.constant 0 : i32
    %c0_i32_0 = arith.constant 0 : i32
    %c0_i32_1 = arith.constant 0 : i32
    return %c0_i32, %c0_i32_0 : i32, i32
  }
  func.func @transform_26(%arg0: i32) -> (i32, i32) {
    %c0_i32 = arith.constant 0 : i32
    %c0_i32_0 = arith.constant 0 : i32
    %c0_i32_1 = arith.constant 0 : i32
    return %c0_i32, %c0_i32_0 : i32, i32
  }
  func.func @transform_27(%arg0: i32) -> (i32, i32) {
    %c0_i32 = arith.constant 0 : i32
    %c0_i32_0 = arith.constant 0 : i32
    %c0_i32_1 = arith.constant 0 : i32
    return %c0_i32, %c0_i32_0 : i32, i32
  }
  func.func @transform_28(%arg0: i32) -> (i32, i32) {
    %c0_i32 = arith.constant 0 : i32
    %c0_i32_0 = arith.constant 0 : i32
    %c0_i32_1 = arith.constant 0 : i32
    return %c0_i32, %c0_i32_0 : i32, i32
  }
  func.func @transform_29(%arg0: i32) -> (i32, i32) {
    %c0_i32 = arith.constant 0 : i32
    %c0_i32_0 = arith.constant 0 : i32
    %c0_i32_1 = arith.constant 0 : i32
    return %c0_i32, %c0_i32_0 : i32, i32
  }
  func.func @transform_30(%arg0: i32) -> (i32, i32) {
    %c0_i32 = arith.constant 0 : i32
    %c0_i32_0 = arith.constant 0 : i32
    %c0_i32_1 = arith.constant 0 : i32
    return %c0_i32, %c0_i32_0 : i32, i32
  }
  func.func @transform_31(%arg0: i32) -> (i32, i32) {
    %c0_i32 = arith.constant 0 : i32
    %c0_i32_0 = arith.constant 0 : i32
    %c0_i32_1 = arith.constant 0 : i32
    return %c0_i32, %c0_i32_0 : i32, i32
  }
  func.func @transform_32(%arg0: i32) -> (i32, i32) {
    %c0_i32 = arith.constant 0 : i32
    %c0_i32_0 = arith.constant 0 : i32
    %c0_i32_1 = arith.constant 0 : i32
    return %c0_i32, %c0_i32_0 : i32, i32
  }
  func.func @transform_33(%arg0: i32) -> (i32, i32) {
    %c0_i32 = arith.constant 0 : i32
    %c0_i32_0 = arith.constant 0 : i32
    return %arg0, %c0_i32 : i32, i32
  }
}

</mosaic_0001>

<llo_original>
// kernel: tpu_custom_call.1
$region0: #{tpu_custom_call.1}
  #allocation0 [shape = 'u32[]', space=smem, size = 0x4, offset = 0x4, fixed_abs, tag = 'smem constant byte address 0x4 - core index']
  #allocation1 [shape = 'u32[144,128]{1,0:T(1,128)}', space=vmem, size = 0x12000, scoped, tag = 'internal scratch']
  #allocation2 [shape = 'f32[70,32]{1,0:T(8,128)}', space=vmem, size = 0x9000, scoped, tag = 'scratch operand']
  #allocation3 [shape = 'f32[1,1]{1,0:T(1,128)S(1)}', space=vmem, size = 0x200, scoped, tag = 'scoped memory for tpu_custom_call.1']
  #allocation4 [shape = 'f32[1,1]{1,0:T(1,128)S(1)}', space=vmem, size = 0x200, scoped, tag = 'scoped memory for tpu_custom_call.1']
  #allocation5 [shape = 'f32[1,1]{1,0:T(1,128)S(1)}', space=vmem, size = 0x200, scoped, tag = 'scoped memory for tpu_custom_call.1']
  %s0 = inlined_call_operand.smem [shape: u32[34], index: -1, kind: input, shape index: {}]
  %s1 = sld [smem:[%s0]]
  %s2 = scalar_lea.smem %s0, 1
  %s3 = sld [smem:[%s2]]
  %s4 = scalar_lea.smem %s0, 2
  %s5 = sld [smem:[%s4]]
  %s6 = scalar_lea.smem %s0, 3
  %s7 = sld [smem:[%s6]]
  %s8 = scalar_lea.smem %s0, 4
  %s9 = sld [smem:[%s8]]
  %s10 = scalar_lea.smem %s0, 5
  %s11 = sld [smem:[%s10]]
  %s12 = scalar_lea.smem %s0, 6
  %s13 = sld [smem:[%s12]]
  %s14 = scalar_lea.smem %s0, 7
  %s15 = sld [smem:[%s14]]
  %s16 = scalar_lea.smem %s0, 8
  %s17 = sld [smem:[%s16]]
  %s18 = scalar_lea.smem %s0, 9
  %s19 = sld [smem:[%s18]]
  %s20 = scalar_lea.smem %s0, 10
  %s21 = sld [smem:[%s20]]
  %s22 = scalar_lea.smem %s0, 11
  %s23 = sld [smem:[%s22]]
  %s24 = scalar_lea.smem %s0, 12
  %s25 = sld [smem:[%s24]]
  %s26 = scalar_lea.smem %s0, 13
  %s27 = sld [smem:[%s26]]
  %s28 = scalar_lea.smem %s0, 14
  %s29 = sld [smem:[%s28]]
  %s30 = scalar_lea.smem %s0, 15
  %s31 = sld [smem:[%s30]]
  %s32 = scalar_lea.smem %s0, 16
  %s33 = sld [smem:[%s32]]
  %s34 = scalar_lea.smem %s0, 17
  %s35 = sld [smem:[%s34]]
  %s36 = scalar_lea.smem %s0, 18
  %s37 = sld [smem:[%s36]]
  %s38 = scalar_lea.smem %s0, 19
  %s39 = sld [smem:[%s38]]
  %s40 = scalar_lea.smem %s0, 20
  %s41 = sld [smem:[%s40]]
  %s42 = scalar_lea.smem %s0, 21
  %s43 = sld [smem:[%s42]]
  %s44 = scalar_lea.smem %s0, 22
  %s45 = sld [smem:[%s44]]
  %s46 = scalar_lea.smem %s0, 23
  %s47 = sld [smem:[%s46]]
  %s48 = scalar_lea.smem %s0, 24
  %s49 = sld [smem:[%s48]]
  %s50 = scalar_lea.smem %s0, 25
  %s51 = sld [smem:[%s50]]
  %s52 = scalar_lea.smem %s0, 26
  %s53 = sld [smem:[%s52]]
  %s54 = scalar_lea.smem %s0, 27
  %s55 = sld [smem:[%s54]]
  %s56 = scalar_lea.smem %s0, 28
  %s57 = sld [smem:[%s56]]
  %s58 = scalar_lea.smem %s0, 29
  %s59 = sld [smem:[%s58]]
  %s60 = scalar_lea.smem %s0, 30
  %s61 = sld [smem:[%s60]]
  %s62 = scalar_lea.smem %s0, 31
  %s63 = sld [smem:[%s62]]
  %s64 = scalar_lea.smem %s0, 32
  %s65 = sld [smem:[%s64]]
  %s66 = scalar_lea.smem %s0, 33
  %s67 = sld [smem:[%s66]]
  %s68 = sld [smem:[#allocation0]]
  $region165: #{tpu_custom_call.1} parent=0
    _
  %s70 = ssub.s32 1, %s68
  %s71 = scalar_select 0, %s70, %s68
  %v72 = vstv %s5
  %73 = vst [vmem:[#allocation3] sm:$0x1] %v72
  %v74 = vstv %s7
  %75 = vst [vmem:[#allocation4] sm:$0x1] %v74
  %v76 = vstv %s9
  %77 = vst [vmem:[#allocation5] sm:$0x1] %v76
  $region1: #{tpu_custom_call.1} parent=0
    #allocation6 [shape = 'u8[8192]{0}', space=vmem, size = 0x2000, scoped, tag = 'output window, operand 0']
    #allocation7 [shape = 's32[2]{0}', space=sflag, size = 0x8, scoped, tag = 'scoped memory for tpu_custom_call.1']
    %78 = vsyncpa [#allocation7], 0
    %s79 = scalar_lea.sflag [#allocation7], 1
    %80 = vsyncpa %s79, 0
    loop: start=0, step=1, limit=4
    $region2: #{tpu_custom_call.1} parent=1 // loop_pre_header
      _
    $region3: #{tpu_custom_call.1} parent=1 // loop_header
      %s82 = sphi 0, %s86
      %p83 = scmp.ge.s32.totalorder %s82, 4
      %s92 = sphi 0, %s94
      %s95 = sphi 0, %s92
      %s96 = sphi 0, %s95
      %s112 = sphi 0, %s96
      %s116 = sphi 0, %s116
      %s118 = sphi 0, %s116
      %s119 = sphi 0, %s118
      %s133 = sphi 0, %s119
      %s137 = sphi 0, %s137
      %s139 = sphi 0, %s137
      %s140 = sphi 0, %s139
      %s154 = sphi 0, %s140
      %s158 = sphi 0, %s158
      %s160 = sphi 0, %s158
      %s161 = sphi 0, %s160
      %s175 = sphi 0, %s161
      %s179 = sphi 0, %s179
      %s181 = sphi 0, %s179
      %s182 = sphi 0, %s181
      %s196 = sphi 0, %s182
      %s200 = sphi 0, %s200
      %s202 = sphi 0, %s200
      %s203 = sphi 0, %s202
      %s217 = sphi 0, %s203
      %s221 = sphi 0, %s221
      %s223 = sphi 0, %s221
      %s224 = sphi 0, %s223
      %s238 = sphi 0, %s224
      %s242 = sphi 0, %s242
      %s244 = sphi 0, %s242
      %s245 = sphi 0, %s244
      %s259 = sphi 0, %s245
      %s263 = sphi 0, %s263
      %s265 = sphi 0, %s263
      %s266 = sphi 0, %s265
      %s280 = sphi 0, %s266
      %s284 = sphi 0, %s284
      %s286 = sphi 0, %s284
      %s287 = sphi 0, %s286
      %s301 = sphi 0, %s287
      %s305 = sphi 0, %s305
      %s307 = sphi 0, %s305
      %s308 = sphi 0, %s307
      %s322 = sphi 0, %s308
      %s326 = sphi 0, %s326
      %s328 = sphi 0, %s326
      %s329 = sphi 0, %s328
      %s343 = sphi 0, %s329
      %s347 = sphi 0, %s347
      %s349 = sphi 0, %s347
      %s350 = sphi 0, %s349
      %s364 = sphi 0, %s350
      %s368 = sphi 0, %s368
      %s370 = sphi 0, %s368
      %s371 = sphi 0, %s370
      %s385 = sphi 0, %s371
      %s389 = sphi 0, %s389
      %s391 = sphi 0, %s389
      %s392 = sphi 0, %s391
      %s406 = sphi 0, %s392
      %s410 = sphi 0, %s410
      %s412 = sphi 0, %s410
      %s413 = sphi 0, %s412
      %s427 = sphi 0, %s413
      %s431 = sphi 0, %s431
      %s433 = sphi 0, %s431
      %s434 = sphi 0, %s433
      %s448 = sphi 0, %s434
      %s452 = sphi 0, %s452
      %s454 = sphi 0, %s452
      %s455 = sphi 0, %s454
      %s469 = sphi 0, %s455
      %s473 = sphi 0, %s473
      %s475 = sphi 0, %s473
      %s476 = sphi 0, %s475
      %s490 = sphi 0, %s476
      %s494 = sphi 0, %s494
      %s496 = sphi 0, %s494
      %s497 = sphi 0, %s496
      %s511 = sphi 0, %s497
      %s515 = sphi 0, %s515
      %s517 = sphi 0, %s515
      %s518 = sphi 0, %s517
      %s532 = sphi 0, %s518
      %s536 = sphi 0, %s536
      %s538 = sphi 0, %s536
      %s539 = sphi 0, %s538
      %s553 = sphi 0, %s539
      %s557 = sphi 0, %s557
      %s559 = sphi 0, %s557
      %s560 = sphi 0, %s559
      %s574 = sphi 0, %s560
      %s578 = sphi 0, %s578
      %s580 = sphi 0, %s578
      %s581 = sphi 0, %s580
      %s595 = sphi 0, %s581
      %s599 = sphi 0, %s599
      %s601 = sphi 0, %s599
      %s602 = sphi 0, %s601
      %s616 = sphi 0, %s602
      %s620 = sphi 0, %s620
      %s622 = sphi 0, %s620
      %s623 = sphi 0, %s622
      %s637 = sphi 0, %s623
      %s641 = sphi 0, %s641
      %s643 = sphi 0, %s641
      %s644 = sphi 0, %s643
      %s658 = sphi 0, %s644
      %s662 = sphi 0, %s662
      %s664 = sphi 0, %s662
      %s665 = sphi 0, %s664
      %s679 = sphi 0, %s665
      %s683 = sphi 0, %s683
      %s685 = sphi 0, %s683
      %s686 = sphi 0, %s685
      %s700 = sphi 0, %s686
      %s704 = sphi 0, %s704
      %s706 = sphi 0, %s704
      %s707 = sphi 0, %s706
      %s721 = sphi 0, %s707
      %s725 = sphi 0, %s725
      %s727 = sphi 0, %s725
      %s728 = sphi 0, %s727
      %s742 = sphi 0, %s728
      %s746 = sphi 0, %s746
      %s748 = sphi 0, %s746
      %s749 = sphi 0, %s748
      %s763 = sphi 0, %s749
      %s767 = sphi 0, %s767
      %s769 = sphi 0, %s767
      %s770 = sphi 0, %s769
      %s784 = sphi 0, %s770
      %s790 = sphi 0, %s792
      %s793 = sphi 0, %s790
      %s794 = sphi 0, %s793
      %s810 = sphi 0, %s794
    $region4: #{tpu_custom_call.1} parent=1 // loop_header_branch
      %85 = sbr.rel (%p83) target = $region8
    $region5: #{tpu_custom_call.1} parent=1 // loop_body
      %s87 = ssub.s32 %s82, 1
      %s88 = ssub.s32 %s82, 2
      %s89 = sadd.s32 %s82, 1
      %s90 = ssub.s32 %s82, %s89
      %p91 = scmp.eq.s32.totalorder %s90, 0
      %s93 = sadd.s32 %s92, 1
      %s94 = scalar_select %p91, %s92, %s93
      %p97 = pneg %p91
      %p98 = scmp.eq.s32.totalorder %s82, 1
      %p99 = por %p97, %p98
      %p100 = scmp.ne.s32.totalorder %s92, %s95
      %p101 = scmp.eq.s32.totalorder %s82, 0
      %p102 = por %p100, %p101
      %p103 = scmp.ne.s32.totalorder %s92, %s95
      %p104 = scmp.eq.s32.totalorder %s87, 1
      %p105 = por %p103, %p104
      %p106 = scmp.ne.s32.totalorder %s95, %s96
      %p107 = scmp.eq.s32.totalorder %s87, 0
      %p108 = por %p106, %p107
      %p109 = scmp.ne.s32.totalorder %s95, %s96
      %p110 = scmp.eq.s32.totalorder %s88, 1
      %p111 = por %p109, %p110
      %p113 = scmp.ne.s32.totalorder %s96, %s112
      %p114 = scmp.eq.s32.totalorder %s88, 0
      %p115 = por %p113, %p114
      %s117 = sadd.s32 %s116, 1
      %p120 = scmp.eq.s32.totalorder %s82, 1
      %p121 = scmp.ne.s32.totalorder %s116, %s118
      %p122 = scmp.eq.s32.totalorder %s82, 0
      %p123 = por %p121, %p122
      %p124 = scmp.ne.s32.totalorder %s116, %s118
      %p125 = scmp.eq.s32.totalorder %s87, 1
      %p126 = por %p124, %p125
      %p127 = scmp.ne.s32.totalorder %s118, %s119
      %p128 = scmp.eq.s32.totalorder %s87, 0
      %p129 = por %p127, %p128
      %p130 = scmp.ne.s32.totalorder %s118, %s119
      %p131 = scmp.eq.s32.totalorder %s88, 1
      %p132 = por %p130, %p131
      %p134 = scmp.ne.s32.totalorder %s119, %s133
      %p135 = scmp.eq.s32.totalorder %s88, 0
      %p136 = por %p134, %p135
      %s138 = sadd.s32 %s137, 1
      %p141 = scmp.eq.s32.totalorder %s82, 1
      %p142 = scmp.ne.s32.totalorder %s137, %s139
      %p143 = scmp.eq.s32.totalorder %s82, 0
      %p144 = por %p142, %p143
      %p145 = scmp.ne.s32.totalorder %s137, %s139
      %p146 = scmp.eq.s32.totalorder %s87, 1
      %p147 = por %p145, %p146
      %p148 = scmp.ne.s32.totalorder %s139, %s140
      %p149 = scmp.eq.s32.totalorder %s87, 0
      %p150 = por %p148, %p149
      %p151 = scmp.ne.s32.totalorder %s139, %s140
      %p152 = scmp.eq.s32.totalorder %s88, 1
      %p153 = por %p151, %p152
      %p155 = scmp.ne.s32.totalorder %s140, %s154
      %p156 = scmp.eq.s32.totalorder %s88, 0
      %p157 = por %p155, %p156
      %s159 = sadd.s32 %s158, 1
      %p162 = scmp.eq.s32.totalorder %s82, 1
      %p163 = scmp.ne.s32.totalorder %s158, %s160
      %p164 = scmp.eq.s32.totalorder %s82, 0
      %p165 = por %p163, %p164
      %p166 = scmp.ne.s32.totalorder %s158, %s160
      %p167 = scmp.eq.s32.totalorder %s87, 1
      %p168 = por %p166, %p167
      %p169 = scmp.ne.s32.totalorder %s160, %s161
      %p170 = scmp.eq.s32.totalorder %s87, 0
      %p171 = por %p169, %p170
      %p172 = scmp.ne.s32.totalorder %s160, %s161
      %p173 = scmp.eq.s32.totalorder %s88, 1
      %p174 = por %p172, %p173
      %p176 = scmp.ne.s32.totalorder %s161, %s175
      %p177 = scmp.eq.s32.totalorder %s88, 0
      %p178 = por %p176, %p177
      %s180 = sadd.s32 %s179, 1
      %p183 = scmp.eq.s32.totalorder %s82, 1
      %p184 = scmp.ne.s32.totalorder %s179, %s181
      %p185 = scmp.eq.s32.totalorder %s82, 0
      %p186 = por %p184, %p185
      %p187 = scmp.ne.s32.totalorder %s179, %s181
      %p188 = scmp.eq.s32.totalorder %s87, 1
      %p189 = por %p187, %p188
      %p190 = scmp.ne.s32.totalorder %s181, %s182
      %p191 = scmp.eq.s32.totalorder %s87, 0
      %p192 = por %p190, %p191
      %p193 = scmp.ne.s32.totalorder %s181, %s182
      %p194 = scmp.eq.s32.totalorder %s88, 1
      %p195 = por %p193, %p194
      %p197 = scmp.ne.s32.totalorder %s182, %s196
      %p198 = scmp.eq.s32.totalorder %s88, 0
      %p199 = por %p197, %p198
      %s201 = sadd.s32 %s200, 1
      %p204 = scmp.eq.s32.totalorder %s82, 1
      %p205 = scmp.ne.s32.totalorder %s200, %s202
      %p206 = scmp.eq.s32.totalorder %s82, 0
      %p207 = por %p205, %p206
      %p208 = scmp.ne.s32.totalorder %s200, %s202
      %p209 = scmp.eq.s32.totalorder %s87, 1
      %p210 = por %p208, %p209
      %p211 = scmp.ne.s32.totalorder %s202, %s203
      %p212 = scmp.eq.s32.totalorder %s87, 0
      %p213 = por %p211, %p212
      %p214 = scmp.ne.s32.totalorder %s202, %s203
      %p215 = scmp.eq.s32.totalorder %s88, 1
      %p216 = por %p214, %p215
      %p218 = scmp.ne.s32.totalorder %s203, %s217
      %p219 = scmp.eq.s32.totalorder %s88, 0
      %p220 = por %p218, %p219
      %s222 = sadd.s32 %s221, 1
      %p225 = scmp.eq.s32.totalorder %s82, 1
      %p226 = scmp.ne.s32.totalorder %s221, %s223
      %p227 = scmp.eq.s32.totalorder %s82, 0
      %p228 = por %p226, %p227
      %p229 = scmp.ne.s32.totalorder %s221, %s223
      %p230 = scmp.eq.s32.totalorder %s87, 1
      %p231 = por %p229, %p230
      %p232 = scmp.ne.s32.totalorder %s223, %s224
      %p233 = scmp.eq.s32.totalorder %s87, 0
      %p234 = por %p232, %p233
      %p235 = scmp.ne.s32.totalorder %s223, %s224
      %p236 = scmp.eq.s32.totalorder %s88, 1
      %p237 = por %p235, %p236
      %p239 = scmp.ne.s32.totalorder %s224, %s238
      %p240 = scmp.eq.s32.totalorder %s88, 0
      %p241 = por %p239, %p240
      %s243 = sadd.s32 %s242, 1
      %p246 = scmp.eq.s32.totalorder %s82, 1
      %p247 = scmp.ne.s32.totalorder %s242, %s244
      %p248 = scmp.eq.s32.totalorder %s82, 0
      %p249 = por %p247, %p248
      %p250 = scmp.ne.s32.totalorder %s242, %s244
      %p251 = scmp.eq.s32.totalorder %s87, 1
      %p252 = por %p250, %p251
      %p253 = scmp.ne.s32.totalorder %s244, %s245
      %p254 = scmp.eq.s32.totalorder %s87, 0
      %p255 = por %p253, %p254
      %p256 = scmp.ne.s32.totalorder %s244, %s245
      %p257 = scmp.eq.s32.totalorder %s88, 1
      %p258 = por %p256, %p257
      %p260 = scmp.ne.s32.totalorder %s245, %s259
      %p261 = scmp.eq.s32.totalorder %s88, 0
      %p262 = por %p260, %p261
      %s264 = sadd.s32 %s263, 1
      %p267 = scmp.eq.s32.totalorder %s82, 1
      %p268 = scmp.ne.s32.totalorder %s263, %s265
      %p269 = scmp.eq.s32.totalorder %s82, 0
      %p270 = por %p268, %p269
      %p271 = scmp.ne.s32.totalorder %s263, %s265
      %p272 = scmp.eq.s32.totalorder %s87, 1
      %p273 = por %p271, %p272
      %p274 = scmp.ne.s32.totalorder %s265, %s266
      %p275 = scmp.eq.s32.totalorder %s87, 0
      %p276 = por %p274, %p275
      %p277 = scmp.ne.s32.totalorder %s265, %s266
      %p278 = scmp.eq.s32.totalorder %s88, 1
      %p279 = por %p277, %p278
      %p281 = scmp.ne.s32.totalorder %s266, %s280
      %p282 = scmp.eq.s32.totalorder %s88, 0
      %p283 = por %p281, %p282
      %s285 = sadd.s32 %s284, 1
      %p288 = scmp.eq.s32.totalorder %s82, 1
      %p289 = scmp.ne.s32.totalorder %s284, %s286
      %p290 = scmp.eq.s32.totalorder %s82, 0
      %p291 = por %p289, %p290
      %p292 = scmp.ne.s32.totalorder %s284, %s286
      %p293 = scmp.eq.s32.totalorder %s87, 1
      %p294 = por %p292, %p293
      %p295 = scmp.ne.s32.totalorder %s286, %s287
      %p296 = scmp.eq.s32.totalorder %s87, 0
      %p297 = por %p295, %p296
      %p298 = scmp.ne.s32.totalorder %s286, %s287
      %p299 = scmp.eq.s32.totalorder %s88, 1
      %p300 = por %p298, %p299
      %p302 = scmp.ne.s32.totalorder %s287, %s301
      %p303 = scmp.eq.s32.totalorder %s88, 0
      %p304 = por %p302, %p303
      %s306 = sadd.s32 %s305, 1
      %p309 = scmp.eq.s32.totalorder %s82, 1
      %p310 = scmp.ne.s32.totalorder %s305, %s307
      %p311 = scmp.eq.s32.totalorder %s82, 0
      %p312 = por %p310, %p311
      %p313 = scmp.ne.s32.totalorder %s305, %s307
      %p314 = scmp.eq.s32.totalorder %s87, 1
      %p315 = por %p313, %p314
      %p316 = scmp.ne.s32.totalorder %s307, %s308
      %p317 = scmp.eq.s32.totalorder %s87, 0
      %p318 = por %p316, %p317
      %p319 = scmp.ne.s32.totalorder %s307, %s308
      %p320 = scmp.eq.s32.totalorder %s88, 1
      %p321 = por %p319, %p320
      %p323 = scmp.ne.s32.totalorder %s308, %s322
      %p324 = scmp.eq.s32.totalorder %s88, 0
      %p325 = por %p323, %p324
      %s327 = sadd.s32 %s326, 1
      %p330 = scmp.eq.s32.totalorder %s82, 1
      %p331 = scmp.ne.s32.totalorder %s326, %s328
      %p332 = scmp.eq.s32.totalorder %s82, 0
      %p333 = por %p331, %p332
      %p334 = scmp.ne.s32.totalorder %s326, %s328
      %p335 = scmp.eq.s32.totalorder %s87, 1
      %p336 = por %p334, %p335
      %p337 = scmp.ne.s32.totalorder %s328, %s329
      %p338 = scmp.eq.s32.totalorder %s87, 0
      %p339 = por %p337, %p338
      %p340 = scmp.ne.s32.totalorder %s328, %s329
      %p341 = scmp.eq.s32.totalorder %s88, 1
      %p342 = por %p340, %p341
      %p344 = scmp.ne.s32.totalorder %s329, %s343
      %p345 = scmp.eq.s32.totalorder %s88, 0
      %p346 = por %p344, %p345
      %s348 = sadd.s32 %s347, 1
      %p351 = scmp.eq.s32.totalorder %s82, 1
      %p352 = scmp.ne.s32.totalorder %s347, %s349
      %p353 = scmp.eq.s32.totalorder %s82, 0
      %p354 = por %p352, %p353
      %p355 = scmp.ne.s32.totalorder %s347, %s349
      %p356 = scmp.eq.s32.totalorder %s87, 1
      %p357 = por %p355, %p356
      %p358 = scmp.ne.s32.totalorder %s349, %s350
      %p359 = scmp.eq.s32.totalorder %s87, 0
      %p360 = por %p358, %p359
      %p361 = scmp.ne.s32.totalorder %s349, %s350
      %p362 = scmp.eq.s32.totalorder %s88, 1
      %p363 = por %p361, %p362
      %p365 = scmp.ne.s32.totalorder %s350, %s364
      %p366 = scmp.eq.s32.totalorder %s88, 0
      %p367 = por %p365, %p366
      %s369 = sadd.s32 %s368, 1
      %p372 = scmp.eq.s32.totalorder %s82, 1
      %p373 = scmp.ne.s32.totalorder %s368, %s370
      %p374 = scmp.eq.s32.totalorder %s82, 0
      %p375 = por %p373, %p374
      %p376 = scmp.ne.s32.totalorder %s368, %s370
      %p377 = scmp.eq.s32.totalorder %s87, 1
      %p378 = por %p376, %p377
      %p379 = scmp.ne.s32.totalorder %s370, %s371
      %p380 = scmp.eq.s32.totalorder %s87, 0
      %p381 = por %p379, %p380
      %p382 = scmp.ne.s32.totalorder %s370, %s371
      %p383 = scmp.eq.s32.totalorder %s88, 1
      %p384 = por %p382, %p383
      %p386 = scmp.ne.s32.totalorder %s371, %s385
      %p387 = scmp.eq.s32.totalorder %s88, 0
      %p388 = por %p386, %p387
      %s390 = sadd.s32 %s389, 1
      %p393 = scmp.eq.s32.totalorder %s82, 1
      %p394 = scmp.ne.s32.totalorder %s389, %s391
      %p395 = scmp.eq.s32.totalorder %s82, 0
      %p396 = por %p394, %p395
      %p397 = scmp.ne.s32.totalorder %s389, %s391
      %p398 = scmp.eq.s32.totalorder %s87, 1
      %p399 = por %p397, %p398
      %p400 = scmp.ne.s32.totalorder %s391, %s392
      %p401 = scmp.eq.s32.totalorder %s87, 0
      %p402 = por %p400, %p401
      %p403 = scmp.ne.s32.totalorder %s391, %s392
      %p404 = scmp.eq.s32.totalorder %s88, 1
      %p405 = por %p403, %p404
      %p407 = scmp.ne.s32.totalorder %s392, %s406
      %p408 = scmp.eq.s32.totalorder %s88, 0
      %p409 = por %p407, %p408
      %s411 = sadd.s32 %s410, 1
      %p414 = scmp.eq.s32.totalorder %s82, 1
      %p415 = scmp.ne.s32.totalorder %s410, %s412
      %p416 = scmp.eq.s32.totalorder %s82, 0
      %p417 = por %p415, %p416
      %p418 = scmp.ne.s32.totalorder %s410, %s412
      %p419 = scmp.eq.s32.totalorder %s87, 1
      %p420 = por %p418, %p419
      %p421 = scmp.ne.s32.totalorder %s412, %s413
      %p422 = scmp.eq.s32.totalorder %s87, 0
      %p423 = por %p421, %p422
      %p424 = scmp.ne.s32.totalorder %s412, %s413
      %p425 = scmp.eq.s32.totalorder %s88, 1
      %p426 = por %p424, %p425
      %p428 = scmp.ne.s32.totalorder %s413, %s427
      %p429 = scmp.eq.s32.totalorder %s88, 0
      %p430 = por %p428, %p429
      %s432 = sadd.s32 %s431, 1
      %p435 = scmp.eq.s32.totalorder %s82, 1
      %p436 = scmp.ne.s32.totalorder %s431, %s433
      %p437 = scmp.eq.s32.totalorder %s82, 0
      %p438 = por %p436, %p437
      %p439 = scmp.ne.s32.totalorder %s431, %s433
      %p440 = scmp.eq.s32.totalorder %s87, 1
      %p441 = por %p439, %p440
      %p442 = scmp.ne.s32.totalorder %s433, %s434
      %p443 = scmp.eq.s32.totalorder %s87, 0
      %p444 = por %p442, %p443
      %p445 = scmp.ne.s32.totalorder %s433, %s434
      %p446 = scmp.eq.s32.totalorder %s88, 1
      %p447 = por %p445, %p446
      %p449 = scmp.ne.s32.totalorder %s434, %s448
      %p450 = scmp.eq.s32.totalorder %s88, 0
      %p451 = por %p449, %p450
      %s453 = sadd.s32 %s452, 1
      %p456 = scmp.eq.s32.totalorder %s82, 1
      %p457 = scmp.ne.s32.totalorder %s452, %s454
      %p458 = scmp.eq.s32.totalorder %s82, 0
      %p459 = por %p457, %p458
      %p460 = scmp.ne.s32.totalorder %s452, %s454
      %p461 = scmp.eq.s32.totalorder %s87, 1
      %p462 = por %p460, %p461
      %p463 = scmp.ne.s32.totalorder %s454, %s455
      %p464 = scmp.eq.s32.totalorder %s87, 0
      %p465 = por %p463, %p464
      %p466 = scmp.ne.s32.totalorder %s454, %s455
      %p467 = scmp.eq.s32.totalorder %s88, 1
      %p468 = por %p466, %p467
      %p470 = scmp.ne.s32.totalorder %s455, %s469
      %p471 = scmp.eq.s32.totalorder %s88, 0
      %p472 = por %p470, %p471
      %s474 = sadd.s32 %s473, 1
      %p477 = scmp.eq.s32.totalorder %s82, 1
      %p478 = scmp.ne.s32.totalorder %s473, %s475
      %p479 = scmp.eq.s32.totalorder %s82, 0
      %p480 = por %p478, %p479
      %p481 = scmp.ne.s32.totalorder %s473, %s475
      %p482 = scmp.eq.s32.totalorder %s87, 1
      %p483 = por %p481, %p482
      %p484 = scmp.ne.s32.totalorder %s475, %s476
      %p485 = scmp.eq.s32.totalorder %s87, 0
      %p486 = por %p484, %p485
      %p487 = scmp.ne.s32.totalorder %s475, %s476
      %p488 = scmp.eq.s32.totalorder %s88, 1
      %p489 = por %p487, %p488
      %p491 = scmp.ne.s32.totalorder %s476, %s490
      %p492 = scmp.eq.s32.totalorder %s88, 0
      %p493 = por %p491, %p492
      %s495 = sadd.s32 %s494, 1
      %p498 = scmp.eq.s32.totalorder %s82, 1
      %p499 = scmp.ne.s32.totalorder %s494, %s496
      %p500 = scmp.eq.s32.totalorder %s82, 0
      %p501 = por %p499, %p500
      %p502 = scmp.ne.s32.totalorder %s494, %s496
      %p503 = scmp.eq.s32.totalorder %s87, 1
      %p504 = por %p502, %p503
      %p505 = scmp.ne.s32.totalorder %s496, %s497
      %p506 = scmp.eq.s32.totalorder %s87, 0
      %p507 = por %p505, %p506
      %p508 = scmp.ne.s32.totalorder %s496, %s497
      %p509 = scmp.eq.s32.totalorder %s88, 1
      %p510 = por %p508, %p509
      %p512 = scmp.ne.s32.totalorder %s497, %s511
      %p513 = scmp.eq.s32.totalorder %s88, 0
      %p514 = por %p512, %p513
      %s516 = sadd.s32 %s515, 1
      %p519 = scmp.eq.s32.totalorder %s82, 1
      %p520 = scmp.ne.s32.totalorder %s515, %s517
      %p521 = scmp.eq.s32.totalorder %s82, 0
      %p522 = por %p520, %p521
      %p523 = scmp.ne.s32.totalorder %s515, %s517
      %p524 = scmp.eq.s32.totalorder %s87, 1
      %p525 = por %p523, %p524
      %p526 = scmp.ne.s32.totalorder %s517, %s518
      %p527 = scmp.eq.s32.totalorder %s87, 0
      %p528 = por %p526, %p527
      %p529 = scmp.ne.s32.totalorder %s517, %s518
      %p530 = scmp.eq.s32.totalorder %s88, 1
      %p531 = por %p529, %p530
      %p533 = scmp.ne.s32.totalorder %s518, %s532
      %p534 = scmp.eq.s32.totalorder %s88, 0
      %p535 = por %p533, %p534
      %s537 = sadd.s32 %s536, 1
      %p540 = scmp.eq.s32.totalorder %s82, 1
      %p541 = scmp.ne.s32.totalorder %s536, %s538
      %p542 = scmp.eq.s32.totalorder %s82, 0
      %p543 = por %p541, %p542
      %p544 = scmp.ne.s32.totalorder %s536, %s538
      %p545 = scmp.eq.s32.totalorder %s87, 1
      %p546 = por %p544, %p545
      %p547 = scmp.ne.s32.totalorder %s538, %s539
      %p548 = scmp.eq.s32.totalorder %s87, 0
      %p549 = por %p547, %p548
      %p550 = scmp.ne.s32.totalorder %s538, %s539
      %p551 = scmp.eq.s32.totalorder %s88, 1
      %p552 = por %p550, %p551
      %p554 = scmp.ne.s32.totalorder %s539, %s553
      %p555 = scmp.eq.s32.totalorder %s88, 0
      %p556 = por %p554, %p555
      %s558 = sadd.s32 %s557, 1
      %p561 = scmp.eq.s32.totalorder %s82, 1
      %p562 = scmp.ne.s32.totalorder %s557, %s559
      %p563 = scmp.eq.s32.totalorder %s82, 0
      %p564 = por %p562, %p563
      %p565 = scmp.ne.s32.totalorder %s557, %s559
      %p566 = scmp.eq.s32.totalorder %s87, 1
      %p567 = por %p565, %p566
      %p568 = scmp.ne.s32.totalorder %s559, %s560
      %p569 = scmp.eq.s32.totalorder %s87, 0
      %p570 = por %p568, %p569
      %p571 = scmp.ne.s32.totalorder %s559, %s560
      %p572 = scmp.eq.s32.totalorder %s88, 1
      %p573 = por %p571, %p572
      %p575 = scmp.ne.s32.totalorder %s560, %s574
      %p576 = scmp.eq.s32.totalorder %s88, 0
      %p577 = por %p575, %p576
      %s579 = sadd.s32 %s578, 1
      %p582 = scmp.eq.s32.totalorder %s82, 1
      %p583 = scmp.ne.s32.totalorder %s578, %s580
      %p584 = scmp.eq.s32.totalorder %s82, 0
      %p585 = por %p583, %p584
      %p586 = scmp.ne.s32.totalorder %s578, %s580
      %p587 = scmp.eq.s32.totalorder %s87, 1
      %p588 = por %p586, %p587
      %p589 = scmp.ne.s32.totalorder %s580, %s581
      %p590 = scmp.eq.s32.totalorder %s87, 0
      %p591 = por %p589, %p590
      %p592 = scmp.ne.s32.totalorder %s580, %s581
      %p593 = scmp.eq.s32.totalorder %s88, 1
      %p594 = por %p592, %p593
      %p596 = scmp.ne.s32.totalorder %s581, %s595
      %p597 = scmp.eq.s32.totalorder %s88, 0
      %p598 = por %p596, %p597
      %s600 = sadd.s32 %s599, 1
      %p603 = scmp.eq.s32.totalorder %s82, 1
      %p604 = scmp.ne.s32.totalorder %s599, %s601
      %p605 = scmp.eq.s32.totalorder %s82, 0
      %p606 = por %p604, %p605
      %p607 = scmp.ne.s32.totalorder %s599, %s601
      %p608 = scmp.eq.s32.totalorder %s87, 1
      %p609 = por %p607, %p608
      %p610 = scmp.ne.s32.totalorder %s601, %s602
      %p611 = scmp.eq.s32.totalorder %s87, 0
      %p612 = por %p610, %p611
      %p613 = scmp.ne.s32.totalorder %s601, %s602
      %p614 = scmp.eq.s32.totalorder %s88, 1
      %p615 = por %p613, %p614
      %p617 = scmp.ne.s32.totalorder %s602, %s616
      %p618 = scmp.eq.s32.totalorder %s88, 0
      %p619 = por %p617, %p618
      %s621 = sadd.s32 %s620, 1
      %p624 = scmp.eq.s32.totalorder %s82, 1
      %p625 = scmp.ne.s32.totalorder %s620, %s622
      %p626 = scmp.eq.s32.totalorder %s82, 0
      %p627 = por %p625, %p626
      %p628 = scmp.ne.s32.totalorder %s620, %s622
      %p629 = scmp.eq.s32.totalorder %s87, 1
      %p630 = por %p628, %p629
      %p631 = scmp.ne.s32.totalorder %s622, %s623
      %p632 = scmp.eq.s32.totalorder %s87, 0
      %p633 = por %p631, %p632
      %p634 = scmp.ne.s32.totalorder %s622, %s623
      %p635 = scmp.eq.s32.totalorder %s88, 1
      %p636 = por %p634, %p635
      %p638 = scmp.ne.s32.totalorder %s623, %s637
      %p639 = scmp.eq.s32.totalorder %s88, 0
      %p640 = por %p638, %p639
      %s642 = sadd.s32 %s641, 1
      %p645 = scmp.eq.s32.totalorder %s82, 1
      %p646 = scmp.ne.s32.totalorder %s641, %s643
      %p647 = scmp.eq.s32.totalorder %s82, 0
      %p648 = por %p646, %p647
      %p649 = scmp.ne.s32.totalorder %s641, %s643
      %p650 = scmp.eq.s32.totalorder %s87, 1
      %p651 = por %p649, %p650
      %p652 = scmp.ne.s32.totalorder %s643, %s644
      %p653 = scmp.eq.s32.totalorder %s87, 0
      %p654 = por %p652, %p653
      %p655 = scmp.ne.s32.totalorder %s643, %s644
      %p656 = scmp.eq.s32.totalorder %s88, 1
      %p657 = por %p655, %p656
      %p659 = scmp.ne.s32.totalorder %s644, %s658
      %p660 = scmp.eq.s32.totalorder %s88, 0
      %p661 = por %p659, %p660
      %s663 = sadd.s32 %s662, 1
      %p666 = scmp.eq.s32.totalorder %s82, 1
      %p667 = scmp.ne.s32.totalorder %s662, %s664
      %p668 = scmp.eq.s32.totalorder %s82, 0
      %p669 = por %p667, %p668
      %p670 = scmp.ne.s32.totalorder %s662, %s664
      %p671 = scmp.eq.s32.totalorder %s87, 1
      %p672 = por %p670, %p671
      %p673 = scmp.ne.s32.totalorder %s664, %s665
      %p674 = scmp.eq.s32.totalorder %s87, 0
      %p675 = por %p673, %p674
      %p676 = scmp.ne.s32.totalorder %s664, %s665
      %p677 = scmp.eq.s32.totalorder %s88, 1
      %p678 = por %p676, %p677
      %p680 = scmp.ne.s32.totalorder %s665, %s679
      %p681 = scmp.eq.s32.totalorder %s88, 0
      %p682 = por %p680, %p681
      %s684 = sadd.s32 %s683, 1
      %p687 = scmp.eq.s32.totalorder %s82, 1
      %p688 = scmp.ne.s32.totalorder %s683, %s685
      %p689 = scmp.eq.s32.totalorder %s82, 0
      %p690 = por %p688, %p689
      %p691 = scmp.ne.s32.totalorder %s683, %s685
      %p692 = scmp.eq.s32.totalorder %s87, 1
      %p693 = por %p691, %p692
      %p694 = scmp.ne.s32.totalorder %s685, %s686
      %p695 = scmp.eq.s32.totalorder %s87, 0
      %p696 = por %p694, %p695
      %p697 = scmp.ne.s32.totalorder %s685, %s686
      %p698 = scmp.eq.s32.totalorder %s88, 1
      %p699 = por %p697, %p698
      %p701 = scmp.ne.s32.totalorder %s686, %s700
      %p702 = scmp.eq.s32.totalorder %s88, 0
      %p703 = por %p701, %p702
      %s705 = sadd.s32 %s704, 1
      %p708 = scmp.eq.s32.totalorder %s82, 1
      %p709 = scmp.ne.s32.totalorder %s704, %s706
      %p710 = scmp.eq.s32.totalorder %s82, 0
      %p711 = por %p709, %p710
      %p712 = scmp.ne.s32.totalorder %s704, %s706
      %p713 = scmp.eq.s32.totalorder %s87, 1
      %p714 = por %p712, %p713
      %p715 = scmp.ne.s32.totalorder %s706, %s707
      %p716 = scmp.eq.s32.totalorder %s87, 0
      %p717 = por %p715, %p716
      %p718 = scmp.ne.s32.totalorder %s706, %s707
      %p719 = scmp.eq.s32.totalorder %s88, 1
      %p720 = por %p718, %p719
      %p722 = scmp.ne.s32.totalorder %s707, %s721
      %p723 = scmp.eq.s32.totalorder %s88, 0
      %p724 = por %p722, %p723
      %s726 = sadd.s32 %s725, 1
      %p729 = scmp.eq.s32.totalorder %s82, 1
      %p730 = scmp.ne.s32.totalorder %s725, %s727
      %p731 = scmp.eq.s32.totalorder %s82, 0
      %p732 = por %p730, %p731
      %p733 = scmp.ne.s32.totalorder %s725, %s727
      %p734 = scmp.eq.s32.totalorder %s87, 1
      %p735 = por %p733, %p734
      %p736 = scmp.ne.s32.totalorder %s727, %s728
      %p737 = scmp.eq.s32.totalorder %s87, 0
      %p738 = por %p736, %p737
      %p739 = scmp.ne.s32.totalorder %s727, %s728
      %p740 = scmp.eq.s32.totalorder %s88, 1
      %p741 = por %p739, %p740
      %p743 = scmp.ne.s32.totalorder %s728, %s742
      %p744 = scmp.eq.s32.totalorder %s88, 0
      %p745 = por %p743, %p744
      %s747 = sadd.s32 %s746, 1
      %p750 = scmp.eq.s32.totalorder %s82, 1
      %p751 = scmp.ne.s32.totalorder %s746, %s748
      %p752 = scmp.eq.s32.totalorder %s82, 0
      %p753 = por %p751, %p752
      %p754 = scmp.ne.s32.totalorder %s746, %s748
      %p755 = scmp.eq.s32.totalorder %s87, 1
      %p756 = por %p754, %p755
      %p757 = scmp.ne.s32.totalorder %s748, %s749
      %p758 = scmp.eq.s32.totalorder %s87, 0
      %p759 = por %p757, %p758
      %p760 = scmp.ne.s32.totalorder %s748, %s749
      %p761 = scmp.eq.s32.totalorder %s88, 1
      %p762 = por %p760, %p761
      %p764 = scmp.ne.s32.totalorder %s749, %s763
      %p765 = scmp.eq.s32.totalorder %s88, 0
      %p766 = por %p764, %p765
      %s768 = sadd.s32 %s767, 1
      %p771 = scmp.eq.s32.totalorder %s82, 1
      %p772 = scmp.ne.s32.totalorder %s767, %s769
      %p773 = scmp.eq.s32.totalorder %s82, 0
      %p774 = por %p772, %p773
      %p775 = scmp.ne.s32.totalorder %s767, %s769
      %p776 = scmp.eq.s32.totalorder %s87, 1
      %p777 = por %p775, %p776
      %p778 = scmp.ne.s32.totalorder %s769, %s770
      %p779 = scmp.eq.s32.totalorder %s87, 0
      %p780 = por %p778, %p779
      %p781 = scmp.ne.s32.totalorder %s769, %s770
      %p782 = scmp.eq.s32.totalorder %s88, 1
      %p783 = por %p781, %p782
      %p785 = scmp.ne.s32.totalorder %s770, %s784
      %p786 = scmp.eq.s32.totalorder %s88, 0
      %p787 = por %p785, %p786
      %s788 = ssub.s32 %s82, %s89
      %p789 = scmp.eq.s32.totalorder %s788, 0
      %s791 = sadd.s32 %s790, 1
      %s792 = scalar_select %p789, %s790, %s791
      %p795 = pneg %p789
      %p796 = scmp.eq.s32.totalorder %s82, 1
      %p797 = por %p795, %p796
      %p798 = scmp.ne.s32.totalorder %s790, %s793
      %p799 = scmp.eq.s32.totalorder %s82, 0
      %p800 = por %p798, %p799
      %p801 = scmp.ne.s32.totalorder %s790, %s793
      %p802 = scmp.eq.s32.totalorder %s87, 1
      %p803 = por %p801, %p802
      %p804 = scmp.ne.s32.totalorder %s793, %s794
      %p805 = scmp.eq.s32.totalorder %s87, 0
      %p806 = por %p804, %p805
      %p807 = scmp.ne.s32.totalorder %s793, %s794
      %p808 = scmp.eq.s32.totalorder %s88, 1
      %p809 = por %p807, %p808
      %p811 = scmp.ne.s32.totalorder %s794, %s810
      %p812 = scmp.eq.s32.totalorder %s88, 0
      %p813 = por %p811, %p812
      %p814 = scmp.le.s32.totalorder 1, %s82
      %p815 = scmp.lt.s32.totalorder %s82, 3
      %p816 = pnand %p814, %p815
      %p817 = pneg %p816
      // Predicated region
      $region9: #{tpu_custom_call.1} parent=5 // pred_check
        _
      $region10: #{tpu_custom_call.1} parent=5 // pred_check_branch
        %819 = sbr.rel (%p816) target = $region12
      $region11: #{tpu_custom_call.1} parent=5 // pred_region
        %s820 = ssub.s32 %s82, 1
        // Predicated region
        $region13: #{tpu_custom_call.1} parent=11 // pred_check
          %p821 = pneg %p129
        $region14: #{tpu_custom_call.1} parent=11 // pred_check_branch
          %823 = sbr.rel (%p821) target = $region16
        $region15: #{tpu_custom_call.1} parent=11 // pred_region
          _
        $region16: #{tpu_custom_call.1} parent=11 // pred_fallthru
          _
        // Predicated region
        $region17: #{tpu_custom_call.1} parent=11 // pred_check
          %p824 = pneg %p150
        $region18: #{tpu_custom_call.1} parent=11 // pred_check_branch
          %826 = sbr.rel (%p824) target = $region20
        $region19: #{tpu_custom_call.1} parent=11 // pred_region
          _
        $region20: #{tpu_custom_call.1} parent=11 // pred_fallthru
          _
        // Predicated region
        $region21: #{tpu_custom_call.1} parent=11 // pred_check
          %p827 = pneg %p171
        $region22: #{tpu_custom_call.1} parent=11 // pred_check_branch
          %829 = sbr.rel (%p827) target = $region24
        $region23: #{tpu_custom_call.1} parent=11 // pred_region
          _
        $region24: #{tpu_custom_call.1} parent=11 // pred_fallthru
          _
        // Predicated region
        $region25: #{tpu_custom_call.1} parent=11 // pred_check
          %p830 = pneg %p192
        $region26: #{tpu_custom_call.1} parent=11 // pred_check_branch
          %832 = sbr.rel (%p830) target = $region28
        $region27: #{tpu_custom_call.1} parent=11 // pred_region
          _
        $region28: #{tpu_custom_call.1} parent=11 // pred_fallthru
          _
        // Predicated region
        $region29: #{tpu_custom_call.1} parent=11 // pred_check
          %p833 = pneg %p213
        $region30: #{tpu_custom_call.1} parent=11 // pred_check_branch
          %835 = sbr.rel (%p833) target = $region32
        $region31: #{tpu_custom_call.1} parent=11 // pred_region
          _
        $region32: #{tpu_custom_call.1} parent=11 // pred_fallthru
          _
        // Predicated region
        $region33: #{tpu_custom_call.1} parent=11 // pred_check
          %p836 = pneg %p234
        $region34: #{tpu_custom_call.1} parent=11 // pred_check_branch
          %838 = sbr.rel (%p836) target = $region36
        $region35: #{tpu_custom_call.1} parent=11 // pred_region
          _
        $region36: #{tpu_custom_call.1} parent=11 // pred_fallthru
          _
        // Predicated region
        $region37: #{tpu_custom_call.1} parent=11 // pred_check
          %p839 = pneg %p255
        $region38: #{tpu_custom_call.1} parent=11 // pred_check_branch
          %841 = sbr.rel (%p839) target = $region40
        $region39: #{tpu_custom_call.1} parent=11 // pred_region
          _
        $region40: #{tpu_custom_call.1} parent=11 // pred_fallthru
          _
        // Predicated region
        $region41: #{tpu_custom_call.1} parent=11 // pred_check
          %p842 = pneg %p276
        $region42: #{tpu_custom_call.1} parent=11 // pred_check_branch
          %844 = sbr.rel (%p842) target = $region44
        $region43: #{tpu_custom_call.1} parent=11 // pred_region
          _
        $region44: #{tpu_custom_call.1} parent=11 // pred_fallthru
          _
        // Predicated region
        $region45: #{tpu_custom_call.1} parent=11 // pred_check
          %p845 = pneg %p297
        $region46: #{tpu_custom_call.1} parent=11 // pred_check_branch
          %847 = sbr.rel (%p845) target = $region48
        $region47: #{tpu_custom_call.1} parent=11 // pred_region
          _
        $region48: #{tpu_custom_call.1} parent=11 // pred_fallthru
          _
        // Predicated region
        $region49: #{tpu_custom_call.1} parent=11 // pred_check
          %p848 = pneg %p318
        $region50: #{tpu_custom_call.1} parent=11 // pred_check_branch
          %850 = sbr.rel (%p848) target = $region52
        $region51: #{tpu_custom_call.1} parent=11 // pred_region
          _
        $region52: #{tpu_custom_call.1} parent=11 // pred_fallthru
          _
        // Predicated region
        $region53: #{tpu_custom_call.1} parent=11 // pred_check
          %p851 = pneg %p339
        $region54: #{tpu_custom_call.1} parent=11 // pred_check_branch
          %853 = sbr.rel (%p851) target = $region56
        $region55: #{tpu_custom_call.1} parent=11 // pred_region
          _
        $region56: #{tpu_custom_call.1} parent=11 // pred_fallthru
          _
        // Predicated region
        $region57: #{tpu_custom_call.1} parent=11 // pred_check
          %p854 = pneg %p360
        $region58: #{tpu_custom_call.1} parent=11 // pred_check_branch
          %856 = sbr.rel (%p854) target = $region60
        $region59: #{tpu_custom_call.1} parent=11 // pred_region
          _
        $region60: #{tpu_custom_call.1} parent=11 // pred_fallthru
          _
        // Predicated region
        $region61: #{tpu_custom_call.1} parent=11 // pred_check
          %p857 = pneg %p381
        $region62: #{tpu_custom_call.1} parent=11 // pred_check_branch
          %859 = sbr.rel (%p857) target = $region64
        $region63: #{tpu_custom_call.1} parent=11 // pred_region
          _
        $region64: #{tpu_custom_call.1} parent=11 // pred_fallthru
          _
        // Predicated region
        $region65: #{tpu_custom_call.1} parent=11 // pred_check
          %p860 = pneg %p402
        $region66: #{tpu_custom_call.1} parent=11 // pred_check_branch
          %862 = sbr.rel (%p860) target = $region68
        $region67: #{tpu_custom_call.1} parent=11 // pred_region
          _
        $region68: #{tpu_custom_call.1} parent=11 // pred_fallthru
          _
        // Predicated region
        $region69: #{tpu_custom_call.1} parent=11 // pred_check
          %p863 = pneg %p423
        $region70: #{tpu_custom_call.1} parent=11 // pred_check_branch
          %865 = sbr.rel (%p863) target = $region72
        $region71: #{tpu_custom_call.1} parent=11 // pred_region
          _
        $region72: #{tpu_custom_call.1} parent=11 // pred_fallthru
          _
        // Predicated region
        $region73: #{tpu_custom_call.1} parent=11 // pred_check
          %p866 = pneg %p444
        $region74: #{tpu_custom_call.1} parent=11 // pred_check_branch
          %868 = sbr.rel (%p866) target = $region76
        $region75: #{tpu_custom_call.1} parent=11 // pred_region
          _
        $region76: #{tpu_custom_call.1} parent=11 // pred_fallthru
          _
        // Predicated region
        $region77: #{tpu_custom_call.1} parent=11 // pred_check
          %p869 = pneg %p465
        $region78: #{tpu_custom_call.1} parent=11 // pred_check_branch
          %871 = sbr.rel (%p869) target = $region80
        $region79: #{tpu_custom_call.1} parent=11 // pred_region
          _
        $region80: #{tpu_custom_call.1} parent=11 // pred_fallthru
          _
        // Predicated region
        $region81: #{tpu_custom_call.1} parent=11 // pred_check
          %p872 = pneg %p486
        $region82: #{tpu_custom_call.1} parent=11 // pred_check_branch
          %874 = sbr.rel (%p872) target = $region84
        $region83: #{tpu_custom_call.1} parent=11 // pred_region
          _
        $region84: #{tpu_custom_call.1} parent=11 // pred_fallthru
          _
        // Predicated region
        $region85: #{tpu_custom_call.1} parent=11 // pred_check
          %p875 = pneg %p507
        $region86: #{tpu_custom_call.1} parent=11 // pred_check_branch
          %877 = sbr.rel (%p875) target = $region88
        $region87: #{tpu_custom_call.1} parent=11 // pred_region
          _
        $region88: #{tpu_custom_call.1} parent=11 // pred_fallthru
          _
        // Predicated region
        $region89: #{tpu_custom_call.1} parent=11 // pred_check
          %p878 = pneg %p528
        $region90: #{tpu_custom_call.1} parent=11 // pred_check_branch
          %880 = sbr.rel (%p878) target = $region92
        $region91: #{tpu_custom_call.1} parent=11 // pred_region
          _
        $region92: #{tpu_custom_call.1} parent=11 // pred_fallthru
          _
        // Predicated region
        $region93: #{tpu_custom_call.1} parent=11 // pred_check
          %p881 = pneg %p549
        $region94: #{tpu_custom_call.1} parent=11 // pred_check_branch
          %883 = sbr.rel (%p881) target = $region96
        $region95: #{tpu_custom_call.1} parent=11 // pred_region
          _
        $region96: #{tpu_custom_call.1} parent=11 // pred_fallthru
          _
        // Predicated region
        $region97: #{tpu_custom_call.1} parent=11 // pred_check
          %p884 = pneg %p570
        $region98: #{tpu_custom_call.1} parent=11 // pred_check_branch
          %886 = sbr.rel (%p884) target = $region100
        $region99: #{tpu_custom_call.1} parent=11 // pred_region
          _
        $region100: #{tpu_custom_call.1} parent=11 // pred_fallthru
          _
        // Predicated region
        $region101: #{tpu_custom_call.1} parent=11 // pred_check
          %p887 = pneg %p591
        $region102: #{tpu_custom_call.1} parent=11 // pred_check_branch
          %889 = sbr.rel (%p887) target = $region104
        $region103: #{tpu_custom_call.1} parent=11 // pred_region
          _
        $region104: #{tpu_custom_call.1} parent=11 // pred_fallthru
          _
        // Predicated region
        $region105: #{tpu_custom_call.1} parent=11 // pred_check
          %p890 = pneg %p612
        $region106: #{tpu_custom_call.1} parent=11 // pred_check_branch
          %892 = sbr.rel (%p890) target = $region108
        $region107: #{tpu_custom_call.1} parent=11 // pred_region
          _
        $region108: #{tpu_custom_call.1} parent=11 // pred_fallthru
          _
        // Predicated region
        $region109: #{tpu_custom_call.1} parent=11 // pred_check
          %p893 = pneg %p633
        $region110: #{tpu_custom_call.1} parent=11 // pred_check_branch
          %895 = sbr.rel (%p893) target = $region112
        $region111: #{tpu_custom_call.1} parent=11 // pred_region
          _
        $region112: #{tpu_custom_call.1} parent=11 // pred_fallthru
          _
        // Predicated region
        $region113: #{tpu_custom_call.1} parent=11 // pred_check
          %p896 = pneg %p654
        $region114: #{tpu_custom_call.1} parent=11 // pred_check_branch
          %898 = sbr.rel (%p896) target = $region116
        $region115: #{tpu_custom_call.1} parent=11 // pred_region
          _
        $region116: #{tpu_custom_call.1} parent=11 // pred_fallthru
          _
        // Predicated region
        $region117: #{tpu_custom_call.1} parent=11 // pred_check
          %p899 = pneg %p675
        $region118: #{tpu_custom_call.1} parent=11 // pred_check_branch
          %901 = sbr.rel (%p899) target = $region120
        $region119: #{tpu_custom_call.1} parent=11 // pred_region
          _
        $region120: #{tpu_custom_call.1} parent=11 // pred_fallthru
          _
        // Predicated region
        $region121: #{tpu_custom_call.1} parent=11 // pred_check
          %p902 = pneg %p696
        $region122: #{tpu_custom_call.1} parent=11 // pred_check_branch
          %904 = sbr.rel (%p902) target = $region124
        $region123: #{tpu_custom_call.1} parent=11 // pred_region
          _
        $region124: #{tpu_custom_call.1} parent=11 // pred_fallthru
          _
        // Predicated region
        $region125: #{tpu_custom_call.1} parent=11 // pred_check
          %p905 = pneg %p717
        $region126: #{tpu_custom_call.1} parent=11 // pred_check_branch
          %907 = sbr.rel (%p905) target = $region128
        $region127: #{tpu_custom_call.1} parent=11 // pred_region
          _
        $region128: #{tpu_custom_call.1} parent=11 // pred_fallthru
          _
        // Predicated region
        $region129: #{tpu_custom_call.1} parent=11 // pred_check
          %p908 = pneg %p738
        $region130: #{tpu_custom_call.1} parent=11 // pred_check_branch
          %910 = sbr.rel (%p908) target = $region132
        $region131: #{tpu_custom_call.1} parent=11 // pred_region
          _
        $region132: #{tpu_custom_call.1} parent=11 // pred_fallthru
          _
        // Predicated region
        $region133: #{tpu_custom_call.1} parent=11 // pred_check
          %p911 = pneg %p759
        $region134: #{tpu_custom_call.1} parent=11 // pred_check_branch
          %913 = sbr.rel (%p911) target = $region136
        $region135: #{tpu_custom_call.1} parent=11 // pred_region
          _
        $region136: #{tpu_custom_call.1} parent=11 // pred_fallthru
          _
        // Predicated region
        $region137: #{tpu_custom_call.1} parent=11 // pred_check
          %p914 = pneg %p780
        $region138: #{tpu_custom_call.1} parent=11 // pred_check_branch
          %916 = sbr.rel (%p914) target = $region140
        $region139: #{tpu_custom_call.1} parent=11 // pred_region
          _
        $region140: #{tpu_custom_call.1} parent=11 // pred_fallthru
          _
      $region12: #{tpu_custom_call.1} parent=5 // pred_fallthru
        _
      %p917 = scmp.lt.s32.totalorder %s82, 2
      // Predicated region
      $region141: #{tpu_custom_call.1} parent=5 // pred_check
        %p918 = pneg %p917
      $region142: #{tpu_custom_call.1} parent=5 // pred_check_branch
        %920 = sbr.rel (%p918) target = $region144
      $region143: #{tpu_custom_call.1} parent=5 // pred_region
        // Predicated region
        $region145: #{tpu_custom_call.1} parent=143 // pred_check
          %p921 = pneg %p102
        $region146: #{tpu_custom_call.1} parent=143 // pred_check_branch
          %923 = sbr.rel (%p921) target = $region148
        $region147: #{tpu_custom_call.1} parent=143 // pred_region
          %s924 = smul.u32 8, %s82
          %p925 = scmp.lt.s32.totalorder %s924, 15
          %s926 = scalar_select %p925, %s924, 15
          %s927 = smul.addr %s926, 8
          %s928 = scalar_lea.vmem %s1, %s927
          %s929 = smul.u32 8, %s82
        $region148: #{tpu_custom_call.1} parent=143 // pred_fallthru
          _
      $region144: #{tpu_custom_call.1} parent=5 // pred_fallthru
        _
      %p930 = scmp.le.s32.totalorder 1, %s82
      %p931 = scmp.lt.s32.totalorder %s82, 3
      %p932 = pnand %p930, %p931
      %p933 = pneg %p932
      // Predicated region
      $region149: #{tpu_custom_call.1} parent=5 // pred_check
        _
      $region150: #{tpu_custom_call.1} parent=5 // pred_check_branch
        %935 = sbr.rel (%p932) target = $region152
      $region151: #{tpu_custom_call.1} parent=5 // pred_region
        %s936 = ssub.s32 %s82, 1
        %s937 = smul.u32 8, %s87
        %p938 = scmp.lt.s32.totalorder %s937, 15
        %s939 = scalar_select %p938, %s937, 15
        %s940 = smul.addr %s939, 8
        %s941 = scalar_lea.vmem %s1, %s940
        %p942 = pneg %p108
        %p943 = pneg %p105
        %p944 = pneg %p129
        %p945 = pneg %p126
        %p946 = pneg %p150
        %p947 = pneg %p147
        %p948 = pneg %p171
        %p949 = pneg %p168
        %p950 = pneg %p192
        %p951 = pneg %p189
        %p952 = pneg %p213
        %p953 = pneg %p210
        %p954 = pneg %p234
        %p955 = pneg %p231
        %p956 = pneg %p255
        %p957 = pneg %p252
        %p958 = pneg %p276
        %p959 = pneg %p273
        %p960 = pneg %p297
        %p961 = pneg %p294
        %p962 = pneg %p318
        %p963 = pneg %p315
        %p964 = pneg %p339
        %p965 = pneg %p336
        %p966 = pneg %p360
        %p967 = pneg %p357
        %p968 = pneg %p381
        %p969 = pneg %p378
        %p970 = pneg %p402
        %p971 = pneg %p399
        %p972 = pneg %p423
        %p973 = pneg %p420
        %p974 = pneg %p444
        %p975 = pneg %p441
        %p976 = pneg %p465
        %p977 = pneg %p462
        %p978 = pneg %p486
        %p979 = pneg %p483
        %p980 = pneg %p507
        %p981 = pneg %p504
        %p982 = pneg %p528
        %p983 = pneg %p525
        %p984 = pneg %p549
        %p985 = pneg %p546
        %p986 = pneg %p570
        %p987 = pneg %p567
        %p988 = pneg %p591
        %p989 = pneg %p588
        %p990 = pneg %p612
        %p991 = pneg %p609
        %p992 = pneg %p633
        %p993 = pneg %p630
        %p994 = pneg %p654
        %p995 = pneg %p651
        %p996 = pneg %p675
        %p997 = pneg %p672
        %p998 = pneg %p696
        %p999 = pneg %p693
        %p1000 = pneg %p717
        %p1001 = pneg %p714
        %p1002 = pneg %p738
        %p1003 = pneg %p735
        %p1004 = pneg %p759
        %p1005 = pneg %p756
        %p1006 = pneg %p780
        %p1007 = pneg %p777
        %p1008 = pneg %p806
        %p1009 = pneg %p803
        %s1010 = sand.u32 %s793, 1
        %s1011 = scalar_lea.sflag [#allocation7], %s1010
        %s1012 = sand.u32 %s793, 1
        %s1013 = smul.addr %s1012, 8
        %s1014 = scalar_lea.vmem [#allocation6], %s1013
        %s1015 = smul.u32 8, %s87
        %p1016 = scmp.lt.s32.totalorder %s1015, 15
        %s1017 = scalar_select %p1016, %s1015, 15
        %s1018 = smul.addr %s1017, 8
        %s1019 = scalar_lea.vmem %s1, %s1018
        %s1020 = smul.u32 8, %s87
        %v1021 = vld [vmem:[%s1019] sm:$0xff]
        %v1022 = vld [vmem:[%s1019 + $0x8] sm:$0xff]
        %v1023 = vld [vmem:[%s1019 + $0x10] sm:$0xff]
        %v1024 = vld [vmem:[%s1019 + $0x18] sm:$0xff]
        %v1025 = vld [vmem:[%s1019 + $0x20] sm:$0xff]
        %v1026 = vld [vmem:[%s1019 + $0x28] sm:$0xff]
        %v1027 = vld [vmem:[%s1019 + $0x30] sm:$0xff]
        %v1028 = vld [vmem:[%s1019 + $0x38] sm:$0xff]
        %vm1029 = vcmask 256000
        %1030 = vst.msk [vmem:[#allocation2] sm:$0x7] %vm1029, 0.0
        %1031 = vst.msk [vmem:[#allocation2 + $0x43] sm:$0x7] %vm1029, 0.0
        %vm1032 = vcmask 7168
        %1033 = vst.msk [vmem:[#allocation2 + $0x3] sm:$0xff] %vm1032, %v1021
        %1034 = vst.msk [vmem:[#allocation2 + $0xb] sm:$0xff] %vm1032, %v1022
        %1035 = vst.msk [vmem:[#allocation2 + $0x13] sm:$0xff] %vm1032, %v1023
        %1036 = vst.msk [vmem:[#allocation2 + $0x1b] sm:$0xff] %vm1032, %v1024
        %1037 = vst.msk [vmem:[#allocation2 + $0x23] sm:$0xff] %vm1032, %v1025
        %1038 = vst.msk [vmem:[#allocation2 + $0x2b] sm:$0xff] %vm1032, %v1026
        %1039 = vst.msk [vmem:[#allocation2 + $0x33] sm:$0xff] %vm1032, %v1027
        %1040 = vst.msk [vmem:[#allocation2 + $0x3b] sm:$0xff] %vm1032, %v1028
        %v1041 = vld [vmem:[#allocation2] sm:$0xff]
        %v1042 = vld [vmem:[#allocation2 + $0x8] sm:$0xff]
        %v1043 = vld [vmem:[#allocation2 + $0x10] sm:$0xff]
        %v1044 = vld [vmem:[#allocation2 + $0x18] sm:$0xff]
        %v1045 = vld [vmem:[#allocation2 + $0x20] sm:$0xff]
        %v1046 = vld [vmem:[#allocation2 + $0x28] sm:$0xff]
        %v1047 = vld [vmem:[#allocation2 + $0x30] sm:$0xff]
        %v1048 = vld [vmem:[#allocation2 + $0x38] sm:$0xff]
        %v1049 = vld [vmem:[#allocation2 + $0x1] sm:$0xff]
        %v1050 = vld [vmem:[#allocation2 + $0x9] sm:$0xff]
        %v1051 = vld [vmem:[#allocation2 + $0x11] sm:$0xff]
        %v1052 = vld [vmem:[#allocation2 + $0x19] sm:$0xff]
        %v1053 = vld [vmem:[#allocation2 + $0x21] sm:$0xff]
        %v1054 = vld [vmem:[#allocation2 + $0x29] sm:$0xff]
        %v1055 = vld [vmem:[#allocation2 + $0x31] sm:$0xff]
        %v1056 = vld [vmem:[#allocation2 + $0x39] sm:$0xff]
        %v1057 = vld [vmem:[#allocation2 + $0x2] sm:$0xff]
        %v1058 = vld [vmem:[#allocation2 + $0xa] sm:$0xff]
        %v1059 = vld [vmem:[#allocation2 + $0x12] sm:$0xff]
        %v1060 = vld [vmem:[#allocation2 + $0x1a] sm:$0xff]
        %v1061 = vld [vmem:[#allocation2 + $0x22] sm:$0xff]
        %v1062 = vld [vmem:[#allocation2 + $0x2a] sm:$0xff]
        %v1063 = vld [vmem:[#allocation2 + $0x32] sm:$0xff]
        %v1064 = vld [vmem:[#allocation2 + $0x3a] sm:$0xff]
        %v1065 = vld [vmem:[#allocation2 + $0x3] sm:$0xff]
        %v1066 = vld [vmem:[#allocation2 + $0xb] sm:$0xff]
        %v1067 = vld [vmem:[#allocation2 + $0x13] sm:$0xff]
        %v1068 = vld [vmem:[#allocation2 + $0x1b] sm:$0xff]
        %v1069 = vld [vmem:[#allocation2 + $0x23] sm:$0xff]
        %v1070 = vld [vmem:[#allocation2 + $0x2b] sm:$0xff]
        %v1071 = vld [vmem:[#allocation2 + $0x33] sm:$0xff]
        %v1072 = vld [vmem:[#allocation2 + $0x3b] sm:$0xff]
        %v1073 = vld [vmem:[#allocation2 + $0x4] sm:$0xff]
        %v1074 = vld [vmem:[#allocation2 + $0xc] sm:$0xff]
        %v1075 = vld [vmem:[#allocation2 + $0x14] sm:$0xff]
        %v1076 = vld [vmem:[#allocation2 + $0x1c] sm:$0xff]
        %v1077 = vld [vmem:[#allocation2 + $0x24] sm:$0xff]
        %v1078 = vld [vmem:[#allocation2 + $0x2c] sm:$0xff]
        %v1079 = vld [vmem:[#allocation2 + $0x34] sm:$0xff]
        %v1080 = vld [vmem:[#allocation2 + $0x3c] sm:$0xff]
        %v1081 = vld [vmem:[#allocation2 + $0x5] sm:$0xff]
        %v1082 = vld [vmem:[#allocation2 + $0xd] sm:$0xff]
        %v1083 = vld [vmem:[#allocation2 + $0x15] sm:$0xff]
        %v1084 = vld [vmem:[#allocation2 + $0x1d] sm:$0xff]
        %v1085 = vld [vmem:[#allocation2 + $0x25] sm:$0xff]
        %v1086 = vld [vmem:[#allocation2 + $0x2d] sm:$0xff]
        %v1087 = vld [vmem:[#allocation2 + $0x35] sm:$0xff]
        %v1088 = vld [vmem:[#allocation2 + $0x3d] sm:$0xff]
        %v1089 = vld [vmem:[#allocation2 + $0x6] sm:$0xff]
        %v1090 = vld [vmem:[#allocation2 + $0xe] sm:$0xff]
        %v1091 = vld [vmem:[#allocation2 + $0x16] sm:$0xff]
        %v1092 = vld [vmem:[#allocation2 + $0x1e] sm:$0xff]
        %v1093 = vld [vmem:[#allocation2 + $0x26] sm:$0xff]
        %v1094 = vld [vmem:[#allocation2 + $0x2e] sm:$0xff]
        %v1095 = vld [vmem:[#allocation2 + $0x36] sm:$0xff]
        %v1096 = vld [vmem:[#allocation2 + $0x3e] sm:$0xff]
        %1105 = vrot.lane.b32.xlu0 %v1049, 1
        %v1106 = vpop.permute.xlu0 %1105
        %1107 = vrot.lane.b32.xlu0 %v1050, 1
        %v1108 = vpop.permute.xlu0 %1107
        %1109 = vrot.lane.b32.xlu0 %v1051, 1
        %v1110 = vpop.permute.xlu0 %1109
        %1111 = vrot.lane.b32.xlu0 %v1052, 1
        %v1112 = vpop.permute.xlu0 %1111
        %1113 = vrot.lane.b32.xlu0 %v1053, 1
        %v1114 = vpop.permute.xlu0 %1113
        %1115 = vrot.lane.b32.xlu0 %v1054, 1
        %v1116 = vpop.permute.xlu0 %1115
        %1117 = vrot.lane.b32.xlu0 %v1055, 1
        %v1118 = vpop.permute.xlu0 %1117
        %1119 = vrot.lane.b32.xlu0 %v1056, 1
        %v1120 = vpop.permute.xlu0 %1119
        %1137 = vrot.lane.b32.xlu0 %v1057, 2
        %v1138 = vpop.permute.xlu0 %1137
        %1139 = vrot.lane.b32.xlu0 %v1058, 2
        %v1140 = vpop.permute.xlu0 %1139
        %1141 = vrot.lane.b32.xlu0 %v1059, 2
        %v1142 = vpop.permute.xlu0 %1141
        %1143 = vrot.lane.b32.xlu0 %v1060, 2
        %v1144 = vpop.permute.xlu0 %1143
        %1145 = vrot.lane.b32.xlu0 %v1061, 2
        %v1146 = vpop.permute.xlu0 %1145
        %1147 = vrot.lane.b32.xlu0 %v1062, 2
        %v1148 = vpop.permute.xlu0 %1147
        %1149 = vrot.lane.b32.xlu0 %v1063, 2
        %v1150 = vpop.permute.xlu0 %1149
        %1151 = vrot.lane.b32.xlu0 %v1064, 2
        %v1152 = vpop.permute.xlu0 %1151
        %1169 = vrot.lane.b32.xlu0 %v1065, 3
        %v1170 = vpop.permute.xlu0 %1169
        %1171 = vrot.lane.b32.xlu0 %v1066, 3
        %v1172 = vpop.permute.xlu0 %1171
        %1173 = vrot.lane.b32.xlu0 %v1067, 3
        %v1174 = vpop.permute.xlu0 %1173
        %1175 = vrot.lane.b32.xlu0 %v1068, 3
        %v1176 = vpop.permute.xlu0 %1175
        %1177 = vrot.lane.b32.xlu0 %v1069, 3
        %v1178 = vpop.permute.xlu0 %1177
        %1179 = vrot.lane.b32.xlu0 %v1070, 3
        %v1180 = vpop.permute.xlu0 %1179
        %1181 = vrot.lane.b32.xlu0 %v1071, 3
        %v1182 = vpop.permute.xlu0 %1181
        %1183 = vrot.lane.b32.xlu0 %v1072, 3
        %v1184 = vpop.permute.xlu0 %1183
        %1201 = vrot.lane.b32.xlu0 %v1073, 4
        %v1202 = vpop.permute.xlu0 %1201
        %1203 = vrot.lane.b32.xlu0 %v1074, 4
        %v1204 = vpop.permute.xlu0 %1203
        %1205 = vrot.lane.b32.xlu0 %v1075, 4
        %v1206 = vpop.permute.xlu0 %1205
        %1207 = vrot.lane.b32.xlu0 %v1076, 4
        %v1208 = vpop.permute.xlu0 %1207
        %1209 = vrot.lane.b32.xlu0 %v1077, 4
        %v1210 = vpop.permute.xlu0 %1209
        %1211 = vrot.lane.b32.xlu0 %v1078, 4
        %v1212 = vpop.permute.xlu0 %1211
        %1213 = vrot.lane.b32.xlu0 %v1079, 4
        %v1214 = vpop.permute.xlu0 %1213
        %1215 = vrot.lane.b32.xlu0 %v1080, 4
        %v1216 = vpop.permute.xlu0 %1215
        %1233 = vrot.lane.b32.xlu0 %v1081, 5
        %v1234 = vpop.permute.xlu0 %1233
        %1235 = vrot.lane.b32.xlu0 %v1082, 5
        %v1236 = vpop.permute.xlu0 %1235
        %1237 = vrot.lane.b32.xlu0 %v1083, 5
        %v1238 = vpop.permute.xlu0 %1237
        %1239 = vrot.lane.b32.xlu0 %v1084, 5
        %v1240 = vpop.permute.xlu0 %1239
        %1241 = vrot.lane.b32.xlu0 %v1085, 5
        %v1242 = vpop.permute.xlu0 %1241
        %1243 = vrot.lane.b32.xlu0 %v1086, 5
        %v1244 = vpop.permute.xlu0 %1243
        %1245 = vrot.lane.b32.xlu0 %v1087, 5
        %v1246 = vpop.permute.xlu0 %1245
        %1247 = vrot.lane.b32.xlu0 %v1088, 5
        %v1248 = vpop.permute.xlu0 %1247
        %1265 = vrot.lane.b32.xlu0 %v1089, 6
        %v1266 = vpop.permute.xlu0 %1265
        %1267 = vrot.lane.b32.xlu0 %v1090, 6
        %v1268 = vpop.permute.xlu0 %1267
        %1269 = vrot.lane.b32.xlu0 %v1091, 6
        %v1270 = vpop.permute.xlu0 %1269
        %1271 = vrot.lane.b32.xlu0 %v1092, 6
        %v1272 = vpop.permute.xlu0 %1271
        %1273 = vrot.lane.b32.xlu0 %v1093, 6
        %v1274 = vpop.permute.xlu0 %1273
        %1275 = vrot.lane.b32.xlu0 %v1094, 6
        %v1276 = vpop.permute.xlu0 %1275
        %1277 = vrot.lane.b32.xlu0 %v1095, 6
        %v1278 = vpop.permute.xlu0 %1277
        %1279 = vrot.lane.b32.xlu0 %v1096, 6
        %v1280 = vpop.permute.xlu0 %1279
        %v1289 = vsel %vm1032, %v1041, %v1106
        %v1290 = vsel %vm1032, %v1042, %v1108
        %v1291 = vsel %vm1032, %v1043, %v1110
        %v1292 = vsel %vm1032, %v1044, %v1112
        %v1293 = vsel %vm1032, %v1045, %v1114
        %v1294 = vsel %vm1032, %v1046, %v1116
        %v1295 = vsel %vm1032, %v1047, %v1118
        %v1296 = vsel %vm1032, %v1048, %v1120
        %vm1297 = vcmask 15360
        %v1298 = vsel %vm1297, %v1289, %v1138
        %v1299 = vsel %vm1297, %v1290, %v1140
        %v1300 = vsel %vm1297, %v1291, %v1142
        %v1301 = vsel %vm1297, %v1292, %v1144
        %v1302 = vsel %vm1297, %v1293, %v1146
        %v1303 = vsel %vm1297, %v1294, %v1148
        %v1304 = vsel %vm1297, %v1295, %v1150
        %v1305 = vsel %vm1297, %v1296, %v1152
        %vm1306 = vcmask 23552
        %v1307 = vsel %vm1306, %v1298, %v1170
        %v1308 = vsel %vm1306, %v1299, %v1172
        %v1309 = vsel %vm1306, %v1300, %v1174
        %v1310 = vsel %vm1306, %v1301, %v1176
        %v1311 = vsel %vm1306, %v1302, %v1178
        %v1312 = vsel %vm1306, %v1303, %v1180
        %v1313 = vsel %vm1306, %v1304, %v1182
        %v1314 = vsel %vm1306, %v1305, %v1184
        %vm1315 = vcmask 31744
        %v1316 = vsel %vm1315, %v1307, %v1202
        %v1317 = vsel %vm1315, %v1308, %v1204
        %v1318 = vsel %vm1315, %v1309, %v1206
        %v1319 = vsel %vm1315, %v1310, %v1208
        %v1320 = vsel %vm1315, %v1311, %v1210
        %v1321 = vsel %vm1315, %v1312, %v1212
        %v1322 = vsel %vm1315, %v1313, %v1214
        %v1323 = vsel %vm1315, %v1314, %v1216
        %vm1324 = vcmask 39936
        %v1325 = vsel %vm1324, %v1316, %v1234
        %v1326 = vsel %vm1324, %v1317, %v1236
        %v1327 = vsel %vm1324, %v1318, %v1238
        %v1328 = vsel %vm1324, %v1319, %v1240
        %v1329 = vsel %vm1324, %v1320, %v1242
        %v1330 = vsel %vm1324, %v1321, %v1244
        %v1331 = vsel %vm1324, %v1322, %v1246
        %v1332 = vsel %vm1324, %v1323, %v1248
        %vm1333 = vcmask 48128
        %v1334 = vsel %vm1333, %v1325, %v1266
        %v1335 = vsel %vm1333, %v1326, %v1268
        %v1336 = vsel %vm1333, %v1327, %v1270
        %v1337 = vsel %vm1333, %v1328, %v1272
        %v1338 = vsel %vm1333, %v1329, %v1274
        %v1339 = vsel %vm1333, %v1330, %v1276
        %v1340 = vsel %vm1333, %v1331, %v1278
        %v1341 = vsel %vm1333, %v1332, %v1280
        %v1342 = vld [vmem:[%s3] sm:$0x7f]
        %v1343 = vld [vmem:[#allocation3] sm:$0x1]
        %v1345 = vlaneseq
        %v1346 = vshrl.u32 %v1345, 7
        %v1347 = vsub.s32 0, %v1346
        %v1348 = vrot.slane %v1343, %v1347
        %vm1350 = vcmask 56320
        %v1352 = vsel %vm1350, %v1334, 0
        %v1355 = vsel %vm1350, %v1335, 0
        %v1358 = vsel %vm1350, %v1336, 0
        %v1361 = vsel %vm1350, %v1337, 0
        %v1364 = vsel %vm1350, %v1338, 0
        %v1367 = vsel %vm1350, %v1339, 0
        %v1370 = vsel %vm1350, %v1340, 0
        %v1373 = vsel %vm1350, %v1341, 0
        %vm1375 = vcmask 1046528
        %v1377 = vsel %vm1375, %v1342, 0
        %1379 = vmatprep.subr.mxu0 0.0
        %1380 = vmatpush1.msra.mxu0 0.0
        %1381 = vmatprep.subr.mxu0 0.0
        %1382 = vmatpush1.msra.mxu0 0.0
        %1383 = vmatprep.subr.mxu0 0.0
        %1384 = vmatpush1.msra.mxu0 0.0
        %1385 = vmatprep.subr.mxu0 0.0
        %1386 = vmatpush1.msra.mxu0 0.0
        %1387 = vmatprep.subr.mxu0 0.0
        %1388 = vmatpush1.msra.mxu0 0.0
        %1389 = vmatprep.subr.mxu0 0.0
        %1390 = vmatpush1.msra.mxu0 0.0
        %1391 = vmatprep.subr.mxu0 0.0
        %1392 = vmatpush1.msra.mxu0 0.0
        %1393 = vmatprep.subr.mxu0 0.0
        %1394 = vmatpush1.msra.mxu0 0.0
        %1395 = vmatprep.subr.mxu0 0.0
        %1396 = vmatpush1.msra.mxu0 0.0
        %1397 = vmatprep.subr.mxu0 0.0
        %1398 = vmatpush1.msra.mxu0 0.0
        %1399 = vmatprep.subr.mxu0 0.0
        %1400 = vmatpush1.msra.mxu0 0.0
        %1401 = vmatprep.subr.mxu0 0.0
        %1402 = vmatpush1.msra.mxu0 0.0
        %1403 = vmatprep.subr.mxu0 0.0
        %1404 = vmatpush1.msra.mxu0 0.0
        %1405 = vmatprep.subr.mxu0 0.0
        %1406 = vmatpush1.msra.mxu0 0.0
        %1407 = vmatprep.subr.mxu0 0.0
        %1408 = vmatpush1.msra.mxu0 0.0
        %1409 = vmatprep.subr.mxu0 0.0
        %1410 = vmatpush1.msra.mxu0 %v1377
        %1411 = vmatprep.subr.mxu0 0.0
        %1412 = vmatpush2.msra.mxu0 0.0
        %1413 = vmatprep.subr.mxu0 0.0
        %1414 = vmatpush2.msra.mxu0 0.0
        %1415 = vmatprep.subr.mxu0 0.0
        %1416 = vmatpush2.msra.mxu0 0.0
        %1417 = vmatprep.subr.mxu0 0.0
        %1418 = vmatpush2.msra.mxu0 0.0
        %1419 = vmatprep.subr.mxu0 0.0
        %1420 = vmatpush2.msra.mxu0 0.0
        %1421 = vmatprep.subr.mxu0 0.0
        %1422 = vmatpush2.msra.mxu0 0.0
        %1423 = vmatprep.subr.mxu0 0.0
        %1424 = vmatpush2.msra.mxu0 0.0
        %1425 = vmatprep.subr.mxu0 0.0
        %1426 = vmatpush2.msra.mxu0 0.0
        %1427 = vmatprep.subr.mxu0 0.0
        %1428 = vmatpush2.msra.mxu0 0.0
        %1429 = vmatprep.subr.mxu0 0.0
        %1430 = vmatpush2.msra.mxu0 0.0
        %1431 = vmatprep.subr.mxu0 0.0
        %1432 = vmatpush2.msra.mxu0 0.0
        %1433 = vmatprep.subr.mxu0 0.0
        %1434 = vmatpush2.msra.mxu0 0.0
        %1435 = vmatprep.subr.mxu0 0.0
        %1436 = vmatpush2.msra.mxu0 0.0
        %1437 = vmatprep.subr.mxu0 0.0
        %1438 = vmatpush2.msra.mxu0 0.0
        %1439 = vmatprep.subr.mxu0 0.0
        %1440 = vmatpush2.msra.mxu0 0.0
        %1441 = vmatprep.subr.mxu0 0.0
        %1442 = vmatpush2.msra.mxu0 0.0
        %1443 = vmatprep.mubr.f32.mxu0 0.0
        %1444 = vmatmul.mubr.f32.gmra.mxu0 %v1352
        %v1445 = vpop.f32.mrf.mxu0
        %v1446 = vadd.f32 %v1348, %v1445
        %v1447 = vpop.f32.mrf.mxu0
        %1448 = vmatprep.mubr.f32.mxu0 0.0
        %1449 = vmatmul.mubr.f32.gmra.mxu0 %v1355
        %v1450 = vpop.f32.mrf.mxu0
        %v1451 = vadd.f32 %v1348, %v1450
        %v1452 = vpop.f32.mrf.mxu0
        %1453 = vmatprep.mubr.f32.mxu0 0.0
        %1454 = vmatmul.mubr.f32.gmra.mxu0 %v1358
        %v1455 = vpop.f32.mrf.mxu0
        %v1456 = vadd.f32 %v1348, %v1455
        %v1457 = vpop.f32.mrf.mxu0
        %1458 = vmatprep.mubr.f32.mxu0 0.0
        %1459 = vmatmul.mubr.f32.gmra.mxu0 %v1361
        %v1460 = vpop.f32.mrf.mxu0
        %v1461 = vadd.f32 %v1348, %v1460
        %v1462 = vpop.f32.mrf.mxu0
        %1463 = vmatprep.mubr.f32.mxu0 0.0
        %1464 = vmatmul.mubr.f32.gmra.mxu0 %v1364
        %v1465 = vpop.f32.mrf.mxu0
        %v1466 = vadd.f32 %v1348, %v1465
        %v1467 = vpop.f32.mrf.mxu0
        %1468 = vmatprep.mubr.f32.mxu0 0.0
        %1469 = vmatmul.mubr.f32.gmra.mxu0 %v1367
        %v1470 = vpop.f32.mrf.mxu0
        %v1471 = vadd.f32 %v1348, %v1470
        %v1472 = vpop.f32.mrf.mxu0
        %1473 = vmatprep.mubr.f32.mxu0 0.0
        %1474 = vmatmul.mubr.f32.gmra.mxu0 %v1370
        %v1475 = vpop.f32.mrf.mxu0
        %v1476 = vadd.f32 %v1348, %v1475
        %v1477 = vpop.f32.mrf.mxu0
        %1478 = vmatprep.mubr.f32.mxu0 0.0
        %1479 = vmatmul.mubr.f32.gmra.mxu0 %v1373
        %v1480 = vpop.f32.mrf.mxu0
        %v1481 = vadd.f32 %v1348, %v1480
        %v1482 = vpop.f32.mrf.mxu0
        %1483 = vdwg.mxu0
        %v1484 = vmax.f32 %v1446, 0.0
        %v1485 = vmax.f32 %v1451, 0.0
        %v1486 = vmax.f32 %v1456, 0.0
        %v1487 = vmax.f32 %v1461, 0.0
        %v1488 = vmax.f32 %v1466, 0.0
        %v1489 = vmax.f32 %v1471, 0.0
        %v1490 = vmax.f32 %v1476, 0.0
        %v1491 = vmax.f32 %v1481, 0.0
        %v1492 = vld [vmem:[#allocation4] sm:$0x1]
        %v1494 = vlaneseq
        %v1495 = vshrl.u32 %v1494, 7
        %v1496 = vsub.s32 0, %v1495
        %v1497 = vrot.slane %v1492, %v1496
        %v1499 = vmul.f32 %v1484, %v1497
        %v1500 = vmul.f32 %v1485, %v1497
        %v1501 = vmul.f32 %v1486, %v1497
        %v1502 = vmul.f32 %v1487, %v1497
        %v1503 = vmul.f32 %v1488, %v1497
        %v1504 = vmul.f32 %v1489, %v1497
        %v1505 = vmul.f32 %v1490, %v1497
        %v1506 = vmul.f32 %v1491, %v1497
        %v1507 = vld [vmem:[#allocation5] sm:$0x1]
        %v1509 = vlaneseq
        %v1510 = vshrl.u32 %v1509, 7
        %v1511 = vsub.s32 0, %v1510
        %v1512 = vrot.slane %v1507, %v1511
        %v1514 = vadd.f32 %v1499, %v1512
        %v1515 = vadd.f32 %v1500, %v1512
        %v1516 = vadd.f32 %v1501, %v1512
        %v1517 = vadd.f32 %v1502, %v1512
        %v1518 = vadd.f32 %v1503, %v1512
        %v1519 = vadd.f32 %v1504, %v1512
        %v1520 = vadd.f32 %v1505, %v1512
        %v1521 = vadd.f32 %v1506, %v1512
        %1522 = vst.msk [vmem:[#allocation2 + $0x3] sm:$0xff] %vm1032, %v1514
        %1523 = vst.msk [vmem:[#allocation2 + $0xb] sm:$0xff] %vm1032, %v1515
        %1524 = vst.msk [vmem:[#allocation2 + $0x13] sm:$0xff] %vm1032, %v1516
        %1525 = vst.msk [vmem:[#allocation2 + $0x1b] sm:$0xff] %vm1032, %v1517
        %1526 = vst.msk [vmem:[#allocation2 + $0x23] sm:$0xff] %vm1032, %v1518
        %1527 = vst.msk [vmem:[#allocation2 + $0x2b] sm:$0xff] %vm1032, %v1519
        %1528 = vst.msk [vmem:[#allocation2 + $0x33] sm:$0xff] %vm1032, %v1520
        %1529 = vst.msk [vmem:[#allocation2 + $0x3b] sm:$0xff] %vm1032, %v1521
        %v1530 = vld [vmem:[#allocation2] sm:$0xff]
        %v1531 = vld [vmem:[#allocation2 + $0x8] sm:$0xff]
        %v1532 = vld [vmem:[#allocation2 + $0x10] sm:$0xff]
        %v1533 = vld [vmem:[#allocation2 + $0x18] sm:$0xff]
        %v1534 = vld [vmem:[#allocation2 + $0x20] sm:$0xff]
        %v1535 = vld [vmem:[#allocation2 + $0x28] sm:$0xff]
        %v1536 = vld [vmem:[#allocation2 + $0x30] sm:$0xff]
        %v1537 = vld [vmem:[#allocation2 + $0x38] sm:$0xff]
        %v1538 = vld [vmem:[#allocation2 + $0x1] sm:$0xff]
        %v1539 = vld [vmem:[#allocation2 + $0x9] sm:$0xff]
        %v1540 = vld [vmem:[#allocation2 + $0x11] sm:$0xff]
        %v1541 = vld [vmem:[#allocation2 + $0x19] sm:$0xff]
        %v1542 = vld [vmem:[#allocation2 + $0x21] sm:$0xff]
        %v1543 = vld [vmem:[#allocation2 + $0x29] sm:$0xff]
        %v1544 = vld [vmem:[#allocation2 + $0x31] sm:$0xff]
        %v1545 = vld [vmem:[#allocation2 + $0x39] sm:$0xff]
        %v1546 = vld [vmem:[#allocation2 + $0x2] sm:$0xff]
        %v1547 = vld [vmem:[#allocation2 + $0xa] sm:$0xff]
        %v1548 = vld [vmem:[#allocation2 + $0x12] sm:$0xff]
        %v1549 = vld [vmem:[#allocation2 + $0x1a] sm:$0xff]
        %v1550 = vld [vmem:[#allocation2 + $0x22] sm:$0xff]
        %v1551 = vld [vmem:[#allocation2 + $0x2a] sm:$0xff]
        %v1552 = vld [vmem:[#allocation2 + $0x32] sm:$0xff]
        %v1553 = vld [vmem:[#allocation2 + $0x3a] sm:$0xff]
        %v1554 = vld [vmem:[#allocation2 + $0x3] sm:$0xff]
        %v1555 = vld [vmem:[#allocation2 + $0xb] sm:$0xff]
        %v1556 = vld [vmem:[#allocation2 + $0x13] sm:$0xff]
        %v1557 = vld [vmem:[#allocation2 + $0x1b] sm:$0xff]
        %v1558 = vld [vmem:[#allocation2 + $0x23] sm:$0xff]
        %v1559 = vld [vmem:[#allocation2 + $0x2b] sm:$0xff]
        %v1560 = vld [vmem:[#allocation2 + $0x33] sm:$0xff]
        %v1561 = vld [vmem:[#allocation2 + $0x3b] sm:$0xff]
        %v1562 = vld [vmem:[#allocation2 + $0x4] sm:$0xff]
        %v1563 = vld [vmem:[#allocation2 + $0xc] sm:$0xff]
        %v1564 = vld [vmem:[#allocation2 + $0x14] sm:$0xff]
        %v1565 = vld [vmem:[#allocation2 + $0x1c] sm:$0xff]
        %v1566 = vld [vmem:[#allocation2 + $0x24] sm:$0xff]
        %v1567 = vld [vmem:[#allocation2 + $0x2c] sm:$0xff]
        %v1568 = vld [vmem:[#allocation2 + $0x34] sm:$0xff]
        %v1569 = vld [vmem:[#allocation2 + $0x3c] sm:$0xff]
        %v1570 = vld [vmem:[#allocation2 + $0x5] sm:$0xff]
        %v1571 = vld [vmem:[#allocation2 + $0xd] sm:$0xff]
        %v1572 = vld [vmem:[#allocation2 + $0x15] sm:$0xff]
        %v1573 = vld [vmem:[#allocation2 + $0x1d] sm:$0xff]
        %v1574 = vld [vmem:[#allocation2 + $0x25] sm:$0xff]
        %v1575 = vld [vmem:[#allocation2 + $0x2d] sm:$0xff]
        %v1576 = vld [vmem:[#allocation2 + $0x35] sm:$0xff]
        %v1577 = vld [vmem:[#allocation2 + $0x3d] sm:$0xff]
        %v1578 = vld [vmem:[#allocation2 + $0x6] sm:$0xff]
        %v1579 = vld [vmem:[#allocation2 + $0xe] sm:$0xff]
        %v1580 = vld [vmem:[#allocation2 + $0x16] sm:$0xff]
        %v1581 = vld [vmem:[#allocation2 + $0x1e] sm:$0xff]
        %v1582 = vld [vmem:[#allocation2 + $0x26] sm:$0xff]
        %v1583 = vld [vmem:[#allocation2 + $0x2e] sm:$0xff]
        %v1584 = vld [vmem:[#allocation2 + $0x36] sm:$0xff]
        %v1585 = vld [vmem:[#allocation2 + $0x3e] sm:$0xff]
        %1594 = vrot.lane.b32.xlu0 %v1538, 1
        %v1595 = vpop.permute.xlu0 %1594
        %1596 = vrot.lane.b32.xlu0 %v1539, 1
        %v1597 = vpop.permute.xlu0 %1596
        %1598 = vrot.lane.b32.xlu0 %v1540, 1
        %v1599 = vpop.permute.xlu0 %1598
        %1600 = vrot.lane.b32.xlu0 %v1541, 1
        %v1601 = vpop.permute.xlu0 %1600
        %1602 = vrot.lane.b32.xlu0 %v1542, 1
        %v1603 = vpop.permute.xlu0 %1602
        %1604 = vrot.lane.b32.xlu0 %v1543, 1
        %v1605 = vpop.permute.xlu0 %1604
        %1606 = vrot.lane.b32.xlu0 %v1544, 1
        %v1607 = vpop.permute.xlu0 %1606
        %1608 = vrot.lane.b32.xlu0 %v1545, 1
        %v1609 = vpop.permute.xlu0 %1608
        %1626 = vrot.lane.b32.xlu0 %v1546, 2
        %v1627 = vpop.permute.xlu0 %1626
        %1628 = vrot.lane.b32.xlu0 %v1547, 2
        %v1629 = vpop.permute.xlu0 %1628
        %1630 = vrot.lane.b32.xlu0 %v1548, 2
        %v1631 = vpop.permute.xlu0 %1630
        %1632 = vrot.lane.b32.xlu0 %v1549, 2
        %v1633 = vpop.permute.xlu0 %1632
        %1634 = vrot.lane.b32.xlu0 %v1550, 2
        %v1635 = vpop.permute.xlu0 %1634
        %1636 = vrot.lane.b32.xlu0 %v1551, 2
        %v1637 = vpop.permute.xlu0 %1636
        %1638 = vrot.lane.b32.xlu0 %v1552, 2
        %v1639 = vpop.permute.xlu0 %1638
        %1640 = vrot.lane.b32.xlu0 %v1553, 2
        %v1641 = vpop.permute.xlu0 %1640
        %1658 = vrot.lane.b32.xlu0 %v1554, 3
        %v1659 = vpop.permute.xlu0 %1658
        %1660 = vrot.lane.b32.xlu0 %v1555, 3
        %v1661 = vpop.permute.xlu0 %1660
        %1662 = vrot.lane.b32.xlu0 %v1556, 3
        %v1663 = vpop.permute.xlu0 %1662
        %1664 = vrot.lane.b32.xlu0 %v1557, 3
        %v1665 = vpop.permute.xlu0 %1664
        %1666 = vrot.lane.b32.xlu0 %v1558, 3
        %v1667 = vpop.permute.xlu0 %1666
        %1668 = vrot.lane.b32.xlu0 %v1559, 3
        %v1669 = vpop.permute.xlu0 %1668
        %1670 = vrot.lane.b32.xlu0 %v1560, 3
        %v1671 = vpop.permute.xlu0 %1670
        %1672 = vrot.lane.b32.xlu0 %v1561, 3
        %v1673 = vpop.permute.xlu0 %1672
        %1690 = vrot.lane.b32.xlu0 %v1562, 4
        %v1691 = vpop.permute.xlu0 %1690
        %1692 = vrot.lane.b32.xlu0 %v1563, 4
        %v1693 = vpop.permute.xlu0 %1692
        %1694 = vrot.lane.b32.xlu0 %v1564, 4
        %v1695 = vpop.permute.xlu0 %1694
        %1696 = vrot.lane.b32.xlu0 %v1565, 4
        %v1697 = vpop.permute.xlu0 %1696
        %1698 = vrot.lane.b32.xlu0 %v1566, 4
        %v1699 = vpop.permute.xlu0 %1698
        %1700 = vrot.lane.b32.xlu0 %v1567, 4
        %v1701 = vpop.permute.xlu0 %1700
        %1702 = vrot.lane.b32.xlu0 %v1568, 4
        %v1703 = vpop.permute.xlu0 %1702
        %1704 = vrot.lane.b32.xlu0 %v1569, 4
        %v1705 = vpop.permute.xlu0 %1704
        %1722 = vrot.lane.b32.xlu0 %v1570, 5
        %v1723 = vpop.permute.xlu0 %1722
        %1724 = vrot.lane.b32.xlu0 %v1571, 5
        %v1725 = vpop.permute.xlu0 %1724
        %1726 = vrot.lane.b32.xlu0 %v1572, 5
        %v1727 = vpop.permute.xlu0 %1726
        %1728 = vrot.lane.b32.xlu0 %v1573, 5
        %v1729 = vpop.permute.xlu0 %1728
        %1730 = vrot.lane.b32.xlu0 %v1574, 5
        %v1731 = vpop.permute.xlu0 %1730
        %1732 = vrot.lane.b32.xlu0 %v1575, 5
        %v1733 = vpop.permute.xlu0 %1732
        %1734 = vrot.lane.b32.xlu0 %v1576, 5
        %v1735 = vpop.permute.xlu0 %1734
        %1736 = vrot.lane.b32.xlu0 %v1577, 5
        %v1737 = vpop.permute.xlu0 %1736
        %1754 = vrot.lane.b32.xlu0 %v1578, 6
        %v1755 = vpop.permute.xlu0 %1754
        %1756 = vrot.lane.b32.xlu0 %v1579, 6
        %v1757 = vpop.permute.xlu0 %1756
        %1758 = vrot.lane.b32.xlu0 %v1580, 6
        %v1759 = vpop.permute.xlu0 %1758
        %1760 = vrot.lane.b32.xlu0 %v1581, 6
        %v1761 = vpop.permute.xlu0 %1760
        %1762 = vrot.lane.b32.xlu0 %v1582, 6
        %v1763 = vpop.permute.xlu0 %1762
        %1764 = vrot.lane.b32.xlu0 %v1583, 6
        %v1765 = vpop.permute.xlu0 %1764
        %1766 = vrot.lane.b32.xlu0 %v1584, 6
        %v1767 = vpop.permute.xlu0 %1766
        %1768 = vrot.lane.b32.xlu0 %v1585, 6
        %v1769 = vpop.permute.xlu0 %1768
        %v1778 = vsel %vm1032, %v1530, %v1595
        %v1779 = vsel %vm1032, %v1531, %v1597
        %v1780 = vsel %vm1032, %v1532, %v1599
        %v1781 = vsel %vm1032, %v1533, %v1601
        %v1782 = vsel %vm1032, %v1534, %v1603
        %v1783 = vsel %vm1032, %v1535, %v1605
        %v1784 = vsel %vm1032, %v1536, %v1607
        %v1785 = vsel %vm1032, %v1537, %v1609
        %v1786 = vsel %vm1297, %v1778, %v1627
        %v1787 = vsel %vm1297, %v1779, %v1629
        %v1788 = vsel %vm1297, %v1780, %v1631
        %v1789 = vsel %vm1297, %v1781, %v1633
        %v1790 = vsel %vm1297, %v1782, %v1635
        %v1791 = vsel %vm1297, %v1783, %v1637
        %v1792 = vsel %vm1297, %v1784, %v1639
        %v1793 = vsel %vm1297, %v1785, %v1641
        %v1794 = vsel %vm1306, %v1786, %v1659
        %v1795 = vsel %vm1306, %v1787, %v1661
        %v1796 = vsel %vm1306, %v1788, %v1663
        %v1797 = vsel %vm1306, %v1789, %v1665
        %v1798 = vsel %vm1306, %v1790, %v1667
        %v1799 = vsel %vm1306, %v1791, %v1669
        %v1800 = vsel %vm1306, %v1792, %v1671
        %v1801 = vsel %vm1306, %v1793, %v1673
        %v1802 = vsel %vm1315, %v1794, %v1691
        %v1803 = vsel %vm1315, %v1795, %v1693
        %v1804 = vsel %vm1315, %v1796, %v1695
        %v1805 = vsel %vm1315, %v1797, %v1697
        %v1806 = vsel %vm1315, %v1798, %v1699
        %v1807 = vsel %vm1315, %v1799, %v1701
        %v1808 = vsel %vm1315, %v1800, %v1703
        %v1809 = vsel %vm1315, %v1801, %v1705
        %v1810 = vsel %vm1324, %v1802, %v1723
        %v1811 = vsel %vm1324, %v1803, %v1725
        %v1812 = vsel %vm1324, %v1804, %v1727
        %v1813 = vsel %vm1324, %v1805, %v1729
        %v1814 = vsel %vm1324, %v1806, %v1731
        %v1815 = vsel %vm1324, %v1807, %v1733
        %v1816 = vsel %vm1324, %v1808, %v1735
        %v1817 = vsel %vm1324, %v1809, %v1737
        %v1818 = vsel %vm1333, %v1810, %v1755
        %v1819 = vsel %vm1333, %v1811, %v1757
        %v1820 = vsel %vm1333, %v1812, %v1759
        %v1821 = vsel %vm1333, %v1813, %v1761
        %v1822 = vsel %vm1333, %v1814, %v1763
        %v1823 = vsel %vm1333, %v1815, %v1765
        %v1824 = vsel %vm1333, %v1816, %v1767
        %v1825 = vsel %vm1333, %v1817, %v1769
        %v1826 = vld [vmem:[%s11] sm:$0x7f]
        %v1827 = vld [vmem:[%s13] sm:$0x1]
        %v1829 = vlaneseq
        %v1830 = vshrl.u32 %v1829, 7
        %v1831 = vsub.s32 0, %v1830
        %v1832 = vrot.slane %v1827, %v1831
        %v1835 = vsel %vm1350, %v1818, 0
        %v1838 = vsel %vm1350, %v1819, 0
        %v1841 = vsel %vm1350, %v1820, 0
        %v1844 = vsel %vm1350, %v1821, 0
        %v1847 = vsel %vm1350, %v1822, 0
        %v1850 = vsel %vm1350, %v1823, 0
        %v1853 = vsel %vm1350, %v1824, 0
        %v1856 = vsel %vm1350, %v1825, 0
        %v1859 = vsel %vm1375, %v1826, 0
        %1861 = vmatprep.subr.mxu0 0.0
        %1862 = vmatpush1.msra.mxu0 0.0
        %1863 = vmatprep.subr.mxu0 0.0
        %1864 = vmatpush1.msra.mxu0 0.0
        %1865 = vmatprep.subr.mxu0 0.0
        %1866 = vmatpush1.msra.mxu0 0.0
        %1867 = vmatprep.subr.mxu0 0.0
        %1868 = vmatpush1.msra.mxu0 0.0
        %1869 = vmatprep.subr.mxu0 0.0
        %1870 = vmatpush1.msra.mxu0 0.0
        %1871 = vmatprep.subr.mxu0 0.0
        %1872 = vmatpush1.msra.mxu0 0.0
        %1873 = vmatprep.subr.mxu0 0.0
        %1874 = vmatpush1.msra.mxu0 0.0
        %1875 = vmatprep.subr.mxu0 0.0
        %1876 = vmatpush1.msra.mxu0 0.0
        %1877 = vmatprep.subr.mxu0 0.0
        %1878 = vmatpush1.msra.mxu0 0.0
        %1879 = vmatprep.subr.mxu0 0.0
        %1880 = vmatpush1.msra.mxu0 0.0
        %1881 = vmatprep.subr.mxu0 0.0
        %1882 = vmatpush1.msra.mxu0 0.0
        %1883 = vmatprep.subr.mxu0 0.0
        %1884 = vmatpush1.msra.mxu0 0.0
        %1885 = vmatprep.subr.mxu0 0.0
        %1886 = vmatpush1.msra.mxu0 0.0
        %1887 = vmatprep.subr.mxu0 0.0
        %1888 = vmatpush1.msra.mxu0 0.0
        %1889 = vmatprep.subr.mxu0 0.0
        %1890 = vmatpush1.msra.mxu0 0.0
        %1891 = vmatprep.subr.mxu0 0.0
        %1892 = vmatpush1.msra.mxu0 %v1859
        %1893 = vmatprep.subr.mxu0 0.0
        %1894 = vmatpush2.msra.mxu0 0.0
        %1895 = vmatprep.subr.mxu0 0.0
        %1896 = vmatpush2.msra.mxu0 0.0
        %1897 = vmatprep.subr.mxu0 0.0
        %1898 = vmatpush2.msra.mxu0 0.0
        %1899 = vmatprep.subr.mxu0 0.0
        %1900 = vmatpush2.msra.mxu0 0.0
        %1901 = vmatprep.subr.mxu0 0.0
        %1902 = vmatpush2.msra.mxu0 0.0
        %1903 = vmatprep.subr.mxu0 0.0
        %1904 = vmatpush2.msra.mxu0 0.0
        %1905 = vmatprep.subr.mxu0 0.0
        %1906 = vmatpush2.msra.mxu0 0.0
        %1907 = vmatprep.subr.mxu0 0.0
        %1908 = vmatpush2.msra.mxu0 0.0
        %1909 = vmatprep.subr.mxu0 0.0
        %1910 = vmatpush2.msra.mxu0 0.0
        %1911 = vmatprep.subr.mxu0 0.0
        %1912 = vmatpush2.msra.mxu0 0.0
        %1913 = vmatprep.subr.mxu0 0.0
        %1914 = vmatpush2.msra.mxu0 0.0
        %1915 = vmatprep.subr.mxu0 0.0
        %1916 = vmatpush2.msra.mxu0 0.0
        %1917 = vmatprep.subr.mxu0 0.0
        %1918 = vmatpush2.msra.mxu0 0.0
        %1919 = vmatprep.subr.mxu0 0.0
        %1920 = vmatpush2.msra.mxu0 0.0
        %1921 = vmatprep.subr.mxu0 0.0
        %1922 = vmatpush2.msra.mxu0 0.0
        %1923 = vmatprep.subr.mxu0 0.0
        %1924 = vmatpush2.msra.mxu0 0.0
        %1925 = vmatprep.mubr.f32.mxu0 0.0
        %1926 = vmatmul.mubr.f32.gmra.mxu0 %v1835
        %v1927 = vpop.f32.mrf.mxu0
        %v1928 = vadd.f32 %v1832, %v1927
        %v1929 = vpop.f32.mrf.mxu0
        %1930 = vmatprep.mubr.f32.mxu0 0.0
        %1931 = vmatmul.mubr.f32.gmra.mxu0 %v1838
        %v1932 = vpop.f32.mrf.mxu0
        %v1933 = vadd.f32 %v1832, %v1932
        %v1934 = vpop.f32.mrf.mxu0
        %1935 = vmatprep.mubr.f32.mxu0 0.0
        %1936 = vmatmul.mubr.f32.gmra.mxu0 %v1841
        %v1937 = vpop.f32.mrf.mxu0
        %v1938 = vadd.f32 %v1832, %v1937
        %v1939 = vpop.f32.mrf.mxu0
        %1940 = vmatprep.mubr.f32.mxu0 0.0
        %1941 = vmatmul.mubr.f32.gmra.mxu0 %v1844
        %v1942 = vpop.f32.mrf.mxu0
        %v1943 = vadd.f32 %v1832, %v1942
        %v1944 = vpop.f32.mrf.mxu0
        %1945 = vmatprep.mubr.f32.mxu0 0.0
        %1946 = vmatmul.mubr.f32.gmra.mxu0 %v1847
        %v1947 = vpop.f32.mrf.mxu0
        %v1948 = vadd.f32 %v1832, %v1947
        %v1949 = vpop.f32.mrf.mxu0
        %1950 = vmatprep.mubr.f32.mxu0 0.0
        %1951 = vmatmul.mubr.f32.gmra.mxu0 %v1850
        %v1952 = vpop.f32.mrf.mxu0
        %v1953 = vadd.f32 %v1832, %v1952
        %v1954 = vpop.f32.mrf.mxu0
        %1955 = vmatprep.mubr.f32.mxu0 0.0
        %1956 = vmatmul.mubr.f32.gmra.mxu0 %v1853
        %v1957 = vpop.f32.mrf.mxu0
        %v1958 = vadd.f32 %v1832, %v1957
        %v1959 = vpop.f32.mrf.mxu0
        %1960 = vmatprep.mubr.f32.mxu0 0.0
        %1961 = vmatmul.mubr.f32.gmra.mxu0 %v1856
        %v1962 = vpop.f32.mrf.mxu0
        %v1963 = vadd.f32 %v1832, %v1962
        %v1964 = vpop.f32.mrf.mxu0
        %1965 = vdwg.mxu0
        %v1966 = vmax.f32 %v1928, 0.0
        %v1967 = vmax.f32 %v1933, 0.0
        %v1968 = vmax.f32 %v1938, 0.0
        %v1969 = vmax.f32 %v1943, 0.0
        %v1970 = vmax.f32 %v1948, 0.0
        %v1971 = vmax.f32 %v1953, 0.0
        %v1972 = vmax.f32 %v1958, 0.0
        %v1973 = vmax.f32 %v1963, 0.0
        %v1974 = vld [vmem:[%s15] sm:$0x1]
        %v1976 = vlaneseq
        %v1977 = vshrl.u32 %v1976, 7
        %v1978 = vsub.s32 0, %v1977
        %v1979 = vrot.slane %v1974, %v1978
        %v1981 = vmul.f32 %v1966, %v1979
        %v1982 = vmul.f32 %v1967, %v1979
        %v1983 = vmul.f32 %v1968, %v1979
        %v1984 = vmul.f32 %v1969, %v1979
        %v1985 = vmul.f32 %v1970, %v1979
        %v1986 = vmul.f32 %v1971, %v1979
        %v1987 = vmul.f32 %v1972, %v1979
        %v1988 = vmul.f32 %v1973, %v1979
        %v1989 = vld [vmem:[%s17] sm:$0x1]
        %v1991 = vlaneseq
        %v1992 = vshrl.u32 %v1991, 7
        %v1993 = vsub.s32 0, %v1992
        %v1994 = vrot.slane %v1989, %v1993
        %v1996 = vadd.f32 %v1981, %v1994
        %v1997 = vadd.f32 %v1982, %v1994
        %v1998 = vadd.f32 %v1983, %v1994
        %v1999 = vadd.f32 %v1984, %v1994
        %v2000 = vadd.f32 %v1985, %v1994
        %v2001 = vadd.f32 %v1986, %v1994
        %v2002 = vadd.f32 %v1987, %v1994
        %v2003 = vadd.f32 %v1988, %v1994
        %2004 = vst.msk [vmem:[#allocation2] sm:$0x7] %vm1029, 0.0
        %2005 = vst.msk [vmem:[#allocation2 + $0x43] sm:$0x7] %vm1029, 0.0
        %vm2006 = vcmask 64512
        %2007 = vst.msk [vmem:[#allocation2 + $0x3] sm:$0xff] %vm2006, %v1996
        %2008 = vst.msk [vmem:[#allocation2 + $0xb] sm:$0xff] %vm2006, %v1997
        %2009 = vst.msk [vmem:[#allocation2 + $0x13] sm:$0xff] %vm2006, %v1998
        %2010 = vst.msk [vmem:[#allocation2 + $0x1b] sm:$0xff] %vm2006, %v1999
        %2011 = vst.msk [vmem:[#allocation2 + $0x23] sm:$0xff] %vm2006, %v2000
        %2012 = vst.msk [vmem:[#allocation2 + $0x2b] sm:$0xff] %vm2006, %v2001
        %2013 = vst.msk [vmem:[#allocation2 + $0x33] sm:$0xff] %vm2006, %v2002
        %2014 = vst.msk [vmem:[#allocation2 + $0x3b] sm:$0xff] %vm2006, %v2003
        %v2015 = vld [vmem:[#allocation2] sm:$0xff]
        %v2016 = vld [vmem:[#allocation2 + $0x8] sm:$0xff]
        %v2017 = vld [vmem:[#allocation2 + $0x10] sm:$0xff]
        %v2018 = vld [vmem:[#allocation2 + $0x18] sm:$0xff]
        %v2019 = vld [vmem:[#allocation2 + $0x20] sm:$0xff]
        %v2020 = vld [vmem:[#allocation2 + $0x28] sm:$0xff]
        %v2021 = vld [vmem:[#allocation2 + $0x30] sm:$0xff]
        %v2022 = vld [vmem:[#allocation2 + $0x38] sm:$0xff]
        %v2023 = vld [vmem:[#allocation2 + $0x1] sm:$0xff]
        %v2024 = vld [vmem:[#allocation2 + $0x9] sm:$0xff]
        %v2025 = vld [vmem:[#allocation2 + $0x11] sm:$0xff]
        %v2026 = vld [vmem:[#allocation2 + $0x19] sm:$0xff]
        %v2027 = vld [vmem:[#allocation2 + $0x21] sm:$0xff]
        %v2028 = vld [vmem:[#allocation2 + $0x29] sm:$0xff]
        %v2029 = vld [vmem:[#allocation2 + $0x31] sm:$0xff]
        %v2030 = vld [vmem:[#allocation2 + $0x39] sm:$0xff]
        %v2031 = vld [vmem:[#allocation2 + $0x2] sm:$0xff]
        %v2032 = vld [vmem:[#allocation2 + $0xa] sm:$0xff]
        %v2033 = vld [vmem:[#allocation2 + $0x12] sm:$0xff]
        %v2034 = vld [vmem:[#allocation2 + $0x1a] sm:$0xff]
        %v2035 = vld [vmem:[#allocation2 + $0x22] sm:$0xff]
        %v2036 = vld [vmem:[#allocation2 + $0x2a] sm:$0xff]
        %v2037 = vld [vmem:[#allocation2 + $0x32] sm:$0xff]
        %v2038 = vld [vmem:[#allocation2 + $0x3a] sm:$0xff]
        %v2039 = vld [vmem:[#allocation2 + $0x3] sm:$0xff]
        %v2040 = vld [vmem:[#allocation2 + $0xb] sm:$0xff]
        %v2041 = vld [vmem:[#allocation2 + $0x13] sm:$0xff]
        %v2042 = vld [vmem:[#allocation2 + $0x1b] sm:$0xff]
        %v2043 = vld [vmem:[#allocation2 + $0x23] sm:$0xff]
        %v2044 = vld [vmem:[#allocation2 + $0x2b] sm:$0xff]
        %v2045 = vld [vmem:[#allocation2 + $0x33] sm:$0xff]
        %v2046 = vld [vmem:[#allocation2 + $0x3b] sm:$0xff]
        %v2047 = vld [vmem:[#allocation2 + $0x4] sm:$0xff]
        %v2048 = vld [vmem:[#allocation2 + $0xc] sm:$0xff]
        %v2049 = vld [vmem:[#allocation2 + $0x14] sm:$0xff]
        %v2050 = vld [vmem:[#allocation2 + $0x1c] sm:$0xff]
        %v2051 = vld [vmem:[#allocation2 + $0x24] sm:$0xff]
        %v2052 = vld [vmem:[#allocation2 + $0x2c] sm:$0xff]
        %v2053 = vld [vmem:[#allocation2 + $0x34] sm:$0xff]
        %v2054 = vld [vmem:[#allocation2 + $0x3c] sm:$0xff]
        %v2055 = vld [vmem:[#allocation2 + $0x5] sm:$0xff]
        %v2056 = vld [vmem:[#allocation2 + $0xd] sm:$0xff]
        %v2057 = vld [vmem:[#allocation2 + $0x15] sm:$0xff]
        %v2058 = vld [vmem:[#allocation2 + $0x1d] sm:$0xff]
        %v2059 = vld [vmem:[#allocation2 + $0x25] sm:$0xff]
        %v2060 = vld [vmem:[#allocation2 + $0x2d] sm:$0xff]
        %v2061 = vld [vmem:[#allocation2 + $0x35] sm:$0xff]
        %v2062 = vld [vmem:[#allocation2 + $0x3d] sm:$0xff]
        %v2063 = vld [vmem:[#allocation2 + $0x6] sm:$0xff]
        %v2064 = vld [vmem:[#allocation2 + $0xe] sm:$0xff]
        %v2065 = vld [vmem:[#allocation2 + $0x16] sm:$0xff]
        %v2066 = vld [vmem:[#allocation2 + $0x1e] sm:$0xff]
        %v2067 = vld [vmem:[#allocation2 + $0x26] sm:$0xff]
        %v2068 = vld [vmem:[#allocation2 + $0x2e] sm:$0xff]
        %v2069 = vld [vmem:[#allocation2 + $0x36] sm:$0xff]
        %v2070 = vld [vmem:[#allocation2 + $0x3e] sm:$0xff]
        %2079 = vrot.lane.b32.xlu0 %v2023, 8
        %v2080 = vpop.permute.xlu0 %2079
        %2081 = vrot.lane.b32.xlu0 %v2024, 8
        %v2082 = vpop.permute.xlu0 %2081
        %2083 = vrot.lane.b32.xlu0 %v2025, 8
        %v2084 = vpop.permute.xlu0 %2083
        %2085 = vrot.lane.b32.xlu0 %v2026, 8
        %v2086 = vpop.permute.xlu0 %2085
        %2087 = vrot.lane.b32.xlu0 %v2027, 8
        %v2088 = vpop.permute.xlu0 %2087
        %2089 = vrot.lane.b32.xlu0 %v2028, 8
        %v2090 = vpop.permute.xlu0 %2089
        %2091 = vrot.lane.b32.xlu0 %v2029, 8
        %v2092 = vpop.permute.xlu0 %2091
        %2093 = vrot.lane.b32.xlu0 %v2030, 8
        %v2094 = vpop.permute.xlu0 %2093
        %2111 = vrot.lane.b32.xlu0 %v2031, 16
        %v2112 = vpop.permute.xlu0 %2111
        %2113 = vrot.lane.b32.xlu0 %v2032, 16
        %v2114 = vpop.permute.xlu0 %2113
        %2115 = vrot.lane.b32.xlu0 %v2033, 16
        %v2116 = vpop.permute.xlu0 %2115
        %2117 = vrot.lane.b32.xlu0 %v2034, 16
        %v2118 = vpop.permute.xlu0 %2117
        %2119 = vrot.lane.b32.xlu0 %v2035, 16
        %v2120 = vpop.permute.xlu0 %2119
        %2121 = vrot.lane.b32.xlu0 %v2036, 16
        %v2122 = vpop.permute.xlu0 %2121
        %2123 = vrot.lane.b32.xlu0 %v2037, 16
        %v2124 = vpop.permute.xlu0 %2123
        %2125 = vrot.lane.b32.xlu0 %v2038, 16
        %v2126 = vpop.permute.xlu0 %2125
        %2143 = vrot.lane.b32.xlu0 %v2039, 24
        %v2144 = vpop.permute.xlu0 %2143
        %2145 = vrot.lane.b32.xlu0 %v2040, 24
        %v2146 = vpop.permute.xlu0 %2145
        %2147 = vrot.lane.b32.xlu0 %v2041, 24
        %v2148 = vpop.permute.xlu0 %2147
        %2149 = vrot.lane.b32.xlu0 %v2042, 24
        %v2150 = vpop.permute.xlu0 %2149
        %2151 = vrot.lane.b32.xlu0 %v2043, 24
        %v2152 = vpop.permute.xlu0 %2151
        %2153 = vrot.lane.b32.xlu0 %v2044, 24
        %v2154 = vpop.permute.xlu0 %2153
        %2155 = vrot.lane.b32.xlu0 %v2045, 24
        %v2156 = vpop.permute.xlu0 %2155
        %2157 = vrot.lane.b32.xlu0 %v2046, 24
        %v2158 = vpop.permute.xlu0 %2157
        %2175 = vrot.lane.b32.xlu0 %v2047, 32
        %v2176 = vpop.permute.xlu0 %2175
        %2177 = vrot.lane.b32.xlu0 %v2048, 32
        %v2178 = vpop.permute.xlu0 %2177
        %2179 = vrot.lane.b32.xlu0 %v2049, 32
        %v2180 = vpop.permute.xlu0 %2179
        %2181 = vrot.lane.b32.xlu0 %v2050, 32
        %v2182 = vpop.permute.xlu0 %2181
        %2183 = vrot.lane.b32.xlu0 %v2051, 32
        %v2184 = vpop.permute.xlu0 %2183
        %2185 = vrot.lane.b32.xlu0 %v2052, 32
        %v2186 = vpop.permute.xlu0 %2185
        %2187 = vrot.lane.b32.xlu0 %v2053, 32
        %v2188 = vpop.permute.xlu0 %2187
        %2189 = vrot.lane.b32.xlu0 %v2054, 32
        %v2190 = vpop.permute.xlu0 %2189
        %2207 = vrot.lane.b32.xlu0 %v2055, 40
        %v2208 = vpop.permute.xlu0 %2207
        %2209 = vrot.lane.b32.xlu0 %v2056, 40
        %v2210 = vpop.permute.xlu0 %2209
        %2211 = vrot.lane.b32.xlu0 %v2057, 40
        %v2212 = vpop.permute.xlu0 %2211
        %2213 = vrot.lane.b32.xlu0 %v2058, 40
        %v2214 = vpop.permute.xlu0 %2213
        %2215 = vrot.lane.b32.xlu0 %v2059, 40
        %v2216 = vpop.permute.xlu0 %2215
        %2217 = vrot.lane.b32.xlu0 %v2060, 40
        %v2218 = vpop.permute.xlu0 %2217
        %2219 = vrot.lane.b32.xlu0 %v2061, 40
        %v2220 = vpop.permute.xlu0 %2219
        %2221 = vrot.lane.b32.xlu0 %v2062, 40
        %v2222 = vpop.permute.xlu0 %2221
        %2239 = vrot.lane.b32.xlu0 %v2063, 48
        %v2240 = vpop.permute.xlu0 %2239
        %2241 = vrot.lane.b32.xlu0 %v2064, 48
        %v2242 = vpop.permute.xlu0 %2241
        %2243 = vrot.lane.b32.xlu0 %v2065, 48
        %v2244 = vpop.permute.xlu0 %2243
        %2245 = vrot.lane.b32.xlu0 %v2066, 48
        %v2246 = vpop.permute.xlu0 %2245
        %2247 = vrot.lane.b32.xlu0 %v2067, 48
        %v2248 = vpop.permute.xlu0 %2247
        %2249 = vrot.lane.b32.xlu0 %v2068, 48
        %v2250 = vpop.permute.xlu0 %2249
        %2251 = vrot.lane.b32.xlu0 %v2069, 48
        %v2252 = vpop.permute.xlu0 %2251
        %2253 = vrot.lane.b32.xlu0 %v2070, 48
        %v2254 = vpop.permute.xlu0 %2253
        %v2263 = vsel %vm2006, %v2015, %v2080
        %v2264 = vsel %vm2006, %v2016, %v2082
        %v2265 = vsel %vm2006, %v2017, %v2084
        %v2266 = vsel %vm2006, %v2018, %v2086
        %v2267 = vsel %vm2006, %v2019, %v2088
        %v2268 = vsel %vm2006, %v2020, %v2090
        %v2269 = vsel %vm2006, %v2021, %v2092
        %v2270 = vsel %vm2006, %v2022, %v2094
        %vm2271 = vcmask 130048
        %v2272 = vsel %vm2271, %v2263, %v2112
        %v2273 = vsel %vm2271, %v2264, %v2114
        %v2274 = vsel %vm2271, %v2265, %v2116
        %v2275 = vsel %vm2271, %v2266, %v2118
        %v2276 = vsel %vm2271, %v2267, %v2120
        %v2277 = vsel %vm2271, %v2268, %v2122
        %v2278 = vsel %vm2271, %v2269, %v2124
        %v2279 = vsel %vm2271, %v2270, %v2126
        %vm2280 = vcmask 195584
        %v2281 = vsel %vm2280, %v2272, %v2144
        %v2282 = vsel %vm2280, %v2273, %v2146
        %v2283 = vsel %vm2280, %v2274, %v2148
        %v2284 = vsel %vm2280, %v2275, %v2150
        %v2285 = vsel %vm2280, %v2276, %v2152
        %v2286 = vsel %vm2280, %v2277, %v2154
        %v2287 = vsel %vm2280, %v2278, %v2156
        %v2288 = vsel %vm2280, %v2279, %v2158
        %vm2289 = vcmask 261120
        %v2290 = vsel %vm2289, %v2281, %v2176
        %v2291 = vsel %vm2289, %v2282, %v2178
        %v2292 = vsel %vm2289, %v2283, %v2180
        %v2293 = vsel %vm2289, %v2284, %v2182
        %v2294 = vsel %vm2289, %v2285, %v2184
        %v2295 = vsel %vm2289, %v2286, %v2186
        %v2296 = vsel %vm2289, %v2287, %v2188
        %v2297 = vsel %vm2289, %v2288, %v2190
        %vm2298 = vcmask 326656
        %v2299 = vsel %vm2298, %v2290, %v2208
        %v2300 = vsel %vm2298, %v2291, %v2210
        %v2301 = vsel %vm2298, %v2292, %v2212
        %v2302 = vsel %vm2298, %v2293, %v2214
        %v2303 = vsel %vm2298, %v2294, %v2216
        %v2304 = vsel %vm2298, %v2295, %v2218
        %v2305 = vsel %vm2298, %v2296, %v2220
        %v2306 = vsel %vm2298, %v2297, %v2222
        %vm2307 = vcmask 392192
        %v2308 = vsel %vm2307, %v2299, %v2240
        %v2309 = vsel %vm2307, %v2300, %v2242
        %v2310 = vsel %vm2307, %v2301, %v2244
        %v2311 = vsel %vm2307, %v2302, %v2246
        %v2312 = vsel %vm2307, %v2303, %v2248
        %v2313 = vsel %vm2307, %v2304, %v2250
        %v2314 = vsel %vm2307, %v2305, %v2252
        %v2315 = vsel %vm2307, %v2306, %v2254
        %v2316 = vld [vmem:[%s19] sm:$0xff]
        %v2317 = vld [vmem:[%s19 + $0x8] sm:$0xff]
        %v2318 = vld [vmem:[%s19 + $0x10] sm:$0xff]
        %v2319 = vld [vmem:[%s19 + $0x18] sm:$0xff]
        %v2320 = vld [vmem:[%s19 + $0x20] sm:$0xff]
        %v2321 = vld [vmem:[%s19 + $0x28] sm:$0xff]
        %v2322 = vld [vmem:[%s19 + $0x30] sm:$0xff]
        %v2323 = vld [vmem:[%s21] sm:$0x1]
        %v2325 = vlaneseq
        %v2326 = vshrl.u32 %v2325, 7
        %v2327 = vsub.s32 0, %v2326
        %v2328 = vrot.slane %v2323, %v2327
        %vm2330 = vcmask 457728
        %v2332 = vsel %vm2330, %v2308, 0
        %v2335 = vsel %vm2330, %v2309, 0
        %v2338 = vsel %vm2330, %v2310, 0
        %v2341 = vsel %vm2330, %v2311, 0
        %v2344 = vsel %vm2330, %v2312, 0
        %v2347 = vsel %vm2330, %v2313, 0
        %v2350 = vsel %vm2330, %v2314, 0
        %v2353 = vsel %vm2330, %v2315, 0
        %2355 = vmatprep.subr.mxu0 0.0
        %2356 = vmatpush1.msra.mxu0 0.0
        %2357 = vmatprep.subr.mxu0 0.0
        %2358 = vmatpush1.msra.mxu0 0.0
        %2359 = vmatprep.subr.mxu0 0.0
        %2360 = vmatpush1.msra.mxu0 0.0
        %2361 = vmatprep.subr.mxu0 0.0
        %2362 = vmatpush1.msra.mxu0 0.0
        %2363 = vmatprep.subr.mxu0 0.0
        %2364 = vmatpush1.msra.mxu0 0.0
        %2365 = vmatprep.subr.mxu0 0.0
        %2366 = vmatpush1.msra.mxu0 0.0
        %2367 = vmatprep.subr.mxu0 0.0
        %2368 = vmatpush1.msra.mxu0 0.0
        %2369 = vmatprep.subr.mxu0 0.0
        %2370 = vmatpush1.msra.mxu0 0.0
        %2371 = vmatprep.subr.mxu0 0.0
        %2372 = vmatpush1.msra.mxu0 0.0
        %2373 = vmatprep.subr.mxu0 0.0
        %2374 = vmatpush1.msra.mxu0 %v2322
        %2375 = vmatprep.subr.mxu0 0.0
        %2376 = vmatpush1.msra.mxu0 %v2321
        %2377 = vmatprep.subr.mxu0 0.0
        %2378 = vmatpush1.msra.mxu0 %v2320
        %2379 = vmatprep.subr.mxu0 0.0
        %2380 = vmatpush1.msra.mxu0 %v2319
        %2381 = vmatprep.subr.mxu0 0.0
        %2382 = vmatpush1.msra.mxu0 %v2318
        %2383 = vmatprep.subr.mxu0 0.0
        %2384 = vmatpush1.msra.mxu0 %v2317
        %2385 = vmatprep.subr.mxu0 0.0
        %2386 = vmatpush1.msra.mxu0 %v2316
        %2387 = vmatprep.subr.mxu0 0.0
        %2388 = vmatpush2.msra.mxu0 0.0
        %2389 = vmatprep.subr.mxu0 0.0
        %2390 = vmatpush2.msra.mxu0 0.0
        %2391 = vmatprep.subr.mxu0 0.0
        %2392 = vmatpush2.msra.mxu0 0.0
        %2393 = vmatprep.subr.mxu0 0.0
        %2394 = vmatpush2.msra.mxu0 0.0
        %2395 = vmatprep.subr.mxu0 0.0
        %2396 = vmatpush2.msra.mxu0 0.0
        %2397 = vmatprep.subr.mxu0 0.0
        %2398 = vmatpush2.msra.mxu0 0.0
        %2399 = vmatprep.subr.mxu0 0.0
        %2400 = vmatpush2.msra.mxu0 0.0
        %2401 = vmatprep.subr.mxu0 0.0
        %2402 = vmatpush2.msra.mxu0 0.0
        %2403 = vmatprep.subr.mxu0 0.0
        %2404 = vmatpush2.msra.mxu0 0.0
        %2405 = vmatprep.subr.mxu0 0.0
        %2406 = vmatpush2.msra.mxu0 0.0
        %2407 = vmatprep.subr.mxu0 0.0
        %2408 = vmatpush2.msra.mxu0 0.0
        %2409 = vmatprep.subr.mxu0 0.0
        %2410 = vmatpush2.msra.mxu0 0.0
        %2411 = vmatprep.subr.mxu0 0.0
        %2412 = vmatpush2.msra.mxu0 0.0
        %2413 = vmatprep.subr.mxu0 0.0
        %2414 = vmatpush2.msra.mxu0 0.0
        %2415 = vmatprep.subr.mxu0 0.0
        %2416 = vmatpush2.msra.mxu0 0.0
        %2417 = vmatprep.subr.mxu0 0.0
        %2418 = vmatpush2.msra.mxu0 0.0
        %2419 = vmatprep.mubr.f32.mxu0 0.0
        %2420 = vmatmul.mubr.f32.gmra.mxu0 %v2332
        %v2421 = vpop.f32.mrf.mxu0
        %v2422 = vadd.f32 %v2328, %v2421
        %v2423 = vpop.f32.mrf.mxu0
        %2424 = vmatprep.mubr.f32.mxu0 0.0
        %2425 = vmatmul.mubr.f32.gmra.mxu0 %v2335
        %v2426 = vpop.f32.mrf.mxu0
        %v2427 = vadd.f32 %v2328, %v2426
        %v2428 = vpop.f32.mrf.mxu0
        %2429 = vmatprep.mubr.f32.mxu0 0.0
        %2430 = vmatmul.mubr.f32.gmra.mxu0 %v2338
        %v2431 = vpop.f32.mrf.mxu0
        %v2432 = vadd.f32 %v2328, %v2431
        %v2433 = vpop.f32.mrf.mxu0
        %2434 = vmatprep.mubr.f32.mxu0 0.0
        %2435 = vmatmul.mubr.f32.gmra.mxu0 %v2341
        %v2436 = vpop.f32.mrf.mxu0
        %v2437 = vadd.f32 %v2328, %v2436
        %v2438 = vpop.f32.mrf.mxu0
        %2439 = vmatprep.mubr.f32.mxu0 0.0
        %2440 = vmatmul.mubr.f32.gmra.mxu0 %v2344
        %v2441 = vpop.f32.mrf.mxu0
        %v2442 = vadd.f32 %v2328, %v2441
        %v2443 = vpop.f32.mrf.mxu0
        %2444 = vmatprep.mubr.f32.mxu0 0.0
        %2445 = vmatmul.mubr.f32.gmra.mxu0 %v2347
        %v2446 = vpop.f32.mrf.mxu0
        %v2447 = vadd.f32 %v2328, %v2446
        %v2448 = vpop.f32.mrf.mxu0
        %2449 = vmatprep.mubr.f32.mxu0 0.0
        %2450 = vmatmul.mubr.f32.gmra.mxu0 %v2350
        %v2451 = vpop.f32.mrf.mxu0
        %v2452 = vadd.f32 %v2328, %v2451
        %v2453 = vpop.f32.mrf.mxu0
        %2454 = vmatprep.mubr.f32.mxu0 0.0
        %2455 = vmatmul.mubr.f32.gmra.mxu0 %v2353
        %v2456 = vpop.f32.mrf.mxu0
        %v2457 = vadd.f32 %v2328, %v2456
        %v2458 = vpop.f32.mrf.mxu0
        %2459 = vdwg.mxu0
        %v2460 = vmax.f32 %v2422, 0.0
        %v2461 = vmax.f32 %v2427, 0.0
        %v2462 = vmax.f32 %v2432, 0.0
        %v2463 = vmax.f32 %v2437, 0.0
        %v2464 = vmax.f32 %v2442, 0.0
        %v2465 = vmax.f32 %v2447, 0.0
        %v2466 = vmax.f32 %v2452, 0.0
        %v2467 = vmax.f32 %v2457, 0.0
        %v2468 = vld [vmem:[%s23] sm:$0x1]
        %v2470 = vlaneseq
        %v2471 = vshrl.u32 %v2470, 7
        %v2472 = vsub.s32 0, %v2471
        %v2473 = vrot.slane %v2468, %v2472
        %v2475 = vmul.f32 %v2460, %v2473
        %v2476 = vmul.f32 %v2461, %v2473
        %v2477 = vmul.f32 %v2462, %v2473
        %v2478 = vmul.f32 %v2463, %v2473
        %v2479 = vmul.f32 %v2464, %v2473
        %v2480 = vmul.f32 %v2465, %v2473
        %v2481 = vmul.f32 %v2466, %v2473
        %v2482 = vmul.f32 %v2467, %v2473
        %v2483 = vld [vmem:[%s25] sm:$0x1]
        %v2485 = vlaneseq
        %v2486 = vshrl.u32 %v2485, 7
        %v2487 = vsub.s32 0, %v2486
        %v2488 = vrot.slane %v2483, %v2487
        %v2490 = vadd.f32 %v2475, %v2488
        %v2491 = vadd.f32 %v2476, %v2488
        %v2492 = vadd.f32 %v2477, %v2488
        %v2493 = vadd.f32 %v2478, %v2488
        %v2494 = vadd.f32 %v2479, %v2488
        %v2495 = vadd.f32 %v2480, %v2488
        %v2496 = vadd.f32 %v2481, %v2488
        %v2497 = vadd.f32 %v2482, %v2488
        %2498 = vst.msk [vmem:[#allocation2 + $0x3] sm:$0xff] %vm2006, %v2490
        %2499 = vst.msk [vmem:[#allocation2 + $0xb] sm:$0xff] %vm2006, %v2491
        %2500 = vst.msk [vmem:[#allocation2 + $0x13] sm:$0xff] %vm2006, %v2492
        %2501 = vst.msk [vmem:[#allocation2 + $0x1b] sm:$0xff] %vm2006, %v2493
        %2502 = vst.msk [vmem:[#allocation2 + $0x23] sm:$0xff] %vm2006, %v2494
        %2503 = vst.msk [vmem:[#allocation2 + $0x2b] sm:$0xff] %vm2006, %v2495
        %2504 = vst.msk [vmem:[#allocation2 + $0x33] sm:$0xff] %vm2006, %v2496
        %2505 = vst.msk [vmem:[#allocation2 + $0x3b] sm:$0xff] %vm2006, %v2497
        %v2506 = vld [vmem:[#allocation2] sm:$0xff]
        %v2507 = vld [vmem:[#allocation2 + $0x8] sm:$0xff]
        %v2508 = vld [vmem:[#allocation2 + $0x10] sm:$0xff]
        %v2509 = vld [vmem:[#allocation2 + $0x18] sm:$0xff]
        %v2510 = vld [vmem:[#allocation2 + $0x20] sm:$0xff]
        %v2511 = vld [vmem:[#allocation2 + $0x28] sm:$0xff]
        %v2512 = vld [vmem:[#allocation2 + $0x30] sm:$0xff]
        %v2513 = vld [vmem:[#allocation2 + $0x38] sm:$0xff]
        %v2514 = vld [vmem:[#allocation2 + $0x1] sm:$0xff]
        %v2515 = vld [vmem:[#allocation2 + $0x9] sm:$0xff]
        %v2516 = vld [vmem:[#allocation2 + $0x11] sm:$0xff]
        %v2517 = vld [vmem:[#allocation2 + $0x19] sm:$0xff]
        %v2518 = vld [vmem:[#allocation2 + $0x21] sm:$0xff]
        %v2519 = vld [vmem:[#allocation2 + $0x29] sm:$0xff]
        %v2520 = vld [vmem:[#allocation2 + $0x31] sm:$0xff]
        %v2521 = vld [vmem:[#allocation2 + $0x39] sm:$0xff]
        %v2522 = vld [vmem:[#allocation2 + $0x2] sm:$0xff]
        %v2523 = vld [vmem:[#allocation2 + $0xa] sm:$0xff]
        %v2524 = vld [vmem:[#allocation2 + $0x12] sm:$0xff]
        %v2525 = vld [vmem:[#allocation2 + $0x1a] sm:$0xff]
        %v2526 = vld [vmem:[#allocation2 + $0x22] sm:$0xff]
        %v2527 = vld [vmem:[#allocation2 + $0x2a] sm:$0xff]
        %v2528 = vld [vmem:[#allocation2 + $0x32] sm:$0xff]
        %v2529 = vld [vmem:[#allocation2 + $0x3a] sm:$0xff]
        %v2530 = vld [vmem:[#allocation2 + $0x3] sm:$0xff]
        %v2531 = vld [vmem:[#allocation2 + $0xb] sm:$0xff]
        %v2532 = vld [vmem:[#allocation2 + $0x13] sm:$0xff]
        %v2533 = vld [vmem:[#allocation2 + $0x1b] sm:$0xff]
        %v2534 = vld [vmem:[#allocation2 + $0x23] sm:$0xff]
        %v2535 = vld [vmem:[#allocation2 + $0x2b] sm:$0xff]
        %v2536 = vld [vmem:[#allocation2 + $0x33] sm:$0xff]
        %v2537 = vld [vmem:[#allocation2 + $0x3b] sm:$0xff]
        %v2538 = vld [vmem:[#allocation2 + $0x4] sm:$0xff]
        %v2539 = vld [vmem:[#allocation2 + $0xc] sm:$0xff]
        %v2540 = vld [vmem:[#allocation2 + $0x14] sm:$0xff]
        %v2541 = vld [vmem:[#allocation2 + $0x1c] sm:$0xff]
        %v2542 = vld [vmem:[#allocation2 + $0x24] sm:$0xff]
        %v2543 = vld [vmem:[#allocation2 + $0x2c] sm:$0xff]
        %v2544 = vld [vmem:[#allocation2 + $0x34] sm:$0xff]
        %v2545 = vld [vmem:[#allocation2 + $0x3c] sm:$0xff]
        %v2546 = vld [vmem:[#allocation2 + $0x5] sm:$0xff]
        %v2547 = vld [vmem:[#allocation2 + $0xd] sm:$0xff]
        %v2548 = vld [vmem:[#allocation2 + $0x15] sm:$0xff]
        %v2549 = vld [vmem:[#allocation2 + $0x1d] sm:$0xff]
        %v2550 = vld [vmem:[#allocation2 + $0x25] sm:$0xff]
        %v2551 = vld [vmem:[#allocation2 + $0x2d] sm:$0xff]
        %v2552 = vld [vmem:[#allocation2 + $0x35] sm:$0xff]
        %v2553 = vld [vmem:[#allocation2 + $0x3d] sm:$0xff]
        %v2554 = vld [vmem:[#allocation2 + $0x6] sm:$0xff]
        %v2555 = vld [vmem:[#allocation2 + $0xe] sm:$0xff]
        %v2556 = vld [vmem:[#allocation2 + $0x16] sm:$0xff]
        %v2557 = vld [vmem:[#allocation2 + $0x1e] sm:$0xff]
        %v2558 = vld [vmem:[#allocation2 + $0x26] sm:$0xff]
        %v2559 = vld [vmem:[#allocation2 + $0x2e] sm:$0xff]
        %v2560 = vld [vmem:[#allocation2 + $0x36] sm:$0xff]
        %v2561 = vld [vmem:[#allocation2 + $0x3e] sm:$0xff]
        %2570 = vrot.lane.b32.xlu0 %v2514, 8
        %v2571 = vpop.permute.xlu0 %2570
        %2572 = vrot.lane.b32.xlu0 %v2515, 8
        %v2573 = vpop.permute.xlu0 %2572
        %2574 = vrot.lane.b32.xlu0 %v2516, 8
        %v2575 = vpop.permute.xlu0 %2574
        %2576 = vrot.lane.b32.xlu0 %v2517, 8
        %v2577 = vpop.permute.xlu0 %2576
        %2578 = vrot.lane.b32.xlu0 %v2518, 8
        %v2579 = vpop.permute.xlu0 %2578
        %2580 = vrot.lane.b32.xlu0 %v2519, 8
        %v2581 = vpop.permute.xlu0 %2580
        %2582 = vrot.lane.b32.xlu0 %v2520, 8
        %v2583 = vpop.permute.xlu0 %2582
        %2584 = vrot.lane.b32.xlu0 %v2521, 8
        %v2585 = vpop.permute.xlu0 %2584
        %2602 = vrot.lane.b32.xlu0 %v2522, 16
        %v2603 = vpop.permute.xlu0 %2602
        %2604 = vrot.lane.b32.xlu0 %v2523, 16
        %v2605 = vpop.permute.xlu0 %2604
        %2606 = vrot.lane.b32.xlu0 %v2524, 16
        %v2607 = vpop.permute.xlu0 %2606
        %2608 = vrot.lane.b32.xlu0 %v2525, 16
        %v2609 = vpop.permute.xlu0 %2608
        %2610 = vrot.lane.b32.xlu0 %v2526, 16
        %v2611 = vpop.permute.xlu0 %2610
        %2612 = vrot.lane.b32.xlu0 %v2527, 16
        %v2613 = vpop.permute.xlu0 %2612
        %2614 = vrot.lane.b32.xlu0 %v2528, 16
        %v2615 = vpop.permute.xlu0 %2614
        %2616 = vrot.lane.b32.xlu0 %v2529, 16
        %v2617 = vpop.permute.xlu0 %2616
        %2634 = vrot.lane.b32.xlu0 %v2530, 24
        %v2635 = vpop.permute.xlu0 %2634
        %2636 = vrot.lane.b32.xlu0 %v2531, 24
        %v2637 = vpop.permute.xlu0 %2636
        %2638 = vrot.lane.b32.xlu0 %v2532, 24
        %v2639 = vpop.permute.xlu0 %2638
        %2640 = vrot.lane.b32.xlu0 %v2533, 24
        %v2641 = vpop.permute.xlu0 %2640
        %2642 = vrot.lane.b32.xlu0 %v2534, 24
        %v2643 = vpop.permute.xlu0 %2642
        %2644 = vrot.lane.b32.xlu0 %v2535, 24
        %v2645 = vpop.permute.xlu0 %2644
        %2646 = vrot.lane.b32.xlu0 %v2536, 24
        %v2647 = vpop.permute.xlu0 %2646
        %2648 = vrot.lane.b32.xlu0 %v2537, 24
        %v2649 = vpop.permute.xlu0 %2648
        %2666 = vrot.lane.b32.xlu0 %v2538, 32
        %v2667 = vpop.permute.xlu0 %2666
        %2668 = vrot.lane.b32.xlu0 %v2539, 32
        %v2669 = vpop.permute.xlu0 %2668
        %2670 = vrot.lane.b32.xlu0 %v2540, 32
        %v2671 = vpop.permute.xlu0 %2670
        %2672 = vrot.lane.b32.xlu0 %v2541, 32
        %v2673 = vpop.permute.xlu0 %2672
        %2674 = vrot.lane.b32.xlu0 %v2542, 32
        %v2675 = vpop.permute.xlu0 %2674
        %2676 = vrot.lane.b32.xlu0 %v2543, 32
        %v2677 = vpop.permute.xlu0 %2676
        %2678 = vrot.lane.b32.xlu0 %v2544, 32
        %v2679 = vpop.permute.xlu0 %2678
        %2680 = vrot.lane.b32.xlu0 %v2545, 32
        %v2681 = vpop.permute.xlu0 %2680
        %2698 = vrot.lane.b32.xlu0 %v2546, 40
        %v2699 = vpop.permute.xlu0 %2698
        %2700 = vrot.lane.b32.xlu0 %v2547, 40
        %v2701 = vpop.permute.xlu0 %2700
        %2702 = vrot.lane.b32.xlu0 %v2548, 40
        %v2703 = vpop.permute.xlu0 %2702
        %2704 = vrot.lane.b32.xlu0 %v2549, 40
        %v2705 = vpop.permute.xlu0 %2704
        %2706 = vrot.lane.b32.xlu0 %v2550, 40
        %v2707 = vpop.permute.xlu0 %2706
        %2708 = vrot.lane.b32.xlu0 %v2551, 40
        %v2709 = vpop.permute.xlu0 %2708
        %2710 = vrot.lane.b32.xlu0 %v2552, 40
        %v2711 = vpop.permute.xlu0 %2710
        %2712 = vrot.lane.b32.xlu0 %v2553, 40
        %v2713 = vpop.permute.xlu0 %2712
        %2730 = vrot.lane.b32.xlu0 %v2554, 48
        %v2731 = vpop.permute.xlu0 %2730
        %2732 = vrot.lane.b32.xlu0 %v2555, 48
        %v2733 = vpop.permute.xlu0 %2732
        %2734 = vrot.lane.b32.xlu0 %v2556, 48
        %v2735 = vpop.permute.xlu0 %2734
        %2736 = vrot.lane.b32.xlu0 %v2557, 48
        %v2737 = vpop.permute.xlu0 %2736
        %2738 = vrot.lane.b32.xlu0 %v2558, 48
        %v2739 = vpop.permute.xlu0 %2738
        %2740 = vrot.lane.b32.xlu0 %v2559, 48
        %v2741 = vpop.permute.xlu0 %2740
        %2742 = vrot.lane.b32.xlu0 %v2560, 48
        %v2743 = vpop.permute.xlu0 %2742
        %2744 = vrot.lane.b32.xlu0 %v2561, 48
        %v2745 = vpop.permute.xlu0 %2744
        %v2754 = vsel %vm2006, %v2506, %v2571
        %v2755 = vsel %vm2006, %v2507, %v2573
        %v2756 = vsel %vm2006, %v2508, %v2575
        %v2757 = vsel %vm2006, %v2509, %v2577
        %v2758 = vsel %vm2006, %v2510, %v2579
        %v2759 = vsel %vm2006, %v2511, %v2581
        %v2760 = vsel %vm2006, %v2512, %v2583
        %v2761 = vsel %vm2006, %v2513, %v2585
        %v2762 = vsel %vm2271, %v2754, %v2603
        %v2763 = vsel %vm2271, %v2755, %v2605
        %v2764 = vsel %vm2271, %v2756, %v2607
        %v2765 = vsel %vm2271, %v2757, %v2609
        %v2766 = vsel %vm2271, %v2758, %v2611
        %v2767 = vsel %vm2271, %v2759, %v2613
        %v2768 = vsel %vm2271, %v2760, %v2615
        %v2769 = vsel %vm2271, %v2761, %v2617
        %v2770 = vsel %vm2280, %v2762, %v2635
        %v2771 = vsel %vm2280, %v2763, %v2637
        %v2772 = vsel %vm2280, %v2764, %v2639
        %v2773 = vsel %vm2280, %v2765, %v2641
        %v2774 = vsel %vm2280, %v2766, %v2643
        %v2775 = vsel %vm2280, %v2767, %v2645
        %v2776 = vsel %vm2280, %v2768, %v2647
        %v2777 = vsel %vm2280, %v2769, %v2649
        %v2778 = vsel %vm2289, %v2770, %v2667
        %v2779 = vsel %vm2289, %v2771, %v2669
        %v2780 = vsel %vm2289, %v2772, %v2671
        %v2781 = vsel %vm2289, %v2773, %v2673
        %v2782 = vsel %vm2289, %v2774, %v2675
        %v2783 = vsel %vm2289, %v2775, %v2677
        %v2784 = vsel %vm2289, %v2776, %v2679
        %v2785 = vsel %vm2289, %v2777, %v2681
        %v2786 = vsel %vm2298, %v2778, %v2699
        %v2787 = vsel %vm2298, %v2779, %v2701
        %v2788 = vsel %vm2298, %v2780, %v2703
        %v2789 = vsel %vm2298, %v2781, %v2705
        %v2790 = vsel %vm2298, %v2782, %v2707
        %v2791 = vsel %vm2298, %v2783, %v2709
        %v2792 = vsel %vm2298, %v2784, %v2711
        %v2793 = vsel %vm2298, %v2785, %v2713
        %v2794 = vsel %vm2307, %v2786, %v2731
        %v2795 = vsel %vm2307, %v2787, %v2733
        %v2796 = vsel %vm2307, %v2788, %v2735
        %v2797 = vsel %vm2307, %v2789, %v2737
        %v2798 = vsel %vm2307, %v2790, %v2739
        %v2799 = vsel %vm2307, %v2791, %v2741
        %v2800 = vsel %vm2307, %v2792, %v2743
        %v2801 = vsel %vm2307, %v2793, %v2745
        %v2802 = vld [vmem:[%s27] sm:$0xff]
        %v2803 = vld [vmem:[%s27 + $0x8] sm:$0xff]
        %v2804 = vld [vmem:[%s27 + $0x10] sm:$0xff]
        %v2805 = vld [vmem:[%s27 + $0x18] sm:$0xff]
        %v2806 = vld [vmem:[%s27 + $0x20] sm:$0xff]
        %v2807 = vld [vmem:[%s27 + $0x28] sm:$0xff]
        %v2808 = vld [vmem:[%s27 + $0x30] sm:$0xff]
        %v2809 = vld [vmem:[%s29] sm:$0x1]
        %v2811 = vlaneseq
        %v2812 = vshrl.u32 %v2811, 7
        %v2813 = vsub.s32 0, %v2812
        %v2814 = vrot.slane %v2809, %v2813
        %v2817 = vsel %vm2330, %v2794, 0
        %v2820 = vsel %vm2330, %v2795, 0
        %v2823 = vsel %vm2330, %v2796, 0
        %v2826 = vsel %vm2330, %v2797, 0
        %v2829 = vsel %vm2330, %v2798, 0
        %v2832 = vsel %vm2330, %v2799, 0
        %v2835 = vsel %vm2330, %v2800, 0
        %v2838 = vsel %vm2330, %v2801, 0
        %2840 = vmatprep.subr.mxu0 0.0
        %2841 = vmatpush1.msra.mxu0 0.0
        %2842 = vmatprep.subr.mxu0 0.0
        %2843 = vmatpush1.msra.mxu0 0.0
        %2844 = vmatprep.subr.mxu0 0.0
        %2845 = vmatpush1.msra.mxu0 0.0
        %2846 = vmatprep.subr.mxu0 0.0
        %2847 = vmatpush1.msra.mxu0 0.0
        %2848 = vmatprep.subr.mxu0 0.0
        %2849 = vmatpush1.msra.mxu0 0.0
        %2850 = vmatprep.subr.mxu0 0.0
        %2851 = vmatpush1.msra.mxu0 0.0
        %2852 = vmatprep.subr.mxu0 0.0
        %2853 = vmatpush1.msra.mxu0 0.0
        %2854 = vmatprep.subr.mxu0 0.0
        %2855 = vmatpush1.msra.mxu0 0.0
        %2856 = vmatprep.subr.mxu0 0.0
        %2857 = vmatpush1.msra.mxu0 0.0
        %2858 = vmatprep.subr.mxu0 0.0
        %2859 = vmatpush1.msra.mxu0 %v2808
        %2860 = vmatprep.subr.mxu0 0.0
        %2861 = vmatpush1.msra.mxu0 %v2807
        %2862 = vmatprep.subr.mxu0 0.0
        %2863 = vmatpush1.msra.mxu0 %v2806
        %2864 = vmatprep.subr.mxu0 0.0
        %2865 = vmatpush1.msra.mxu0 %v2805
        %2866 = vmatprep.subr.mxu0 0.0
        %2867 = vmatpush1.msra.mxu0 %v2804
        %2868 = vmatprep.subr.mxu0 0.0
        %2869 = vmatpush1.msra.mxu0 %v2803
        %2870 = vmatprep.subr.mxu0 0.0
        %2871 = vmatpush1.msra.mxu0 %v2802
        %2872 = vmatprep.subr.mxu0 0.0
        %2873 = vmatpush2.msra.mxu0 0.0
        %2874 = vmatprep.subr.mxu0 0.0
        %2875 = vmatpush2.msra.mxu0 0.0
        %2876 = vmatprep.subr.mxu0 0.0
        %2877 = vmatpush2.msra.mxu0 0.0
        %2878 = vmatprep.subr.mxu0 0.0
        %2879 = vmatpush2.msra.mxu0 0.0
        %2880 = vmatprep.subr.mxu0 0.0
        %2881 = vmatpush2.msra.mxu0 0.0
        %2882 = vmatprep.subr.mxu0 0.0
        %2883 = vmatpush2.msra.mxu0 0.0
        %2884 = vmatprep.subr.mxu0 0.0
        %2885 = vmatpush2.msra.mxu0 0.0
        %2886 = vmatprep.subr.mxu0 0.0
        %2887 = vmatpush2.msra.mxu0 0.0
        %2888 = vmatprep.subr.mxu0 0.0
        %2889 = vmatpush2.msra.mxu0 0.0
        %2890 = vmatprep.subr.mxu0 0.0
        %2891 = vmatpush2.msra.mxu0 0.0
        %2892 = vmatprep.subr.mxu0 0.0
        %2893 = vmatpush2.msra.mxu0 0.0
        %2894 = vmatprep.subr.mxu0 0.0
        %2895 = vmatpush2.msra.mxu0 0.0
        %2896 = vmatprep.subr.mxu0 0.0
        %2897 = vmatpush2.msra.mxu0 0.0
        %2898 = vmatprep.subr.mxu0 0.0
        %2899 = vmatpush2.msra.mxu0 0.0
        %2900 = vmatprep.subr.mxu0 0.0
        %2901 = vmatpush2.msra.mxu0 0.0
        %2902 = vmatprep.subr.mxu0 0.0
        %2903 = vmatpush2.msra.mxu0 0.0
        %2904 = vmatprep.mubr.f32.mxu0 0.0
        %2905 = vmatmul.mubr.f32.gmra.mxu0 %v2817
        %v2906 = vpop.f32.mrf.mxu0
        %v2907 = vadd.f32 %v2814, %v2906
        %v2908 = vpop.f32.mrf.mxu0
        %2909 = vmatprep.mubr.f32.mxu0 0.0
        %2910 = vmatmul.mubr.f32.gmra.mxu0 %v2820
        %v2911 = vpop.f32.mrf.mxu0
        %v2912 = vadd.f32 %v2814, %v2911
        %v2913 = vpop.f32.mrf.mxu0
        %2914 = vmatprep.mubr.f32.mxu0 0.0
        %2915 = vmatmul.mubr.f32.gmra.mxu0 %v2823
        %v2916 = vpop.f32.mrf.mxu0
        %v2917 = vadd.f32 %v2814, %v2916
        %v2918 = vpop.f32.mrf.mxu0
        %2919 = vmatprep.mubr.f32.mxu0 0.0
        %2920 = vmatmul.mubr.f32.gmra.mxu0 %v2826
        %v2921 = vpop.f32.mrf.mxu0
        %v2922 = vadd.f32 %v2814, %v2921
        %v2923 = vpop.f32.mrf.mxu0
        %2924 = vmatprep.mubr.f32.mxu0 0.0
        %2925 = vmatmul.mubr.f32.gmra.mxu0 %v2829
        %v2926 = vpop.f32.mrf.mxu0
        %v2927 = vadd.f32 %v2814, %v2926
        %v2928 = vpop.f32.mrf.mxu0
        %2929 = vmatprep.mubr.f32.mxu0 0.0
        %2930 = vmatmul.mubr.f32.gmra.mxu0 %v2832
        %v2931 = vpop.f32.mrf.mxu0
        %v2932 = vadd.f32 %v2814, %v2931
        %v2933 = vpop.f32.mrf.mxu0
        %2934 = vmatprep.mubr.f32.mxu0 0.0
        %2935 = vmatmul.mubr.f32.gmra.mxu0 %v2835
        %v2936 = vpop.f32.mrf.mxu0
        %v2937 = vadd.f32 %v2814, %v2936
        %v2938 = vpop.f32.mrf.mxu0
        %2939 = vmatprep.mubr.f32.mxu0 0.0
        %2940 = vmatmul.mubr.f32.gmra.mxu0 %v2838
        %v2941 = vpop.f32.mrf.mxu0
        %v2942 = vadd.f32 %v2814, %v2941
        %v2943 = vpop.f32.mrf.mxu0
        %2944 = vdwg.mxu0
        %v2945 = vmax.f32 %v2907, 0.0
        %v2946 = vmax.f32 %v2912, 0.0
        %v2947 = vmax.f32 %v2917, 0.0
        %v2948 = vmax.f32 %v2922, 0.0
        %v2949 = vmax.f32 %v2927, 0.0
        %v2950 = vmax.f32 %v2932, 0.0
        %v2951 = vmax.f32 %v2937, 0.0
        %v2952 = vmax.f32 %v2942, 0.0
        %v2953 = vld [vmem:[%s31] sm:$0x1]
        %v2955 = vlaneseq
        %v2956 = vshrl.u32 %v2955, 7
        %v2957 = vsub.s32 0, %v2956
        %v2958 = vrot.slane %v2953, %v2957
        %v2960 = vmul.f32 %v2945, %v2958
        %v2961 = vmul.f32 %v2946, %v2958
        %v2962 = vmul.f32 %v2947, %v2958
        %v2963 = vmul.f32 %v2948, %v2958
        %v2964 = vmul.f32 %v2949, %v2958
        %v2965 = vmul.f32 %v2950, %v2958
        %v2966 = vmul.f32 %v2951, %v2958
        %v2967 = vmul.f32 %v2952, %v2958
        %v2968 = vld [vmem:[%s33] sm:$0x1]
        %v2970 = vlaneseq
        %v2971 = vshrl.u32 %v2970, 7
        %v2972 = vsub.s32 0, %v2971
        %v2973 = vrot.slane %v2968, %v2972
        %v2975 = vadd.f32 %v2960, %v2973
        %v2976 = vadd.f32 %v2961, %v2973
        %v2977 = vadd.f32 %v2962, %v2973
        %v2978 = vadd.f32 %v2963, %v2973
        %v2979 = vadd.f32 %v2964, %v2973
        %v2980 = vadd.f32 %v2965, %v2973
        %v2981 = vadd.f32 %v2966, %v2973
        %v2982 = vadd.f32 %v2967, %v2973
        %2983 = vst.msk [vmem:[#allocation2] sm:$0xff] %vm2271, %v2975
        %2984 = vst.msk [vmem:[#allocation2 + $0x8] sm:$0xff] %vm2271, %v2976
        %2985 = vst.msk [vmem:[#allocation2 + $0x10] sm:$0xff] %vm2271, %v2977
        %2986 = vst.msk [vmem:[#allocation2 + $0x18] sm:$0xff] %vm2271, %v2978
        %2987 = vst.msk [vmem:[#allocation2 + $0x20] sm:$0xff] %vm2271, %v2979
        %2988 = vst.msk [vmem:[#allocation2 + $0x28] sm:$0xff] %vm2271, %v2980
        %2989 = vst.msk [vmem:[#allocation2 + $0x30] sm:$0xff] %vm2271, %v2981
        %2990 = vst.msk [vmem:[#allocation2 + $0x38] sm:$0xff] %vm2271, %v2982
        %v2991 = vld [vmem:[#allocation2] ss:$2 sm:$0xff]
        %s2992 = scalar_lea.vmem [#allocation2], 16
        %v2993 = vld [vmem:[%s2992] ss:$2 sm:$0xff]
        %s2994 = scalar_lea.vmem [#allocation2], 32
        %v2995 = vld [vmem:[%s2994] ss:$2 sm:$0xff]
        %s2996 = scalar_lea.vmem [#allocation2], 48
        %v2997 = vld [vmem:[%s2996] ss:$2 sm:$0xff]
        %s2998 = scalar_lea.vmem [#allocation2], 1
        %v2999 = vld [vmem:[%s2998] ss:$2 sm:$0xff]
        %s3000 = scalar_lea.vmem [#allocation2], 17
        %v3001 = vld [vmem:[%s3000] ss:$2 sm:$0xff]
        %s3002 = scalar_lea.vmem [#allocation2], 33
        %v3003 = vld [vmem:[%s3002] ss:$2 sm:$0xff]
        %s3004 = scalar_lea.vmem [#allocation2], 49
        %v3005 = vld [vmem:[%s3004] ss:$2 sm:$0xff]
        %v3006 = vmax.f32 %v2991, %v2999
        %v3007 = vmax.f32 %v2993, %v3001
        %v3008 = vmax.f32 %v2995, %v3003
        %v3009 = vmax.f32 %v2997, %v3005
        %3010 = vst.msk [vmem:[#allocation2] sm:$0x7] %vm1029, 0.0
        %3011 = vst.msk [vmem:[#allocation2 + $0x23] sm:$0x7] %vm1029, 0.0
        %3012 = vst.msk [vmem:[#allocation2 + $0x3] sm:$0xff] %vm2271, %v3006
        %3013 = vst.msk [vmem:[#allocation2 + $0xb] sm:$0xff] %vm2271, %v3007
        %3014 = vst.msk [vmem:[#allocation2 + $0x13] sm:$0xff] %vm2271, %v3008
        %3015 = vst.msk [vmem:[#allocation2 + $0x1b] sm:$0xff] %vm2271, %v3009
        %v3016 = vld [vmem:[#allocation2] sm:$0xff]
        %v3017 = vld [vmem:[#allocation2 + $0x8] sm:$0xff]
        %v3018 = vld [vmem:[#allocation2 + $0x10] sm:$0xff]
        %v3019 = vld [vmem:[#allocation2 + $0x18] sm:$0xff]
        %v3020 = vld [vmem:[#allocation2 + $0x1] sm:$0xff]
        %v3021 = vld [vmem:[#allocation2 + $0x9] sm:$0xff]
        %v3022 = vld [vmem:[#allocation2 + $0x11] sm:$0xff]
        %v3023 = vld [vmem:[#allocation2 + $0x19] sm:$0xff]
        %v3024 = vld [vmem:[#allocation2 + $0x2] sm:$0xff]
        %v3025 = vld [vmem:[#allocation2 + $0xa] sm:$0xff]
        %v3026 = vld [vmem:[#allocation2 + $0x12] sm:$0xff]
        %v3027 = vld [vmem:[#allocation2 + $0x1a] sm:$0xff]
        %v3028 = vld [vmem:[#allocation2 + $0x3] sm:$0xff]
        %v3029 = vld [vmem:[#allocation2 + $0xb] sm:$0xff]
        %v3030 = vld [vmem:[#allocation2 + $0x13] sm:$0xff]
        %v3031 = vld [vmem:[#allocation2 + $0x1b] sm:$0xff]
        %v3032 = vld [vmem:[#allocation2 + $0x4] sm:$0xff]
        %v3033 = vld [vmem:[#allocation2 + $0xc] sm:$0xff]
        %v3034 = vld [vmem:[#allocation2 + $0x14] sm:$0xff]
        %v3035 = vld [vmem:[#allocation2 + $0x1c] sm:$0xff]
        %v3036 = vld [vmem:[#allocation2 + $0x5] sm:$0xff]
        %v3037 = vld [vmem:[#allocation2 + $0xd] sm:$0xff]
        %v3038 = vld [vmem:[#allocation2 + $0x15] sm:$0xff]
        %v3039 = vld [vmem:[#allocation2 + $0x1d] sm:$0xff]
        %v3040 = vld [vmem:[#allocation2 + $0x6] sm:$0xff]
        %v3041 = vld [vmem:[#allocation2 + $0xe] sm:$0xff]
        %v3042 = vld [vmem:[#allocation2 + $0x16] sm:$0xff]
        %v3043 = vld [vmem:[#allocation2 + $0x1e] sm:$0xff]
        %3048 = vrot.lane.b32.xlu0 %v3020, 16
        %v3049 = vpop.permute.xlu0 %3048
        %3050 = vrot.lane.b32.xlu0 %v3021, 16
        %v3051 = vpop.permute.xlu0 %3050
        %3052 = vrot.lane.b32.xlu0 %v3022, 16
        %v3053 = vpop.permute.xlu0 %3052
        %3054 = vrot.lane.b32.xlu0 %v3023, 16
        %v3055 = vpop.permute.xlu0 %3054
        %3064 = vrot.lane.b32.xlu0 %v3024, 32
        %v3065 = vpop.permute.xlu0 %3064
        %3066 = vrot.lane.b32.xlu0 %v3025, 32
        %v3067 = vpop.permute.xlu0 %3066
        %3068 = vrot.lane.b32.xlu0 %v3026, 32
        %v3069 = vpop.permute.xlu0 %3068
        %3070 = vrot.lane.b32.xlu0 %v3027, 32
        %v3071 = vpop.permute.xlu0 %3070
        %3080 = vrot.lane.b32.xlu0 %v3028, 48
        %v3081 = vpop.permute.xlu0 %3080
        %3082 = vrot.lane.b32.xlu0 %v3029, 48
        %v3083 = vpop.permute.xlu0 %3082
        %3084 = vrot.lane.b32.xlu0 %v3030, 48
        %v3085 = vpop.permute.xlu0 %3084
        %3086 = vrot.lane.b32.xlu0 %v3031, 48
        %v3087 = vpop.permute.xlu0 %3086
        %3096 = vrot.lane.b32.xlu0 %v3032, 64
        %v3097 = vpop.permute.xlu0 %3096
        %3098 = vrot.lane.b32.xlu0 %v3033, 64
        %v3099 = vpop.permute.xlu0 %3098
        %3100 = vrot.lane.b32.xlu0 %v3034, 64
        %v3101 = vpop.permute.xlu0 %3100
        %3102 = vrot.lane.b32.xlu0 %v3035, 64
        %v3103 = vpop.permute.xlu0 %3102
        %3112 = vrot.lane.b32.xlu0 %v3036, 80
        %v3113 = vpop.permute.xlu0 %3112
        %3114 = vrot.lane.b32.xlu0 %v3037, 80
        %v3115 = vpop.permute.xlu0 %3114
        %3116 = vrot.lane.b32.xlu0 %v3038, 80
        %v3117 = vpop.permute.xlu0 %3116
        %3118 = vrot.lane.b32.xlu0 %v3039, 80
        %v3119 = vpop.permute.xlu0 %3118
        %3128 = vrot.lane.b32.xlu0 %v3040, 96
        %v3129 = vpop.permute.xlu0 %3128
        %3130 = vrot.lane.b32.xlu0 %v3041, 96
        %v3131 = vpop.permute.xlu0 %3130
        %3132 = vrot.lane.b32.xlu0 %v3042, 96
        %v3133 = vpop.permute.xlu0 %3132
        %3134 = vrot.lane.b32.xlu0 %v3043, 96
        %v3135 = vpop.permute.xlu0 %3134
        %v3140 = vsel %vm2271, %v3016, %v3049
        %v3141 = vsel %vm2271, %v3017, %v3051
        %v3142 = vsel %vm2271, %v3018, %v3053
        %v3143 = vsel %vm2271, %v3019, %v3055
        %v3144 = vsel %vm2289, %v3140, %v3065
        %v3145 = vsel %vm2289, %v3141, %v3067
        %v3146 = vsel %vm2289, %v3142, %v3069
        %v3147 = vsel %vm2289, %v3143, %v3071
        %v3148 = vsel %vm2307, %v3144, %v3081
        %v3149 = vsel %vm2307, %v3145, %v3083
        %v3150 = vsel %vm2307, %v3146, %v3085
        %v3151 = vsel %vm2307, %v3147, %v3087
        %vm3152 = vcmask 523264
        %v3153 = vsel %vm3152, %v3148, %v3097
        %v3154 = vsel %vm3152, %v3149, %v3099
        %v3155 = vsel %vm3152, %v3150, %v3101
        %v3156 = vsel %vm3152, %v3151, %v3103
        %vm3157 = vcmask 654336
        %v3158 = vsel %vm3157, %v3153, %v3113
        %v3159 = vsel %vm3157, %v3154, %v3115
        %v3160 = vsel %vm3157, %v3155, %v3117
        %v3161 = vsel %vm3157, %v3156, %v3119
        %vm3162 = vcmask 785408
        %v3163 = vsel %vm3162, %v3158, %v3129
        %v3164 = vsel %vm3162, %v3159, %v3131
        %v3165 = vsel %vm3162, %v3160, %v3133
        %v3166 = vsel %vm3162, %v3161, %v3135
        %v3167 = vld [vmem:[%s35] sm:$0xff]
        %v3168 = vld [vmem:[%s35 + $0x8] sm:$0xff]
        %v3169 = vld [vmem:[%s35 + $0x10] sm:$0xff]
        %v3170 = vld [vmem:[%s35 + $0x18] sm:$0xff]
        %v3171 = vld [vmem:[%s35 + $0x20] sm:$0xff]
        %v3172 = vld [vmem:[%s35 + $0x28] sm:$0xff]
        %v3173 = vld [vmem:[%s35 + $0x30] sm:$0xff]
        %v3174 = vld [vmem:[%s35 + $0x38] sm:$0xff]
        %v3175 = vld [vmem:[%s35 + $0x40] sm:$0xff]
        %v3176 = vld [vmem:[%s35 + $0x48] sm:$0xff]
        %v3177 = vld [vmem:[%s35 + $0x50] sm:$0xff]
        %v3178 = vld [vmem:[%s35 + $0x58] sm:$0xff]
        %v3179 = vld [vmem:[%s35 + $0x60] sm:$0xff]
        %v3180 = vld [vmem:[%s35 + $0x68] sm:$0xff]
        %v3181 = vld [vmem:[%s37] sm:$0x1]
        %v3183 = vlaneseq
        %v3184 = vshrl.u32 %v3183, 7
        %v3185 = vsub.s32 0, %v3184
        %v3186 = vrot.slane %v3181, %v3185
        %vm3188 = vcmask 916480
        %v3190 = vsel %vm3188, %v3163, 0
        %v3193 = vsel %vm3188, %v3164, 0
        %v3196 = vsel %vm3188, %v3165, 0
        %v3199 = vsel %vm3188, %v3166, 0
        %3201 = vmatprep.subr.mxu0 0.0
        %3202 = vmatpush1.msra.mxu0 0.0
        %3203 = vmatprep.subr.mxu0 0.0
        %3204 = vmatpush1.msra.mxu0 0.0
        %3205 = vmatprep.subr.mxu0 0.0
        %3206 = vmatpush1.msra.mxu0 %v3180
        %3207 = vmatprep.subr.mxu0 0.0
        %3208 = vmatpush1.msra.mxu0 %v3179
        %3209 = vmatprep.subr.mxu0 0.0
        %3210 = vmatpush1.msra.mxu0 %v3178
        %3211 = vmatprep.subr.mxu0 0.0
        %3212 = vmatpush1.msra.mxu0 %v3177
        %3213 = vmatprep.subr.mxu0 0.0
        %3214 = vmatpush1.msra.mxu0 %v3176
        %3215 = vmatprep.subr.mxu0 0.0
        %3216 = vmatpush1.msra.mxu0 %v3175
        %3217 = vmatprep.subr.mxu0 0.0
        %3218 = vmatpush1.msra.mxu0 %v3174
        %3219 = vmatprep.subr.mxu0 0.0
        %3220 = vmatpush1.msra.mxu0 %v3173
        %3221 = vmatprep.subr.mxu0 0.0
        %3222 = vmatpush1.msra.mxu0 %v3172
        %3223 = vmatprep.subr.mxu0 0.0
        %3224 = vmatpush1.msra.mxu0 %v3171
        %3225 = vmatprep.subr.mxu0 0.0
        %3226 = vmatpush1.msra.mxu0 %v3170
        %3227 = vmatprep.subr.mxu0 0.0
        %3228 = vmatpush1.msra.mxu0 %v3169
        %3229 = vmatprep.subr.mxu0 0.0
        %3230 = vmatpush1.msra.mxu0 %v3168
        %3231 = vmatprep.subr.mxu0 0.0
        %3232 = vmatpush1.msra.mxu0 %v3167
        %3233 = vmatprep.subr.mxu0 0.0
        %3234 = vmatpush2.msra.mxu0 0.0
        %3235 = vmatprep.subr.mxu0 0.0
        %3236 = vmatpush2.msra.mxu0 0.0
        %3237 = vmatprep.subr.mxu0 0.0
        %3238 = vmatpush2.msra.mxu0 0.0
        %3239 = vmatprep.subr.mxu0 0.0
        %3240 = vmatpush2.msra.mxu0 0.0
        %3241 = vmatprep.subr.mxu0 0.0
        %3242 = vmatpush2.msra.mxu0 0.0
        %3243 = vmatprep.subr.mxu0 0.0
        %3244 = vmatpush2.msra.mxu0 0.0
        %3245 = vmatprep.subr.mxu0 0.0
        %3246 = vmatpush2.msra.mxu0 0.0
        %3247 = vmatprep.subr.mxu0 0.0
        %3248 = vmatpush2.msra.mxu0 0.0
        %3249 = vmatprep.subr.mxu0 0.0
        %3250 = vmatpush2.msra.mxu0 0.0
        %3251 = vmatprep.subr.mxu0 0.0
        %3252 = vmatpush2.msra.mxu0 0.0
        %3253 = vmatprep.subr.mxu0 0.0
        %3254 = vmatpush2.msra.mxu0 0.0
        %3255 = vmatprep.subr.mxu0 0.0
        %3256 = vmatpush2.msra.mxu0 0.0
        %3257 = vmatprep.subr.mxu0 0.0
        %3258 = vmatpush2.msra.mxu0 0.0
        %3259 = vmatprep.subr.mxu0 0.0
        %3260 = vmatpush2.msra.mxu0 0.0
        %3261 = vmatprep.subr.mxu0 0.0
        %3262 = vmatpush2.msra.mxu0 0.0
        %3263 = vmatprep.subr.mxu0 0.0
        %3264 = vmatpush2.msra.mxu0 0.0
        %3265 = vmatprep.mubr.f32.mxu0 0.0
        %3266 = vmatmul.mubr.f32.gmra.mxu0 %v3190
        %v3267 = vpop.f32.mrf.mxu0
        %v3268 = vadd.f32 %v3186, %v3267
        %v3269 = vpop.f32.mrf.mxu0
        %3270 = vmatprep.mubr.f32.mxu0 0.0
        %3271 = vmatmul.mubr.f32.gmra.mxu0 %v3193
        %v3272 = vpop.f32.mrf.mxu0
        %v3273 = vadd.f32 %v3186, %v3272
        %v3274 = vpop.f32.mrf.mxu0
        %3275 = vmatprep.mubr.f32.mxu0 0.0
        %3276 = vmatmul.mubr.f32.gmra.mxu0 %v3196
        %v3277 = vpop.f32.mrf.mxu0
        %v3278 = vadd.f32 %v3186, %v3277
        %v3279 = vpop.f32.mrf.mxu0
        %3280 = vmatprep.mubr.f32.mxu0 0.0
        %3281 = vmatmul.mubr.f32.gmra.mxu0 %v3199
        %v3282 = vpop.f32.mrf.mxu0
        %v3283 = vadd.f32 %v3186, %v3282
        %v3284 = vpop.f32.mrf.mxu0
        %3285 = vdwg.mxu0
        %v3286 = vmax.f32 %v3268, 0.0
        %v3287 = vmax.f32 %v3273, 0.0
        %v3288 = vmax.f32 %v3278, 0.0
        %v3289 = vmax.f32 %v3283, 0.0
        %v3290 = vld [vmem:[%s39] sm:$0x1]
        %v3292 = vlaneseq
        %v3293 = vshrl.u32 %v3292, 7
        %v3294 = vsub.s32 0, %v3293
        %v3295 = vrot.slane %v3290, %v3294
        %v3297 = vmul.f32 %v3286, %v3295
        %v3298 = vmul.f32 %v3287, %v3295
        %v3299 = vmul.f32 %v3288, %v3295
        %v3300 = vmul.f32 %v3289, %v3295
        %v3301 = vld [vmem:[%s41] sm:$0x1]
        %v3303 = vlaneseq
        %v3304 = vshrl.u32 %v3303, 7
        %v3305 = vsub.s32 0, %v3304
        %v3306 = vrot.slane %v3301, %v3305
        %v3308 = vadd.f32 %v3297, %v3306
        %v3309 = vadd.f32 %v3298, %v3306
        %v3310 = vadd.f32 %v3299, %v3306
        %v3311 = vadd.f32 %v3300, %v3306
        %3312 = vst.msk [vmem:[#allocation2 + $0x3] sm:$0xff] %vm2271, %v3308
        %3313 = vst.msk [vmem:[#allocation2 + $0xb] sm:$0xff] %vm2271, %v3309
        %3314 = vst.msk [vmem:[#allocation2 + $0x13] sm:$0xff] %vm2271, %v3310
        %3315 = vst.msk [vmem:[#allocation2 + $0x1b] sm:$0xff] %vm2271, %v3311
        %v3316 = vld [vmem:[#allocation2] sm:$0xff]
        %v3317 = vld [vmem:[#allocation2 + $0x8] sm:$0xff]
        %v3318 = vld [vmem:[#allocation2 + $0x10] sm:$0xff]
        %v3319 = vld [vmem:[#allocation2 + $0x18] sm:$0xff]
        %v3320 = vld [vmem:[#allocation2 + $0x1] sm:$0xff]
        %v3321 = vld [vmem:[#allocation2 + $0x9] sm:$0xff]
        %v3322 = vld [vmem:[#allocation2 + $0x11] sm:$0xff]
        %v3323 = vld [vmem:[#allocation2 + $0x19] sm:$0xff]
        %v3324 = vld [vmem:[#allocation2 + $0x2] sm:$0xff]
        %v3325 = vld [vmem:[#allocation2 + $0xa] sm:$0xff]
        %v3326 = vld [vmem:[#allocation2 + $0x12] sm:$0xff]
        %v3327 = vld [vmem:[#allocation2 + $0x1a] sm:$0xff]
        %v3328 = vld [vmem:[#allocation2 + $0x3] sm:$0xff]
        %v3329 = vld [vmem:[#allocation2 + $0xb] sm:$0xff]
        %v3330 = vld [vmem:[#allocation2 + $0x13] sm:$0xff]
        %v3331 = vld [vmem:[#allocation2 + $0x1b] sm:$0xff]
        %v3332 = vld [vmem:[#allocation2 + $0x4] sm:$0xff]
        %v3333 = vld [vmem:[#allocation2 + $0xc] sm:$0xff]
        %v3334 = vld [vmem:[#allocation2 + $0x14] sm:$0xff]
        %v3335 = vld [vmem:[#allocation2 + $0x1c] sm:$0xff]
        %v3336 = vld [vmem:[#allocation2 + $0x5] sm:$0xff]
        %v3337 = vld [vmem:[#allocation2 + $0xd] sm:$0xff]
        %v3338 = vld [vmem:[#allocation2 + $0x15] sm:$0xff]
        %v3339 = vld [vmem:[#allocation2 + $0x1d] sm:$0xff]
        %v3340 = vld [vmem:[#allocation2 + $0x6] sm:$0xff]
        %v3341 = vld [vmem:[#allocation2 + $0xe] sm:$0xff]
        %v3342 = vld [vmem:[#allocation2 + $0x16] sm:$0xff]
        %v3343 = vld [vmem:[#allocation2 + $0x1e] sm:$0xff]
        %3348 = vrot.lane.b32.xlu0 %v3320, 16
        %v3349 = vpop.permute.xlu0 %3348
        %3350 = vrot.lane.b32.xlu0 %v3321, 16
        %v3351 = vpop.permute.xlu0 %3350
        %3352 = vrot.lane.b32.xlu0 %v3322, 16
        %v3353 = vpop.permute.xlu0 %3352
        %3354 = vrot.lane.b32.xlu0 %v3323, 16
        %v3355 = vpop.permute.xlu0 %3354
        %3364 = vrot.lane.b32.xlu0 %v3324, 32
        %v3365 = vpop.permute.xlu0 %3364
        %3366 = vrot.lane.b32.xlu0 %v3325, 32
        %v3367 = vpop.permute.xlu0 %3366
        %3368 = vrot.lane.b32.xlu0 %v3326, 32
        %v3369 = vpop.permute.xlu0 %3368
        %3370 = vrot.lane.b32.xlu0 %v3327, 32
        %v3371 = vpop.permute.xlu0 %3370
        %3380 = vrot.lane.b32.xlu0 %v3328, 48
        %v3381 = vpop.permute.xlu0 %3380
        %3382 = vrot.lane.b32.xlu0 %v3329, 48
        %v3383 = vpop.permute.xlu0 %3382
        %3384 = vrot.lane.b32.xlu0 %v3330, 48
        %v3385 = vpop.permute.xlu0 %3384
        %3386 = vrot.lane.b32.xlu0 %v3331, 48
        %v3387 = vpop.permute.xlu0 %3386
        %3396 = vrot.lane.b32.xlu0 %v3332, 64
        %v3397 = vpop.permute.xlu0 %3396
        %3398 = vrot.lane.b32.xlu0 %v3333, 64
        %v3399 = vpop.permute.xlu0 %3398
        %3400 = vrot.lane.b32.xlu0 %v3334, 64
        %v3401 = vpop.permute.xlu0 %3400
        %3402 = vrot.lane.b32.xlu0 %v3335, 64
        %v3403 = vpop.permute.xlu0 %3402
        %3412 = vrot.lane.b32.xlu0 %v3336, 80
        %v3413 = vpop.permute.xlu0 %3412
        %3414 = vrot.lane.b32.xlu0 %v3337, 80
        %v3415 = vpop.permute.xlu0 %3414
        %3416 = vrot.lane.b32.xlu0 %v3338, 80
        %v3417 = vpop.permute.xlu0 %3416
        %3418 = vrot.lane.b32.xlu0 %v3339, 80
        %v3419 = vpop.permute.xlu0 %3418
        %3428 = vrot.lane.b32.xlu0 %v3340, 96
        %v3429 = vpop.permute.xlu0 %3428
        %3430 = vrot.lane.b32.xlu0 %v3341, 96
        %v3431 = vpop.permute.xlu0 %3430
        %3432 = vrot.lane.b32.xlu0 %v3342, 96
        %v3433 = vpop.permute.xlu0 %3432
        %3434 = vrot.lane.b32.xlu0 %v3343, 96
        %v3435 = vpop.permute.xlu0 %3434
        %v3440 = vsel %vm2271, %v3316, %v3349
        %v3441 = vsel %vm2271, %v3317, %v3351
        %v3442 = vsel %vm2271, %v3318, %v3353
        %v3443 = vsel %vm2271, %v3319, %v3355
        %v3444 = vsel %vm2289, %v3440, %v3365
        %v3445 = vsel %vm2289, %v3441, %v3367
        %v3446 = vsel %vm2289, %v3442, %v3369
        %v3447 = vsel %vm2289, %v3443, %v3371
        %v3448 = vsel %vm2307, %v3444, %v3381
        %v3449 = vsel %vm2307, %v3445, %v3383
        %v3450 = vsel %vm2307, %v3446, %v3385
        %v3451 = vsel %vm2307, %v3447, %v3387
        %v3452 = vsel %vm3152, %v3448, %v3397
        %v3453 = vsel %vm3152, %v3449, %v3399
        %v3454 = vsel %vm3152, %v3450, %v3401
        %v3455 = vsel %vm3152, %v3451, %v3403
        %v3456 = vsel %vm3157, %v3452, %v3413
        %v3457 = vsel %vm3157, %v3453, %v3415
        %v3458 = vsel %vm3157, %v3454, %v3417
        %v3459 = vsel %vm3157, %v3455, %v3419
        %v3460 = vsel %vm3162, %v3456, %v3429
        %v3461 = vsel %vm3162, %v3457, %v3431
        %v3462 = vsel %vm3162, %v3458, %v3433
        %v3463 = vsel %vm3162, %v3459, %v3435
        %v3464 = vld [vmem:[%s43] sm:$0xff]
        %v3465 = vld [vmem:[%s43 + $0x8] sm:$0xff]
        %v3466 = vld [vmem:[%s43 + $0x10] sm:$0xff]
        %v3467 = vld [vmem:[%s43 + $0x18] sm:$0xff]
        %v3468 = vld [vmem:[%s43 + $0x20] sm:$0xff]
        %v3469 = vld [vmem:[%s43 + $0x28] sm:$0xff]
        %v3470 = vld [vmem:[%s43 + $0x30] sm:$0xff]
        %v3471 = vld [vmem:[%s43 + $0x38] sm:$0xff]
        %v3472 = vld [vmem:[%s43 + $0x40] sm:$0xff]
        %v3473 = vld [vmem:[%s43 + $0x48] sm:$0xff]
        %v3474 = vld [vmem:[%s43 + $0x50] sm:$0xff]
        %v3475 = vld [vmem:[%s43 + $0x58] sm:$0xff]
        %v3476 = vld [vmem:[%s43 + $0x60] sm:$0xff]
        %v3477 = vld [vmem:[%s43 + $0x68] sm:$0xff]
        %v3478 = vld [vmem:[%s45] sm:$0x1]
        %v3480 = vlaneseq
        %v3481 = vshrl.u32 %v3480, 7
        %v3482 = vsub.s32 0, %v3481
        %v3483 = vrot.slane %v3478, %v3482
        %v3486 = vsel %vm3188, %v3460, 0
        %v3489 = vsel %vm3188, %v3461, 0
        %v3492 = vsel %vm3188, %v3462, 0
        %v3495 = vsel %vm3188, %v3463, 0
        %3497 = vmatprep.subr.mxu0 0.0
        %3498 = vmatpush1.msra.mxu0 0.0
        %3499 = vmatprep.subr.mxu0 0.0
        %3500 = vmatpush1.msra.mxu0 0.0
        %3501 = vmatprep.subr.mxu0 0.0
        %3502 = vmatpush1.msra.mxu0 %v3477
        %3503 = vmatprep.subr.mxu0 0.0
        %3504 = vmatpush1.msra.mxu0 %v3476
        %3505 = vmatprep.subr.mxu0 0.0
        %3506 = vmatpush1.msra.mxu0 %v3475
        %3507 = vmatprep.subr.mxu0 0.0
        %3508 = vmatpush1.msra.mxu0 %v3474
        %3509 = vmatprep.subr.mxu0 0.0
        %3510 = vmatpush1.msra.mxu0 %v3473
        %3511 = vmatprep.subr.mxu0 0.0
        %3512 = vmatpush1.msra.mxu0 %v3472
        %3513 = vmatprep.subr.mxu0 0.0
        %3514 = vmatpush1.msra.mxu0 %v3471
        %3515 = vmatprep.subr.mxu0 0.0
        %3516 = vmatpush1.msra.mxu0 %v3470
        %3517 = vmatprep.subr.mxu0 0.0
        %3518 = vmatpush1.msra.mxu0 %v3469
        %3519 = vmatprep.subr.mxu0 0.0
        %3520 = vmatpush1.msra.mxu0 %v3468
        %3521 = vmatprep.subr.mxu0 0.0
        %3522 = vmatpush1.msra.mxu0 %v3467
        %3523 = vmatprep.subr.mxu0 0.0
        %3524 = vmatpush1.msra.mxu0 %v3466
        %3525 = vmatprep.subr.mxu0 0.0
        %3526 = vmatpush1.msra.mxu0 %v3465
        %3527 = vmatprep.subr.mxu0 0.0
        %3528 = vmatpush1.msra.mxu0 %v3464
        %3529 = vmatprep.subr.mxu0 0.0
        %3530 = vmatpush2.msra.mxu0 0.0
        %3531 = vmatprep.subr.mxu0 0.0
        %3532 = vmatpush2.msra.mxu0 0.0
        %3533 = vmatprep.subr.mxu0 0.0
        %3534 = vmatpush2.msra.mxu0 0.0
        %3535 = vmatprep.subr.mxu0 0.0
        %3536 = vmatpush2.msra.mxu0 0.0
        %3537 = vmatprep.subr.mxu0 0.0
        %3538 = vmatpush2.msra.mxu0 0.0
        %3539 = vmatprep.subr.mxu0 0.0
        %3540 = vmatpush2.msra.mxu0 0.0
        %3541 = vmatprep.subr.mxu0 0.0
        %3542 = vmatpush2.msra.mxu0 0.0
        %3543 = vmatprep.subr.mxu0 0.0
        %3544 = vmatpush2.msra.mxu0 0.0
        %3545 = vmatprep.subr.mxu0 0.0
        %3546 = vmatpush2.msra.mxu0 0.0
        %3547 = vmatprep.subr.mxu0 0.0
        %3548 = vmatpush2.msra.mxu0 0.0
        %3549 = vmatprep.subr.mxu0 0.0
        %3550 = vmatpush2.msra.mxu0 0.0
        %3551 = vmatprep.subr.mxu0 0.0
        %3552 = vmatpush2.msra.mxu0 0.0
        %3553 = vmatprep.subr.mxu0 0.0
        %3554 = vmatpush2.msra.mxu0 0.0
        %3555 = vmatprep.subr.mxu0 0.0
        %3556 = vmatpush2.msra.mxu0 0.0
        %3557 = vmatprep.subr.mxu0 0.0
        %3558 = vmatpush2.msra.mxu0 0.0
        %3559 = vmatprep.subr.mxu0 0.0
        %3560 = vmatpush2.msra.mxu0 0.0
        %3561 = vmatprep.mubr.f32.mxu0 0.0
        %3562 = vmatmul.mubr.f32.gmra.mxu0 %v3486
        %v3563 = vpop.f32.mrf.mxu0
        %v3564 = vadd.f32 %v3483, %v3563
        %v3565 = vpop.f32.mrf.mxu0
        %3566 = vmatprep.mubr.f32.mxu0 0.0
        %3567 = vmatmul.mubr.f32.gmra.mxu0 %v3489
        %v3568 = vpop.f32.mrf.mxu0
        %v3569 = vadd.f32 %v3483, %v3568
        %v3570 = vpop.f32.mrf.mxu0
        %3571 = vmatprep.mubr.f32.mxu0 0.0
        %3572 = vmatmul.mubr.f32.gmra.mxu0 %v3492
        %v3573 = vpop.f32.mrf.mxu0
        %v3574 = vadd.f32 %v3483, %v3573
        %v3575 = vpop.f32.mrf.mxu0
        %3576 = vmatprep.mubr.f32.mxu0 0.0
        %3577 = vmatmul.mubr.f32.gmra.mxu0 %v3495
        %v3578 = vpop.f32.mrf.mxu0
        %v3579 = vadd.f32 %v3483, %v3578
        %v3580 = vpop.f32.mrf.mxu0
        %3581 = vdwg.mxu0
        %v3582 = vmax.f32 %v3564, 0.0
        %v3583 = vmax.f32 %v3569, 0.0
        %v3584 = vmax.f32 %v3574, 0.0
        %v3585 = vmax.f32 %v3579, 0.0
        %v3586 = vld [vmem:[%s47] sm:$0x1]
        %v3588 = vlaneseq
        %v3589 = vshrl.u32 %v3588, 7
        %v3590 = vsub.s32 0, %v3589
        %v3591 = vrot.slane %v3586, %v3590
        %v3593 = vmul.f32 %v3582, %v3591
        %v3594 = vmul.f32 %v3583, %v3591
        %v3595 = vmul.f32 %v3584, %v3591
        %v3596 = vmul.f32 %v3585, %v3591
        %v3597 = vld [vmem:[%s49] sm:$0x1]
        %v3599 = vlaneseq
        %v3600 = vshrl.u32 %v3599, 7
        %v3601 = vsub.s32 0, %v3600
        %v3602 = vrot.slane %v3597, %v3601
        %v3604 = vadd.f32 %v3593, %v3602
        %v3605 = vadd.f32 %v3594, %v3602
        %v3606 = vadd.f32 %v3595, %v3602
        %v3607 = vadd.f32 %v3596, %v3602
        %3608 = vst.msk [vmem:[#allocation2] sm:$0xff] %vm2280, %v3604
        %3609 = vst.msk [vmem:[#allocation2 + $0x8] sm:$0xff] %vm2280, %v3605
        %3610 = vst.msk [vmem:[#allocation2 + $0x10] sm:$0xff] %vm2280, %v3606
        %3611 = vst.msk [vmem:[#allocation2 + $0x18] sm:$0xff] %vm2280, %v3607
        %v3612 = vld [vmem:[#allocation2] ss:$2 sm:$0xff]
        %v3613 = vld [vmem:[%s2992] ss:$2 sm:$0xff]
        %v3614 = vld [vmem:[%s2998] ss:$2 sm:$0xff]
        %v3615 = vld [vmem:[%s3000] ss:$2 sm:$0xff]
        %v3616 = vmax.f32 %v3612, %v3614
        %v3617 = vmax.f32 %v3613, %v3615
        %3618 = vst.msk [vmem:[#allocation2] sm:$0x7] %vm1029, 0.0
        %3619 = vst.msk [vmem:[#allocation2 + $0x13] sm:$0x7] %vm1029, 0.0
        %3620 = vst.msk [vmem:[#allocation2 + $0x3] sm:$0xff] %vm2280, %v3616
        %3621 = vst.msk [vmem:[#allocation2 + $0xb] sm:$0xff] %vm2280, %v3617
        %v3622 = vld [vmem:[#allocation2] sm:$0xff]
        %v3623 = vld [vmem:[#allocation2 + $0x8] sm:$0xff]
        %v3624 = vld [vmem:[#allocation2 + $0x1] sm:$0xff]
        %v3625 = vld [vmem:[#allocation2 + $0x9] sm:$0xff]
        %v3626 = vld [vmem:[#allocation2 + $0x2] sm:$0xff]
        %v3627 = vld [vmem:[#allocation2 + $0xa] sm:$0xff]
        %v3628 = vld [vmem:[#allocation2 + $0x3] sm:$0xff]
        %v3629 = vld [vmem:[#allocation2 + $0xb] sm:$0xff]
        %v3630 = vld [vmem:[#allocation2 + $0x4] sm:$0xff]
        %v3631 = vld [vmem:[#allocation2 + $0xc] sm:$0xff]
        %v3632 = vld [vmem:[#allocation2 + $0x5] sm:$0xff]
        %v3633 = vld [vmem:[#allocation2 + $0xd] sm:$0xff]
        %v3634 = vld [vmem:[#allocation2 + $0x6] sm:$0xff]
        %v3635 = vld [vmem:[#allocation2 + $0xe] sm:$0xff]
        %3638 = vrot.lane.b32.xlu0 %v3624, 24
        %v3639 = vpop.permute.xlu0 %3638
        %3640 = vrot.lane.b32.xlu0 %v3625, 24
        %v3641 = vpop.permute.xlu0 %3640
        %3646 = vrot.lane.b32.xlu0 %v3626, 48
        %v3647 = vpop.permute.xlu0 %3646
        %3648 = vrot.lane.b32.xlu0 %v3627, 48
        %v3649 = vpop.permute.xlu0 %3648
        %3654 = vrot.lane.b32.xlu0 %v3628, 72
        %v3655 = vpop.permute.xlu0 %3654
        %3656 = vrot.lane.b32.xlu0 %v3629, 72
        %v3657 = vpop.permute.xlu0 %3656
        %3662 = vrot.lane.b32.xlu0 %v3630, 96
        %v3663 = vpop.permute.xlu0 %3662
        %3664 = vrot.lane.b32.xlu0 %v3631, 96
        %v3665 = vpop.permute.xlu0 %3664
        %3670 = vrot.lane.b32.xlu0 %v3632, 120
        %v3671 = vpop.permute.xlu0 %3670
        %3672 = vrot.lane.b32.xlu0 %v3633, 120
        %v3673 = vpop.permute.xlu0 %3672
        %3678 = vrot.lane.b32.xlu0 %v3634, 16
        %v3679 = vpop.permute.xlu0 %3678
        %3680 = vrot.lane.b32.xlu0 %v3635, 16
        %v3681 = vpop.permute.xlu0 %3680
        %v3684 = vsel %vm2280, %v3622, %v3639
        %v3685 = vsel %vm2280, %v3623, %v3641
        %v3686 = vsel %vm2307, %v3684, %v3647
        %v3687 = vsel %vm2307, %v3685, %v3649
        %vm3688 = vcmask 588800
        %v3689 = vsel %vm3688, %v3686, %v3655
        %v3690 = vsel %vm3688, %v3687, %v3657
        %v3691 = vsel %vm3162, %v3689, %v3663
        %v3692 = vsel %vm3162, %v3690, %v3665
        %vm3693 = vcmask 982016
        %v3694 = vsel %vm3693, %v3691, %v3671
        %v3695 = vsel %vm3693, %v3692, %v3673
        %v3696 = vsel %vm2271, %v3671, %v3679
        %v3697 = vsel %vm2271, %v3673, %v3681
        %v3698 = vld [vmem:[%s51] sm:$0xff]
        %v3699 = vld [vmem:[%s51 + $0x8] sm:$0xff]
        %v3700 = vld [vmem:[%s51 + $0x10] sm:$0xff]
        %v3701 = vld [vmem:[%s51 + $0x18] sm:$0xff]
        %v3702 = vld [vmem:[%s51 + $0x20] sm:$0xff]
        %v3703 = vld [vmem:[%s51 + $0x28] sm:$0xff]
        %v3704 = vld [vmem:[%s51 + $0x30] sm:$0xff]
        %v3705 = vld [vmem:[%s51 + $0x38] sm:$0xff]
        %v3706 = vld [vmem:[%s51 + $0x40] sm:$0xff]
        %v3707 = vld [vmem:[%s51 + $0x48] sm:$0xff]
        %v3708 = vld [vmem:[%s51 + $0x50] sm:$0xff]
        %v3709 = vld [vmem:[%s51 + $0x58] sm:$0xff]
        %v3710 = vld [vmem:[%s51 + $0x60] sm:$0xff]
        %v3711 = vld [vmem:[%s51 + $0x68] sm:$0xff]
        %v3712 = vld [vmem:[%s51 + $0x70] sm:$0xff]
        %v3713 = vld [vmem:[%s51 + $0x78] sm:$0xff]
        %v3714 = vld [vmem:[%s51 + $0x80] sm:$0xff]
        %v3715 = vld [vmem:[%s51 + $0x88] sm:$0xff]
        %v3716 = vld [vmem:[%s51 + $0x90] sm:$0xff]
        %v3717 = vld [vmem:[%s51 + $0x98] sm:$0xff]
        %v3718 = vld [vmem:[%s51 + $0xa0] sm:$0xff]
        %v3719 = vld [vmem:[%s53] sm:$0x1]
        %v3721 = vlaneseq
        %v3722 = vshrl.u32 %v3721, 7
        %v3723 = vsub.s32 0, %v3722
        %v3724 = vrot.slane %v3719, %v3723
        %v3727 = vsel %vm2298, %v3696, 0
        %v3730 = vsel %vm2298, %v3697, 0
        %3732 = vmatprep.subr.mxu0 0.0
        %3733 = vmatpush1.msra.mxu0 %v3713
        %3734 = vmatprep.subr.mxu0 0.0
        %3735 = vmatpush1.msra.mxu0 %v3712
        %3736 = vmatprep.subr.mxu0 0.0
        %3737 = vmatpush1.msra.mxu0 %v3711
        %3738 = vmatprep.subr.mxu0 0.0
        %3739 = vmatpush1.msra.mxu0 %v3710
        %3740 = vmatprep.subr.mxu0 0.0
        %3741 = vmatpush1.msra.mxu0 %v3709
        %3742 = vmatprep.subr.mxu0 0.0
        %3743 = vmatpush1.msra.mxu0 %v3708
        %3744 = vmatprep.subr.mxu0 0.0
        %3745 = vmatpush1.msra.mxu0 %v3707
        %3746 = vmatprep.subr.mxu0 0.0
        %3747 = vmatpush1.msra.mxu0 %v3706
        %3748 = vmatprep.subr.mxu0 0.0
        %3749 = vmatpush1.msra.mxu0 %v3705
        %3750 = vmatprep.subr.mxu0 0.0
        %3751 = vmatpush1.msra.mxu0 %v3704
        %3752 = vmatprep.subr.mxu0 0.0
        %3753 = vmatpush1.msra.mxu0 %v3703
        %3754 = vmatprep.subr.mxu0 0.0
        %3755 = vmatpush1.msra.mxu0 %v3702
        %3756 = vmatprep.subr.mxu0 0.0
        %3757 = vmatpush1.msra.mxu0 %v3701
        %3758 = vmatprep.subr.mxu0 0.0
        %3759 = vmatpush1.msra.mxu0 %v3700
        %3760 = vmatprep.subr.mxu0 0.0
        %3761 = vmatpush1.msra.mxu0 %v3699
        %3762 = vmatprep.subr.mxu0 0.0
        %3763 = vmatpush1.msra.mxu0 %v3698
        %3764 = vmatprep.subr.mxu0 0.0
        %3765 = vmatpush2.msra.mxu0 0.0
        %3766 = vmatprep.subr.mxu0 0.0
        %3767 = vmatpush2.msra.mxu0 0.0
        %3768 = vmatprep.subr.mxu0 0.0
        %3769 = vmatpush2.msra.mxu0 0.0
        %3770 = vmatprep.subr.mxu0 0.0
        %3771 = vmatpush2.msra.mxu0 0.0
        %3772 = vmatprep.subr.mxu0 0.0
        %3773 = vmatpush2.msra.mxu0 0.0
        %3774 = vmatprep.subr.mxu0 0.0
        %3775 = vmatpush2.msra.mxu0 0.0
        %3776 = vmatprep.subr.mxu0 0.0
        %3777 = vmatpush2.msra.mxu0 0.0
        %3778 = vmatprep.subr.mxu0 0.0
        %3779 = vmatpush2.msra.mxu0 0.0
        %3780 = vmatprep.subr.mxu0 0.0
        %3781 = vmatpush2.msra.mxu0 0.0
        %3782 = vmatprep.subr.mxu0 0.0
        %3783 = vmatpush2.msra.mxu0 0.0
        %3784 = vmatprep.subr.mxu0 0.0
        %3785 = vmatpush2.msra.mxu0 0.0
        %3786 = vmatprep.subr.mxu0 0.0
        %3787 = vmatpush2.msra.mxu0 %v3718
        %3788 = vmatprep.subr.mxu0 0.0
        %3789 = vmatpush2.msra.mxu0 %v3717
        %3790 = vmatprep.subr.mxu0 0.0
        %3791 = vmatpush2.msra.mxu0 %v3716
        %3792 = vmatprep.subr.mxu0 0.0
        %3793 = vmatpush2.msra.mxu0 %v3715
        %3794 = vmatprep.subr.mxu0 0.0
        %3795 = vmatpush2.msra.mxu0 %v3714
        %3796 = vmatprep.mubr.f32.mxu0 %v3727
        %3797 = vmatmul.mubr.f32.gmra.mxu0 %v3694
        %v3798 = vpop.f32.mrf.mxu0
        %v3799 = vadd.f32 %v3724, %v3798
        %v3800 = vpop.f32.mrf.mxu0
        %3801 = vmatprep.mubr.f32.mxu0 %v3730
        %3802 = vmatmul.mubr.f32.gmra.mxu0 %v3695
        %v3803 = vpop.f32.mrf.mxu0
        %v3804 = vadd.f32 %v3724, %v3803
        %v3805 = vpop.f32.mrf.mxu0
        %3806 = vdwg.mxu0
        %v3807 = vmax.f32 %v3799, 0.0
        %v3808 = vmax.f32 %v3804, 0.0
        %v3809 = vld [vmem:[%s55] sm:$0x1]
        %v3811 = vlaneseq
        %v3812 = vshrl.u32 %v3811, 7
        %v3813 = vsub.s32 0, %v3812
        %v3814 = vrot.slane %v3809, %v3813
        %v3816 = vmul.f32 %v3807, %v3814
        %v3817 = vmul.f32 %v3808, %v3814
        %v3818 = vld [vmem:[%s57] sm:$0x1]
        %v3820 = vlaneseq
        %v3821 = vshrl.u32 %v3820, 7
        %v3822 = vsub.s32 0, %v3821
        %v3823 = vrot.slane %v3818, %v3822
        %v3825 = vadd.f32 %v3816, %v3823
        %v3826 = vadd.f32 %v3817, %v3823
        %3827 = vst.msk [vmem:[#allocation2 + $0x3] sm:$0xff] %vm2280, %v3825
        %3828 = vst.msk [vmem:[#allocation2 + $0xb] sm:$0xff] %vm2280, %v3826
        %v3829 = vld [vmem:[#allocation2] sm:$0xff]
        %v3830 = vld [vmem:[#allocation2 + $0x8] sm:$0xff]
        %v3831 = vld [vmem:[#allocation2 + $0x1] sm:$0xff]
        %v3832 = vld [vmem:[#allocation2 + $0x9] sm:$0xff]
        %v3833 = vld [vmem:[#allocation2 + $0x2] sm:$0xff]
        %v3834 = vld [vmem:[#allocation2 + $0xa] sm:$0xff]
        %v3835 = vld [vmem:[#allocation2 + $0x3] sm:$0xff]
        %v3836 = vld [vmem:[#allocation2 + $0xb] sm:$0xff]
        %v3837 = vld [vmem:[#allocation2 + $0x4] sm:$0xff]
        %v3838 = vld [vmem:[#allocation2 + $0xc] sm:$0xff]
        %v3839 = vld [vmem:[#allocation2 + $0x5] sm:$0xff]
        %v3840 = vld [vmem:[#allocation2 + $0xd] sm:$0xff]
        %v3841 = vld [vmem:[#allocation2 + $0x6] sm:$0xff]
        %v3842 = vld [vmem:[#allocation2 + $0xe] sm:$0xff]
        %3845 = vrot.lane.b32.xlu0 %v3831, 24
        %v3846 = vpop.permute.xlu0 %3845
        %3847 = vrot.lane.b32.xlu0 %v3832, 24
        %v3848 = vpop.permute.xlu0 %3847
        %3853 = vrot.lane.b32.xlu0 %v3833, 48
        %v3854 = vpop.permute.xlu0 %3853
        %3855 = vrot.lane.b32.xlu0 %v3834, 48
        %v3856 = vpop.permute.xlu0 %3855
        %3861 = vrot.lane.b32.xlu0 %v3835, 72
        %v3862 = vpop.permute.xlu0 %3861
        %3863 = vrot.lane.b32.xlu0 %v3836, 72
        %v3864 = vpop.permute.xlu0 %3863
        %3869 = vrot.lane.b32.xlu0 %v3837, 96
        %v3870 = vpop.permute.xlu0 %3869
        %3871 = vrot.lane.b32.xlu0 %v3838, 96
        %v3872 = vpop.permute.xlu0 %3871
        %3877 = vrot.lane.b32.xlu0 %v3839, 120
        %v3878 = vpop.permute.xlu0 %3877
        %3879 = vrot.lane.b32.xlu0 %v3840, 120
        %v3880 = vpop.permute.xlu0 %3879
        %3885 = vrot.lane.b32.xlu0 %v3841, 16
        %v3886 = vpop.permute.xlu0 %3885
        %3887 = vrot.lane.b32.xlu0 %v3842, 16
        %v3888 = vpop.permute.xlu0 %3887
        %v3891 = vsel %vm2280, %v3829, %v3846
        %v3892 = vsel %vm2280, %v3830, %v3848
        %v3893 = vsel %vm2307, %v3891, %v3854
        %v3894 = vsel %vm2307, %v3892, %v3856
        %v3895 = vsel %vm3688, %v3893, %v3862
        %v3896 = vsel %vm3688, %v3894, %v3864
        %v3897 = vsel %vm3162, %v3895, %v3870
        %v3898 = vsel %vm3162, %v3896, %v3872
        %v3899 = vsel %vm3693, %v3897, %v3878
        %v3900 = vsel %vm3693, %v3898, %v3880
        %v3901 = vsel %vm2271, %v3878, %v3886
        %v3902 = vsel %vm2271, %v3880, %v3888
        %v3903 = vld [vmem:[%s59] sm:$0xff]
        %v3904 = vld [vmem:[%s59 + $0x8] sm:$0xff]
        %v3905 = vld [vmem:[%s59 + $0x10] sm:$0xff]
        %v3906 = vld [vmem:[%s59 + $0x18] sm:$0xff]
        %v3907 = vld [vmem:[%s59 + $0x20] sm:$0xff]
        %v3908 = vld [vmem:[%s59 + $0x28] sm:$0xff]
        %v3909 = vld [vmem:[%s59 + $0x30] sm:$0xff]
        %v3910 = vld [vmem:[%s59 + $0x38] sm:$0xff]
        %v3911 = vld [vmem:[%s59 + $0x40] sm:$0xff]
        %v3912 = vld [vmem:[%s59 + $0x48] sm:$0xff]
        %v3913 = vld [vmem:[%s59 + $0x50] sm:$0xff]
        %v3914 = vld [vmem:[%s59 + $0x58] sm:$0xff]
        %v3915 = vld [vmem:[%s59 + $0x60] sm:$0xff]
        %v3916 = vld [vmem:[%s59 + $0x68] sm:$0xff]
        %v3917 = vld [vmem:[%s59 + $0x70] sm:$0xff]
        %v3918 = vld [vmem:[%s59 + $0x78] sm:$0xff]
        %v3919 = vld [vmem:[%s59 + $0x80] sm:$0xff]
        %v3920 = vld [vmem:[%s59 + $0x88] sm:$0xff]
        %v3921 = vld [vmem:[%s59 + $0x90] sm:$0xff]
        %v3922 = vld [vmem:[%s59 + $0x98] sm:$0xff]
        %v3923 = vld [vmem:[%s59 + $0xa0] sm:$0xff]
        %v3924 = vld [vmem:[%s61] sm:$0x1]
        %v3926 = vlaneseq
        %v3927 = vshrl.u32 %v3926, 7
        %v3928 = vsub.s32 0, %v3927
        %v3929 = vrot.slane %v3924, %v3928
        %v3932 = vsel %vm2298, %v3901, 0
        %v3935 = vsel %vm2298, %v3902, 0
        %3937 = vmatprep.subr.mxu0 0.0
        %3938 = vmatpush1.msra.mxu0 %v3918
        %3939 = vmatprep.subr.mxu0 0.0
        %3940 = vmatpush1.msra.mxu0 %v3917
        %3941 = vmatprep.subr.mxu0 0.0
        %3942 = vmatpush1.msra.mxu0 %v3916
        %3943 = vmatprep.subr.mxu0 0.0
        %3944 = vmatpush1.msra.mxu0 %v3915
        %3945 = vmatprep.subr.mxu0 0.0
        %3946 = vmatpush1.msra.mxu0 %v3914
        %3947 = vmatprep.subr.mxu0 0.0
        %3948 = vmatpush1.msra.mxu0 %v3913
        %3949 = vmatprep.subr.mxu0 0.0
        %3950 = vmatpush1.msra.mxu0 %v3912
        %3951 = vmatprep.subr.mxu0 0.0
        %3952 = vmatpush1.msra.mxu0 %v3911
        %3953 = vmatprep.subr.mxu0 0.0
        %3954 = vmatpush1.msra.mxu0 %v3910
        %3955 = vmatprep.subr.mxu0 0.0
        %3956 = vmatpush1.msra.mxu0 %v3909
        %3957 = vmatprep.subr.mxu0 0.0
        %3958 = vmatpush1.msra.mxu0 %v3908
        %3959 = vmatprep.subr.mxu0 0.0
        %3960 = vmatpush1.msra.mxu0 %v3907
        %3961 = vmatprep.subr.mxu0 0.0
        %3962 = vmatpush1.msra.mxu0 %v3906
        %3963 = vmatprep.subr.mxu0 0.0
        %3964 = vmatpush1.msra.mxu0 %v3905
        %3965 = vmatprep.subr.mxu0 0.0
        %3966 = vmatpush1.msra.mxu0 %v3904
        %3967 = vmatprep.subr.mxu0 0.0
        %3968 = vmatpush1.msra.mxu0 %v3903
        %3969 = vmatprep.subr.mxu0 0.0
        %3970 = vmatpush2.msra.mxu0 0.0
        %3971 = vmatprep.subr.mxu0 0.0
        %3972 = vmatpush2.msra.mxu0 0.0
        %3973 = vmatprep.subr.mxu0 0.0
        %3974 = vmatpush2.msra.mxu0 0.0
        %3975 = vmatprep.subr.mxu0 0.0
        %3976 = vmatpush2.msra.mxu0 0.0
        %3977 = vmatprep.subr.mxu0 0.0
        %3978 = vmatpush2.msra.mxu0 0.0
        %3979 = vmatprep.subr.mxu0 0.0
        %3980 = vmatpush2.msra.mxu0 0.0
        %3981 = vmatprep.subr.mxu0 0.0
        %3982 = vmatpush2.msra.mxu0 0.0
        %3983 = vmatprep.subr.mxu0 0.0
        %3984 = vmatpush2.msra.mxu0 0.0
        %3985 = vmatprep.subr.mxu0 0.0
        %3986 = vmatpush2.msra.mxu0 0.0
        %3987 = vmatprep.subr.mxu0 0.0
        %3988 = vmatpush2.msra.mxu0 0.0
        %3989 = vmatprep.subr.mxu0 0.0
        %3990 = vmatpush2.msra.mxu0 0.0
        %3991 = vmatprep.subr.mxu0 0.0
        %3992 = vmatpush2.msra.mxu0 %v3923
        %3993 = vmatprep.subr.mxu0 0.0
        %3994 = vmatpush2.msra.mxu0 %v3922
        %3995 = vmatprep.subr.mxu0 0.0
        %3996 = vmatpush2.msra.mxu0 %v3921
        %3997 = vmatprep.subr.mxu0 0.0
        %3998 = vmatpush2.msra.mxu0 %v3920
        %3999 = vmatprep.subr.mxu0 0.0
        %4000 = vmatpush2.msra.mxu0 %v3919
        %4001 = vmatprep.mubr.f32.mxu0 %v3932
        %4002 = vmatmul.mubr.f32.gmra.mxu0 %v3899
        %v4003 = vpop.f32.mrf.mxu0
        %v4004 = vadd.f32 %v3929, %v4003
        %v4005 = vpop.f32.mrf.mxu0
        %4006 = vmatprep.mubr.f32.mxu0 %v3935
        %4007 = vmatmul.mubr.f32.gmra.mxu0 %v3900
        %v4008 = vpop.f32.mrf.mxu0
        %v4009 = vadd.f32 %v3929, %v4008
        %v4010 = vpop.f32.mrf.mxu0
        %4011 = vdwg.mxu0
        %v4012 = vmax.f32 %v4004, 0.0
        %v4013 = vmax.f32 %v4009, 0.0
        %v4014 = vld [vmem:[%s63] sm:$0x1]
        %v4016 = vlaneseq
        %v4017 = vshrl.u32 %v4016, 7
        %v4018 = vsub.s32 0, %v4017
        %v4019 = vrot.slane %v4014, %v4018
        %v4021 = vmul.f32 %v4012, %v4019
        %v4022 = vmul.f32 %v4013, %v4019
        %v4023 = vld [vmem:[%s65] sm:$0x1]
        %v4025 = vlaneseq
        %v4026 = vshrl.u32 %v4025, 7
        %v4027 = vsub.s32 0, %v4026
        %v4028 = vrot.slane %v4023, %v4027
        %v4030 = vadd.f32 %v4021, %v4028
        %v4031 = vadd.f32 %v4022, %v4028
        %4032 = vst.msk [vmem:[#allocation2] sm:$0xff] %vm2289, %v4030
        %4033 = vst.msk [vmem:[#allocation2 + $0x8] sm:$0xff] %vm2289, %v4031
        %v4034 = vld [vmem:[#allocation2] ss:$2 sm:$0xff]
        %v4035 = vld [vmem:[%s2998] ss:$2 sm:$0xff]
        %v4036 = vmax.f32 %v4034, %v4035
        %4037 = vst.msk [vmem:[%s1014] sm:$0xff] %vm2289, %v4036
        %s4038 = sand.u32 %s793, 1
        %s4039 = scalar_lea.sflag [#allocation7], %s4038
        %s4040 = sand.u32 %s793, 1
        %s4041 = smul.addr %s4040, 8
        %s4042 = scalar_lea.vmem [#allocation6], %s4041
        // Predicated region
        $region153: #{tpu_custom_call.1} parent=151 // pred_check
          %p4043 = pneg %p803
        $region154: #{tpu_custom_call.1} parent=151 // pred_check_branch
          %4045 = sbr.rel (%p4043) target = $region156
        $region155: #{tpu_custom_call.1} parent=151 // pred_region
          %s4047 = ssub.s32 128, 128
          %4048 = vsyncadd %s4039, %s4047
          %s4049 = smul.addr %s87, 128
          %s4050 = scalar_lea.hbm %s67, %s4049
          %s4052 = sshll.u32 %s4042, 4
          %s4053 = int_to_ptr.vmem [resolvable:$true] %s4052
          %4055 = dma.vmem_to_hbm [thread:$0]  %s4053, 128, %s4050, %s4039
        $region156: #{tpu_custom_call.1} parent=151 // pred_fallthru
          _
      $region152: #{tpu_custom_call.1} parent=5 // pred_fallthru
        _
      %p4056 = scmp.le.s32.totalorder 2, %s82
      // Predicated region
      $region157: #{tpu_custom_call.1} parent=5 // pred_check
        %p4057 = pneg %p4056
      $region158: #{tpu_custom_call.1} parent=5 // pred_check_branch
        %4059 = sbr.rel (%p4057) target = $region160
      $region159: #{tpu_custom_call.1} parent=5 // pred_region
        %s4060 = ssub.s32 %s82, 2
        // Predicated region
        $region161: #{tpu_custom_call.1} parent=159 // pred_check
          %p4061 = pneg %p809
        $region162: #{tpu_custom_call.1} parent=159 // pred_check_branch
          %4063 = sbr.rel (%p4061) target = $region164
        $region163: #{tpu_custom_call.1} parent=159 // pred_region
          %s4064 = sand.u32 %s794, 1
          %s4065 = scalar_lea.sflag [#allocation7], %s4064
          %s4066 = sand.u32 %s794, 1
          %s4067 = smul.addr %s4066, 8
          %s4068 = scalar_lea.vmem [#allocation6], %s4067
          %4069 = dma.done %s4065, 128
        $region164: #{tpu_custom_call.1} parent=159 // pred_fallthru
          _
      $region160: #{tpu_custom_call.1} parent=5 // pred_fallthru
        _
    $region6: #{tpu_custom_call.1} parent=1 // loop_footer
      %s86 = sadd.s32 1, %s82
    $region7: #{tpu_custom_call.1} parent=1 // loop_footer_branch
      %81 = sbr.rel target = $region3
    $region8: #{tpu_custom_call.1} parent=1 // loop_exit
      _
    %4070 = vsyncpa [#allocation7], 1
    %s4071 = scalar_lea.sflag [#allocation7], 1
    %4072 = vsyncpa %s4071, 1

</llo_original>
